<compile_context>
chip_gen: v7x
topology: tpu7x:2x2x1
jax: 0.10.0
libtpu: 0.0.40
codegen_flags: <defaults>
</compile_context>

<pallas_src>
import functools

import jax
import jax.numpy as jnp
from jax.experimental import pallas as pl
from jax.experimental.pallas import tpu as pltpu


# ---------------------------------------------------------------------------
# Fused Block kernel: one grid step = one batch element, all heads inside.
# ---------------------------------------------------------------------------
def _block_kernel(x_ref, g1_ref, be1_ref, wqkv_ref, wproj_ref, bproj_ref,
                  g2_ref, be2_ref, w1_ref, b1_ref, w2_ref, b2_ref,
                  o_ref, *, num_heads):
    T = x_ref.shape[1]
    C = x_ref.shape[2]
    hs = C // num_heads
    eps = 1e-5

    x = x_ref[0]  # [T, C]

    def layer_norm(h, gamma, beta):
        mu = jnp.mean(h, axis=-1, keepdims=True)
        hc = h - mu
        var = jnp.mean(hc * hc, axis=-1, keepdims=True)
        return hc * jax.lax.rsqrt(var + eps) * gamma + beta

    # ---- ln1 + fused QKV projection (lane-dense [T,C] x [C,3C]) ----
    h1 = layer_norm(x, g1_ref[...], be1_ref[...])
    qkv = jnp.dot(h1, wqkv_ref[...], preferred_element_type=jnp.float32)
    q = qkv[:, 0:C]
    k = qkv[:, C:2 * C]
    v = qkv[:, 2 * C:3 * C]

    # ---- causal attention, all heads in this grid step ----
    row = jax.lax.broadcasted_iota(jnp.int32, (T, T), 0)
    col = jax.lax.broadcasted_iota(jnp.int32, (T, T), 1)
    causal = col <= row
    scale = 1.0 / (float(hs) ** 0.5)

    head_outs = []
    for h in range(num_heads):
        lo = h * hs
        qh = q[:, lo:lo + hs]
        kh = k[:, lo:lo + hs]
        vh = v[:, lo:lo + hs]
        # s[t, s] = sum_d qh[t, d] * kh[s, d]   (no explicit transpose needed)
        s = jax.lax.dot_general(qh, kh, (((1,), (1,)), ((), ())),
                                preferred_element_type=jnp.float32) * scale
        s = jnp.where(causal, s, -jnp.inf)
        s = s - jnp.max(s, axis=-1, keepdims=True)
        e = jnp.exp(s)
        denom = jnp.sum(e, axis=-1, keepdims=True)
        w = e * pl.reciprocal(denom, approx=True)       # EUP slot, not VALU div
        head_outs.append(jnp.dot(w, vh, preferred_element_type=jnp.float32))
    attn = jnp.concatenate(head_outs, axis=-1)          # [T, C], lane-dense

    # ---- output projection + first residual ----
    attn = jnp.dot(attn, wproj_ref[...], preferred_element_type=jnp.float32)
    attn = attn + bproj_ref[...]
    x1 = x + attn

    # ---- ln2 + GELU MLP + second residual ----
    h2 = layer_norm(x1, g2_ref[...], be2_ref[...])
    f = jnp.dot(h2, w1_ref[...], preferred_element_type=jnp.float32) + b1_ref[...]
    f = jax.nn.gelu(f, approximate=True)
    f = jnp.dot(f, w2_ref[...], preferred_element_type=jnp.float32) + b2_ref[...]

    o_ref[0] = (x1 + f).astype(o_ref.dtype)


# ---------------------------------------------------------------------------
# Wrapper
# ---------------------------------------------------------------------------
@functools.partial(jax.jit, static_argnames=("num_heads",))
def block_forward(x, g1, be1, w_qkv, w_proj, b_proj, g2, be2,
                  w_ff1, b_ff1, w_ff2, b_ff2, *, num_heads):
    """x: [B,T,C]; w_qkv: [C,3C]; w_proj: [C,C]; w_ff1: [C,4C]; w_ff2: [4C,C].

    ln / bias params are passed as (1, C) or (1, 4C) row vectors.
    """
    B, T, C = x.shape
    hidden = w_ff1.shape[1]

    full = lambda shape: pl.BlockSpec(shape, lambda b: (0,) * len(shape))

    return pl.pallas_call(
        functools.partial(_block_kernel, num_heads=num_heads),
        out_shape=jax.ShapeDtypeStruct((B, T, C), x.dtype),
        grid_spec=pltpu.PrefetchScalarGridSpec(
            num_scalar_prefetch=0,
            grid=(B,),
            in_specs=[
                pl.BlockSpec((1, T, C), lambda b: (b, 0, 0)),   # x
                full((1, C)),                                   # ln1 gamma
                full((1, C)),                                   # ln1 beta
                full((C, 3 * C)),                               # fused Wqkv
                full((C, C)),                                   # W_proj
                full((1, C)),                                   # b_proj
                full((1, C)),                                   # ln2 gamma
                full((1, C)),                                   # ln2 beta
                full((C, hidden)),                              # W_ff1
                full((1, hidden)),                              # b_ff1
                full((hidden, C)),                              # W_ff2
                full((1, C)),                                   # b_ff2
            ],
            out_specs=pl.BlockSpec((1, T, C), lambda b: (b, 0, 0)),
        ),
        compiler_params=pltpu.CompilerParams(
            dimension_semantics=("parallel",),
        ),
    )(x, g1, be1, w_qkv, w_proj, b_proj, g2, be2, w_ff1, b_ff1, w_ff2, b_ff2)


# ---------------------------------------------------------------------------
# Pure-JAX reference for the in-script sanity check
# ---------------------------------------------------------------------------
def _reference(x, g1, be1, w_qkv, w_proj, b_proj, g2, be2,
               w_ff1, b_ff1, w_ff2, b_ff2, num_heads):
    B, T, C = x.shape
    hs = C // num_heads

    def ln(h, g, b):
        mu = h.mean(-1, keepdims=True)
        var = ((h - mu) ** 2).mean(-1, keepdims=True)
        return (h - mu) / jnp.sqrt(var + 1e-5) * g + b

    h1 = ln(x, g1, be1)
    qkv = h1 @ w_qkv
    q, k, v = qkv[..., :C], qkv[..., C:2 * C], qkv[..., 2 * C:]
    mask = jnp.tril(jnp.ones((T, T), dtype=bool))
    outs = []
    for h in range(num_heads):
        sl = slice(h * hs, (h + 1) * hs)
        wei = jnp.einsum("bth,bsh->bts", q[..., sl], k[..., sl]) / (hs ** 0.5)
        wei = jnp.where(mask[None], wei, -jnp.inf)
        wei = jax.nn.softmax(wei, axis=-1)
        outs.append(jnp.einsum("bts,bsh->bth", wei, v[..., sl]))
    attn = jnp.concatenate(outs, axis=-1) @ w_proj + b_proj
    x1 = x + attn
    h2 = ln(x1, g2, be2)
    f = jax.nn.gelu(h2 @ w_ff1 + b_ff1, approximate=True) @ w_ff2 + b_ff2
    return x1 + f


if __name__ == "__main__":
    # Shapes consistent with the module: n_embd=200, n_head=5 (head_size=40),
    # T <= block_size=128.  Small B, T for the test.
    B, T = 2, 16
    C = 200
    num_heads = 5
    hidden = 4 * C

    key = jax.random.PRNGKey(0)
    ks = jax.random.split(key, 12)

    x = jax.random.normal(ks[0], (B, T, C), dtype=jnp.float32)
    g1 = 1.0 + 0.1 * jax.random.normal(ks[1], (1, C), dtype=jnp.float32)
    be1 = 0.1 * jax.random.normal(ks[2], (1, C), dtype=jnp.float32)
    w_qkv = jax.random.normal(ks[3], (C, 3 * C), dtype=jnp.float32) * (C ** -0.5)
    w_proj = jax.random.normal(ks[4], (C, C), dtype=jnp.float32) * (C ** -0.5)
    b_proj = 0.01 * jax.random.normal(ks[5], (1, C), dtype=jnp.float32)
    g2 = 1.0 + 0.1 * jax.random.normal(ks[6], (1, C), dtype=jnp.float32)
    be2 = 0.1 * jax.random.normal(ks[7], (1, C), dtype=jnp.float32)
    w_ff1 = jax.random.normal(ks[8], (C, hidden), dtype=jnp.float32) * (C ** -0.5)
    b_ff1 = 0.01 * jax.random.normal(ks[9], (1, hidden), dtype=jnp.float32)
    w_ff2 = jax.random.normal(ks[10], (hidden, C), dtype=jnp.float32) * (hidden ** -0.5)
    b_ff2 = 0.01 * jax.random.normal(ks[11], (1, C), dtype=jnp.float32)

    out = block_forward(x, g1, be1, w_qkv, w_proj, b_proj, g2, be2,
                        w_ff1, b_ff1, w_ff2, b_ff2, num_heads=num_heads)
    out = jax.block_until_ready(out)

    ref = _reference(x, g1, be1, w_qkv, w_proj, b_proj, g2, be2,
                     w_ff1, b_ff1, w_ff2, b_ff2, num_heads)

    assert out.shape == (B, T, C)
    assert jnp.allclose(out, ref, atol=1e-2, rtol=1e-2), (
        "mismatch vs reference: max abs diff = %g"
        % float(jnp.max(jnp.abs(out - ref))))

    print("KERNEL_OK")
</pallas_src>

<mosaic_0001>
module attributes {stable_mosaic.version = 11 : i64} {
  func.func @_block_kernel(%arg0: i32, %arg1: memref<1x16x200xf32, #tpu.memory_space<vmem>>, %arg2: memref<1x200xf32, #tpu.memory_space<vmem>>, %arg3: memref<1x200xf32, #tpu.memory_space<vmem>>, %arg4: memref<200x600xf32, #tpu.memory_space<vmem>>, %arg5: memref<200x200xf32, #tpu.memory_space<vmem>>, %arg6: memref<1x200xf32, #tpu.memory_space<vmem>>, %arg7: memref<1x200xf32, #tpu.memory_space<vmem>>, %arg8: memref<1x200xf32, #tpu.memory_space<vmem>>, %arg9: memref<200x800xf32, #tpu.memory_space<vmem>>, %arg10: memref<1x800xf32, #tpu.memory_space<vmem>>, %arg11: memref<800x200xf32, #tpu.memory_space<vmem>>, %arg12: memref<1x200xf32, #tpu.memory_space<vmem>>, %arg13: memref<1x16x200xf32, #tpu.memory_space<vmem>>) attributes {dimension_semantics = [#tpu.dimension_semantics<parallel>], iteration_bounds = array<i64: 2>, scalar_prefetch = 0 : i64, scratch_operands = 0 : i64, tpu.core_type = #tpu.core_type<tc>, window_params = [{transform_indices = @transform_0, window_bounds = array<i64: 1, 16, 200>}, {pipeline_mode = #tpu.pipeline_mode<synchronous>, transform_indices = @transform_1, window_bounds = array<i64: 1, 200>}, {pipeline_mode = #tpu.pipeline_mode<synchronous>, transform_indices = @transform_2, window_bounds = array<i64: 1, 200>}, {pipeline_mode = #tpu.pipeline_mode<synchronous>, transform_indices = @transform_3, window_bounds = array<i64: 200, 600>}, {pipeline_mode = #tpu.pipeline_mode<synchronous>, transform_indices = @transform_4, window_bounds = array<i64: 200, 200>}, {pipeline_mode = #tpu.pipeline_mode<synchronous>, transform_indices = @transform_5, window_bounds = array<i64: 1, 200>}, {pipeline_mode = #tpu.pipeline_mode<synchronous>, transform_indices = @transform_6, window_bounds = array<i64: 1, 200>}, {pipeline_mode = #tpu.pipeline_mode<synchronous>, transform_indices = @transform_7, window_bounds = array<i64: 1, 200>}, {pipeline_mode = #tpu.pipeline_mode<synchronous>, transform_indices = @transform_8, window_bounds = array<i64: 200, 800>}, {pipeline_mode = #tpu.pipeline_mode<synchronous>, transform_indices = @transform_9, window_bounds = array<i64: 1, 800>}, {pipeline_mode = #tpu.pipeline_mode<synchronous>, transform_indices = @transform_10, window_bounds = array<i64: 800, 200>}, {pipeline_mode = #tpu.pipeline_mode<synchronous>, transform_indices = @transform_11, window_bounds = array<i64: 1, 200>}, {transform_indices = @transform_12, window_bounds = array<i64: 1, 16, 200>}]} {
    %c0 = arith.constant 0 : index
    %c0_0 = arith.constant 0 : index
    %c0_1 = arith.constant 0 : index
    %0 = vector.load %arg1[%c0, %c0_0, %c0_1] : memref<1x16x200xf32, #tpu.memory_space<vmem>>, vector<1x16x200xf32>
    %1 = vector.shape_cast %0 : vector<1x16x200xf32> to vector<16x200xf32>
    %c0_2 = arith.constant 0 : index
    %c0_3 = arith.constant 0 : index
    %2 = vector.load %arg2[%c0_2, %c0_3] : memref<1x200xf32, #tpu.memory_space<vmem>>, vector<1x200xf32>
    %c0_4 = arith.constant 0 : index
    %c0_5 = arith.constant 0 : index
    %3 = vector.load %arg3[%c0_4, %c0_5] : memref<1x200xf32, #tpu.memory_space<vmem>>, vector<1x200xf32>
    %cst = arith.constant dense<0.000000e+00> : vector<16xf32>
    %4 = vector.multi_reduction <add>, %1, %cst [1] : vector<16x200xf32> to vector<16xf32>
    %5 = vector.shape_cast %4 : vector<16xf32> to vector<16x1xf32>
    %cst_6 = arith.constant 2.000000e+02 : f32
    %6 = vector.broadcast %cst_6 : f32 to vector<16x1xf32>
    %7 = arith.divf %5, %6 : vector<16x1xf32>
    %8 = vector.broadcast %7 : vector<16x1xf32> to vector<16x200xf32>
    %9 = arith.subf %1, %8 : vector<16x200xf32>
    %10 = arith.mulf %9, %9 : vector<16x200xf32>
    %cst_7 = arith.constant dense<0.000000e+00> : vector<16xf32>
    %11 = vector.multi_reduction <add>, %10, %cst_7 [1] : vector<16x200xf32> to vector<16xf32>
    %12 = vector.shape_cast %11 : vector<16xf32> to vector<16x1xf32>
    %cst_8 = arith.constant 2.000000e+02 : f32
    %13 = vector.broadcast %cst_8 : f32 to vector<16x1xf32>
    %14 = arith.divf %12, %13 : vector<16x1xf32>
    %cst_9 = arith.constant 9.99999974E-6 : f32
    %15 = vector.broadcast %cst_9 : f32 to vector<16x1xf32>
    %16 = arith.addf %14, %15 : vector<16x1xf32>
    %17 = math.rsqrt %16 : vector<16x1xf32>
    %18 = vector.broadcast %17 : vector<16x1xf32> to vector<16x200xf32>
    %19 = arith.mulf %9, %18 : vector<16x200xf32>
    %20 = vector.broadcast %2 : vector<1x200xf32> to vector<16x200xf32>
    %21 = arith.mulf %19, %20 : vector<16x200xf32>
    %22 = vector.broadcast %3 : vector<1x200xf32> to vector<16x200xf32>
    %23 = arith.addf %21, %22 : vector<16x200xf32>
    %c0_10 = arith.constant 0 : index
    %c0_11 = arith.constant 0 : index
    %24 = vector.load %arg4[%c0_10, %c0_11] : memref<200x600xf32, #tpu.memory_space<vmem>>, vector<200x600xf32>
    %cst_12 = arith.constant dense<0.000000e+00> : vector<16x600xf32>
    %25 = tpu.matmul %23, %24, %cst_12 {dimension_numbers = #tpu.dot_dimension_numbers<[1], [0], [0], [1], [0, 0, 1, 1], [], []>} : vector<16x200xf32>, vector<200x600xf32>, vector<16x600xf32> -> vector<16x600xf32>
    %26 = vector.extract_strided_slice %25 {offsets = [0, 0], sizes = [16, 200], strides = [1, 1]} : vector<16x600xf32> to vector<16x200xf32>
    %27 = vector.extract_strided_slice %25 {offsets = [0, 200], sizes = [16, 200], strides = [1, 1]} : vector<16x600xf32> to vector<16x200xf32>
    %28 = vector.extract_strided_slice %25 {offsets = [0, 400], sizes = [16, 200], strides = [1, 1]} : vector<16x600xf32> to vector<16x200xf32>
    %29 = tpu.iota {dimensions = array<i32: 0>} : vector<16x16xi32>
    %30 = tpu.iota {dimensions = array<i32: 1>} : vector<16x16xi32>
    %31 = arith.cmpi sle, %30, %29 : vector<16x16xi32>
    %32 = vector.extract_strided_slice %26 {offsets = [0, 0], sizes = [16, 40], strides = [1, 1]} : vector<16x200xf32> to vector<16x40xf32>
    %33 = vector.extract_strided_slice %27 {offsets = [0, 0], sizes = [16, 40], strides = [1, 1]} : vector<16x200xf32> to vector<16x40xf32>
    %34 = vector.extract_strided_slice %28 {offsets = [0, 0], sizes = [16, 40], strides = [1, 1]} : vector<16x200xf32> to vector<16x40xf32>
    %cst_13 = arith.constant dense<0.000000e+00> : vector<16x16xf32>
    %35 = tpu.matmul %32, %33, %cst_13 {dimension_numbers = #tpu.dot_dimension_numbers<[1], [1], [0], [0], [0, 0, 1, 0], [], []>} : vector<16x40xf32>, vector<16x40xf32>, vector<16x16xf32> -> vector<16x16xf32>
    %cst_14 = arith.constant 0.158113882 : f32
    %36 = vector.broadcast %cst_14 : f32 to vector<16x16xf32>
    %37 = arith.mulf %35, %36 : vector<16x16xf32>
    %cst_15 = arith.constant 0xFF800000 : f32
    %38 = vector.broadcast %cst_15 : f32 to vector<16x16xf32>
    %39 = arith.select %31, %37, %38 : vector<16x16xi1>, vector<16x16xf32>
    %cst_16 = arith.constant dense<0xFF800000> : vector<16xf32>
    %40 = vector.multi_reduction <maximumf>, %39, %cst_16 [1] : vector<16x16xf32> to vector<16xf32>
    %41 = vector.shape_cast %40 : vector<16xf32> to vector<16x1xf32>
    %42 = vector.broadcast %41 : vector<16x1xf32> to vector<16x16xf32>
    %43 = arith.subf %39, %42 : vector<16x16xf32>
    %44 = math.exp %43 : vector<16x16xf32>
    %cst_17 = arith.constant dense<0.000000e+00> : vector<16xf32>
    %45 = vector.multi_reduction <add>, %44, %cst_17 [1] : vector<16x16xf32> to vector<16xf32>
    %46 = vector.shape_cast %45 : vector<16xf32> to vector<16x1xf32>
    %47 = tpu.reciprocal %46 {approx = true} : vector<16x1xf32> -> vector<16x1xf32>
    %48 = vector.broadcast %47 : vector<16x1xf32> to vector<16x16xf32>
    %49 = arith.mulf %44, %48 : vector<16x16xf32>
    %cst_18 = arith.constant dense<0.000000e+00> : vector<16x40xf32>
    %50 = tpu.matmul %49, %34, %cst_18 {dimension_numbers = #tpu.dot_dimension_numbers<[1], [0], [0], [1], [0, 0, 1, 1], [], []>} : vector<16x16xf32>, vector<16x40xf32>, vector<16x40xf32> -> vector<16x40xf32>
    %51 = vector.extract_strided_slice %26 {offsets = [0, 40], sizes = [16, 40], strides = [1, 1]} : vector<16x200xf32> to vector<16x40xf32>
    %52 = vector.extract_strided_slice %27 {offsets = [0, 40], sizes = [16, 40], strides = [1, 1]} : vector<16x200xf32> to vector<16x40xf32>
    %53 = vector.extract_strided_slice %28 {offsets = [0, 40], sizes = [16, 40], strides = [1, 1]} : vector<16x200xf32> to vector<16x40xf32>
    %cst_19 = arith.constant dense<0.000000e+00> : vector<16x16xf32>
    %54 = tpu.matmul %51, %52, %cst_19 {dimension_numbers = #tpu.dot_dimension_numbers<[1], [1], [0], [0], [0, 0, 1, 0], [], []>} : vector<16x40xf32>, vector<16x40xf32>, vector<16x16xf32> -> vector<16x16xf32>
    %cst_20 = arith.constant 0.158113882 : f32
    %55 = vector.broadcast %cst_20 : f32 to vector<16x16xf32>
    %56 = arith.mulf %54, %55 : vector<16x16xf32>
    %cst_21 = arith.constant 0xFF800000 : f32
    %57 = vector.broadcast %cst_21 : f32 to vector<16x16xf32>
    %58 = arith.select %31, %56, %57 : vector<16x16xi1>, vector<16x16xf32>
    %cst_22 = arith.constant dense<0xFF800000> : vector<16xf32>
    %59 = vector.multi_reduction <maximumf>, %58, %cst_22 [1] : vector<16x16xf32> to vector<16xf32>
    %60 = vector.shape_cast %59 : vector<16xf32> to vector<16x1xf32>
    %61 = vector.broadcast %60 : vector<16x1xf32> to vector<16x16xf32>
    %62 = arith.subf %58, %61 : vector<16x16xf32>
    %63 = math.exp %62 : vector<16x16xf32>
    %cst_23 = arith.constant dense<0.000000e+00> : vector<16xf32>
    %64 = vector.multi_reduction <add>, %63, %cst_23 [1] : vector<16x16xf32> to vector<16xf32>
    %65 = vector.shape_cast %64 : vector<16xf32> to vector<16x1xf32>
    %66 = tpu.reciprocal %65 {approx = true} : vector<16x1xf32> -> vector<16x1xf32>
    %67 = vector.broadcast %66 : vector<16x1xf32> to vector<16x16xf32>
    %68 = arith.mulf %63, %67 : vector<16x16xf32>
    %cst_24 = arith.constant dense<0.000000e+00> : vector<16x40xf32>
    %69 = tpu.matmul %68, %53, %cst_24 {dimension_numbers = #tpu.dot_dimension_numbers<[1], [0], [0], [1], [0, 0, 1, 1], [], []>} : vector<16x16xf32>, vector<16x40xf32>, vector<16x40xf32> -> vector<16x40xf32>
    %70 = vector.extract_strided_slice %26 {offsets = [0, 80], sizes = [16, 40], strides = [1, 1]} : vector<16x200xf32> to vector<16x40xf32>
    %71 = vector.extract_strided_slice %27 {offsets = [0, 80], sizes = [16, 40], strides = [1, 1]} : vector<16x200xf32> to vector<16x40xf32>
    %72 = vector.extract_strided_slice %28 {offsets = [0, 80], sizes = [16, 40], strides = [1, 1]} : vector<16x200xf32> to vector<16x40xf32>
    %cst_25 = arith.constant dense<0.000000e+00> : vector<16x16xf32>
    %73 = tpu.matmul %70, %71, %cst_25 {dimension_numbers = #tpu.dot_dimension_numbers<[1], [1], [0], [0], [0, 0, 1, 0], [], []>} : vector<16x40xf32>, vector<16x40xf32>, vector<16x16xf32> -> vector<16x16xf32>
    %cst_26 = arith.constant 0.158113882 : f32
    %74 = vector.broadcast %cst_26 : f32 to vector<16x16xf32>
    %75 = arith.mulf %73, %74 : vector<16x16xf32>
    %cst_27 = arith.constant 0xFF800000 : f32
    %76 = vector.broadcast %cst_27 : f32 to vector<16x16xf32>
    %77 = arith.select %31, %75, %76 : vector<16x16xi1>, vector<16x16xf32>
    %cst_28 = arith.constant dense<0xFF800000> : vector<16xf32>
    %78 = vector.multi_reduction <maximumf>, %77, %cst_28 [1] : vector<16x16xf32> to vector<16xf32>
    %79 = vector.shape_cast %78 : vector<16xf32> to vector<16x1xf32>
    %80 = vector.broadcast %79 : vector<16x1xf32> to vector<16x16xf32>
    %81 = arith.subf %77, %80 : vector<16x16xf32>
    %82 = math.exp %81 : vector<16x16xf32>
    %cst_29 = arith.constant dense<0.000000e+00> : vector<16xf32>
    %83 = vector.multi_reduction <add>, %82, %cst_29 [1] : vector<16x16xf32> to vector<16xf32>
    %84 = vector.shape_cast %83 : vector<16xf32> to vector<16x1xf32>
    %85 = tpu.reciprocal %84 {approx = true} : vector<16x1xf32> -> vector<16x1xf32>
    %86 = vector.broadcast %85 : vector<16x1xf32> to vector<16x16xf32>
    %87 = arith.mulf %82, %86 : vector<16x16xf32>
    %cst_30 = arith.constant dense<0.000000e+00> : vector<16x40xf32>
    %88 = tpu.matmul %87, %72, %cst_30 {dimension_numbers = #tpu.dot_dimension_numbers<[1], [0], [0], [1], [0, 0, 1, 1], [], []>} : vector<16x16xf32>, vector<16x40xf32>, vector<16x40xf32> -> vector<16x40xf32>
    %89 = vector.extract_strided_slice %26 {offsets = [0, 120], sizes = [16, 40], strides = [1, 1]} : vector<16x200xf32> to vector<16x40xf32>
    %90 = vector.extract_strided_slice %27 {offsets = [0, 120], sizes = [16, 40], strides = [1, 1]} : vector<16x200xf32> to vector<16x40xf32>
    %91 = vector.extract_strided_slice %28 {offsets = [0, 120], sizes = [16, 40], strides = [1, 1]} : vector<16x200xf32> to vector<16x40xf32>
    %cst_31 = arith.constant dense<0.000000e+00> : vector<16x16xf32>
    %92 = tpu.matmul %89, %90, %cst_31 {dimension_numbers = #tpu.dot_dimension_numbers<[1], [1], [0], [0], [0, 0, 1, 0], [], []>} : vector<16x40xf32>, vector<16x40xf32>, vector<16x16xf32> -> vector<16x16xf32>
    %cst_32 = arith.constant 0.158113882 : f32
    %93 = vector.broadcast %cst_32 : f32 to vector<16x16xf32>
    %94 = arith.mulf %92, %93 : vector<16x16xf32>
    %cst_33 = arith.constant 0xFF800000 : f32
    %95 = vector.broadcast %cst_33 : f32 to vector<16x16xf32>
    %96 = arith.select %31, %94, %95 : vector<16x16xi1>, vector<16x16xf32>
    %cst_34 = arith.constant dense<0xFF800000> : vector<16xf32>
    %97 = vector.multi_reduction <maximumf>, %96, %cst_34 [1] : vector<16x16xf32> to vector<16xf32>
    %98 = vector.shape_cast %97 : vector<16xf32> to vector<16x1xf32>
    %99 = vector.broadcast %98 : vector<16x1xf32> to vector<16x16xf32>
    %100 = arith.subf %96, %99 : vector<16x16xf32>
    %101 = math.exp %100 : vector<16x16xf32>
    %cst_35 = arith.constant dense<0.000000e+00> : vector<16xf32>
    %102 = vector.multi_reduction <add>, %101, %cst_35 [1] : vector<16x16xf32> to vector<16xf32>
    %103 = vector.shape_cast %102 : vector<16xf32> to vector<16x1xf32>
    %104 = tpu.reciprocal %103 {approx = true} : vector<16x1xf32> -> vector<16x1xf32>
    %105 = vector.broadcast %104 : vector<16x1xf32> to vector<16x16xf32>
    %106 = arith.mulf %101, %105 : vector<16x16xf32>
    %cst_36 = arith.constant dense<0.000000e+00> : vector<16x40xf32>
    %107 = tpu.matmul %106, %91, %cst_36 {dimension_numbers = #tpu.dot_dimension_numbers<[1], [0], [0], [1], [0, 0, 1, 1], [], []>} : vector<16x16xf32>, vector<16x40xf32>, vector<16x40xf32> -> vector<16x40xf32>
    %108 = vector.extract_strided_slice %26 {offsets = [0, 160], sizes = [16, 40], strides = [1, 1]} : vector<16x200xf32> to vector<16x40xf32>
    %109 = vector.extract_strided_slice %27 {offsets = [0, 160], sizes = [16, 40], strides = [1, 1]} : vector<16x200xf32> to vector<16x40xf32>
    %110 = vector.extract_strided_slice %28 {offsets = [0, 160], sizes = [16, 40], strides = [1, 1]} : vector<16x200xf32> to vector<16x40xf32>
    %cst_37 = arith.constant dense<0.000000e+00> : vector<16x16xf32>
    %111 = tpu.matmul %108, %109, %cst_37 {dimension_numbers = #tpu.dot_dimension_numbers<[1], [1], [0], [0], [0, 0, 1, 0], [], []>} : vector<16x40xf32>, vector<16x40xf32>, vector<16x16xf32> -> vector<16x16xf32>
    %cst_38 = arith.constant 0.158113882 : f32
    %112 = vector.broadcast %cst_38 : f32 to vector<16x16xf32>
    %113 = arith.mulf %111, %112 : vector<16x16xf32>
    %cst_39 = arith.constant 0xFF800000 : f32
    %114 = vector.broadcast %cst_39 : f32 to vector<16x16xf32>
    %115 = arith.select %31, %113, %114 : vector<16x16xi1>, vector<16x16xf32>
    %cst_40 = arith.constant dense<0xFF800000> : vector<16xf32>
    %116 = vector.multi_reduction <maximumf>, %115, %cst_40 [1] : vector<16x16xf32> to vector<16xf32>
    %117 = vector.shape_cast %116 : vector<16xf32> to vector<16x1xf32>
    %118 = vector.broadcast %117 : vector<16x1xf32> to vector<16x16xf32>
    %119 = arith.subf %115, %118 : vector<16x16xf32>
    %120 = math.exp %119 : vector<16x16xf32>
    %cst_41 = arith.constant dense<0.000000e+00> : vector<16xf32>
    %121 = vector.multi_reduction <add>, %120, %cst_41 [1] : vector<16x16xf32> to vector<16xf32>
    %122 = vector.shape_cast %121 : vector<16xf32> to vector<16x1xf32>
    %123 = tpu.reciprocal %122 {approx = true} : vector<16x1xf32> -> vector<16x1xf32>
    %124 = vector.broadcast %123 : vector<16x1xf32> to vector<16x16xf32>
    %125 = arith.mulf %120, %124 : vector<16x16xf32>
    %cst_42 = arith.constant dense<0.000000e+00> : vector<16x40xf32>
    %126 = tpu.matmul %125, %110, %cst_42 {dimension_numbers = #tpu.dot_dimension_numbers<[1], [0], [0], [1], [0, 0, 1, 1], [], []>} : vector<16x16xf32>, vector<16x40xf32>, vector<16x40xf32> -> vector<16x40xf32>
    %127 = tpu.concatenate %50, %69, %88, %107, %126 in 1 : vector<16x40xf32>, vector<16x40xf32>, vector<16x40xf32>, vector<16x40xf32>, vector<16x40xf32> -> vector<16x200xf32>
    %c0_43 = arith.constant 0 : index
    %c0_44 = arith.constant 0 : index
    %128 = vector.load %arg5[%c0_43, %c0_44] : memref<200x200xf32, #tpu.memory_space<vmem>>, vector<200x200xf32>
    %cst_45 = arith.constant dense<0.000000e+00> : vector<16x200xf32>
    %129 = tpu.matmul %127, %128, %cst_45 {dimension_numbers = #tpu.dot_dimension_numbers<[1], [0], [0], [1], [0, 0, 1, 1], [], []>} : vector<16x200xf32>, vector<200x200xf32>, vector<16x200xf32> -> vector<16x200xf32>
    %c0_46 = arith.constant 0 : index
    %c0_47 = arith.constant 0 : index
    %130 = vector.load %arg6[%c0_46, %c0_47] : memref<1x200xf32, #tpu.memory_space<vmem>>, vector<1x200xf32>
    %131 = vector.broadcast %130 : vector<1x200xf32> to vector<16x200xf32>
    %132 = arith.addf %129, %131 : vector<16x200xf32>
    %133 = arith.addf %1, %132 : vector<16x200xf32>
    %c0_48 = arith.constant 0 : index
    %c0_49 = arith.constant 0 : index
    %134 = vector.load %arg7[%c0_48, %c0_49] : memref<1x200xf32, #tpu.memory_space<vmem>>, vector<1x200xf32>
    %c0_50 = arith.constant 0 : index
    %c0_51 = arith.constant 0 : index
    %135 = vector.load %arg8[%c0_50, %c0_51] : memref<1x200xf32, #tpu.memory_space<vmem>>, vector<1x200xf32>
    %cst_52 = arith.constant dense<0.000000e+00> : vector<16xf32>
    %136 = vector.multi_reduction <add>, %133, %cst_52 [1] : vector<16x200xf32> to vector<16xf32>
    %137 = vector.shape_cast %136 : vector<16xf32> to vector<16x1xf32>
    %cst_53 = arith.constant 2.000000e+02 : f32
    %138 = vector.broadcast %cst_53 : f32 to vector<16x1xf32>
    %139 = arith.divf %137, %138 : vector<16x1xf32>
    %140 = vector.broadcast %139 : vector<16x1xf32> to vector<16x200xf32>
    %141 = arith.subf %133, %140 : vector<16x200xf32>
    %142 = arith.mulf %141, %141 : vector<16x200xf32>
    %cst_54 = arith.constant dense<0.000000e+00> : vector<16xf32>
    %143 = vector.multi_reduction <add>, %142, %cst_54 [1] : vector<16x200xf32> to vector<16xf32>
    %144 = vector.shape_cast %143 : vector<16xf32> to vector<16x1xf32>
    %cst_55 = arith.constant 2.000000e+02 : f32
    %145 = vector.broadcast %cst_55 : f32 to vector<16x1xf32>
    %146 = arith.divf %144, %145 : vector<16x1xf32>
    %cst_56 = arith.constant 9.99999974E-6 : f32
    %147 = vector.broadcast %cst_56 : f32 to vector<16x1xf32>
    %148 = arith.addf %146, %147 : vector<16x1xf32>
    %149 = math.rsqrt %148 : vector<16x1xf32>
    %150 = vector.broadcast %149 : vector<16x1xf32> to vector<16x200xf32>
    %151 = arith.mulf %141, %150 : vector<16x200xf32>
    %152 = vector.broadcast %134 : vector<1x200xf32> to vector<16x200xf32>
    %153 = arith.mulf %151, %152 : vector<16x200xf32>
    %154 = vector.broadcast %135 : vector<1x200xf32> to vector<16x200xf32>
    %155 = arith.addf %153, %154 : vector<16x200xf32>
    %c0_57 = arith.constant 0 : index
    %c0_58 = arith.constant 0 : index
    %156 = vector.load %arg9[%c0_57, %c0_58] : memref<200x800xf32, #tpu.memory_space<vmem>>, vector<200x800xf32>
    %cst_59 = arith.constant dense<0.000000e+00> : vector<16x800xf32>
    %157 = tpu.matmul %155, %156, %cst_59 {dimension_numbers = #tpu.dot_dimension_numbers<[1], [0], [0], [1], [0, 0, 1, 1], [], []>} : vector<16x200xf32>, vector<200x800xf32>, vector<16x800xf32> -> vector<16x800xf32>
    %c0_60 = arith.constant 0 : index
    %c0_61 = arith.constant 0 : index
    %158 = vector.load %arg10[%c0_60, %c0_61] : memref<1x800xf32, #tpu.memory_space<vmem>>, vector<1x800xf32>
    %159 = vector.broadcast %158 : vector<1x800xf32> to vector<16x800xf32>
    %160 = arith.addf %157, %159 : vector<16x800xf32>
    %161 = arith.mulf %160, %160 : vector<16x800xf32>
    %162 = arith.mulf %160, %161 : vector<16x800xf32>
    %cst_62 = arith.constant 4.471500e-02 : f32
    %163 = vector.broadcast %cst_62 : f32 to vector<16x800xf32>
    %164 = arith.mulf %163, %162 : vector<16x800xf32>
    %165 = arith.addf %160, %164 : vector<16x800xf32>
    %cst_63 = arith.constant 0.797884583 : f32
    %166 = vector.broadcast %cst_63 : f32 to vector<16x800xf32>
    %167 = arith.mulf %166, %165 : vector<16x800xf32>
    %168 = math.tanh %167 : vector<16x800xf32>
    %cst_64 = arith.constant 1.000000e+00 : f32
    %169 = vector.broadcast %cst_64 : f32 to vector<16x800xf32>
    %170 = arith.addf %169, %168 : vector<16x800xf32>
    %cst_65 = arith.constant 5.000000e-01 : f32
    %171 = vector.broadcast %cst_65 : f32 to vector<16x800xf32>
    %172 = arith.mulf %171, %170 : vector<16x800xf32>
    %173 = arith.mulf %160, %172 : vector<16x800xf32>
    %c0_66 = arith.constant 0 : index
    %c0_67 = arith.constant 0 : index
    %174 = vector.load %arg11[%c0_66, %c0_67] : memref<800x200xf32, #tpu.memory_space<vmem>>, vector<800x200xf32>
    %cst_68 = arith.constant dense<0.000000e+00> : vector<16x200xf32>
    %175 = tpu.matmul %173, %174, %cst_68 {dimension_numbers = #tpu.dot_dimension_numbers<[1], [0], [0], [1], [0, 0, 1, 1], [], []>} : vector<16x800xf32>, vector<800x200xf32>, vector<16x200xf32> -> vector<16x200xf32>
    %c0_69 = arith.constant 0 : index
    %c0_70 = arith.constant 0 : index
    %176 = vector.load %arg12[%c0_69, %c0_70] : memref<1x200xf32, #tpu.memory_space<vmem>>, vector<1x200xf32>
    %177 = vector.broadcast %176 : vector<1x200xf32> to vector<16x200xf32>
    %178 = arith.addf %175, %177 : vector<16x200xf32>
    %179 = arith.addf %133, %178 : vector<16x200xf32>
    %c0_71 = arith.constant 0 : index
    %c0_72 = arith.constant 0 : index
    %c0_73 = arith.constant 0 : index
    %180 = vector.load %arg13[%c0_71, %c0_72, %c0_73] : memref<1x16x200xf32, #tpu.memory_space<vmem>>, vector<1x16x200xf32>
    %181 = vector.shape_cast %180 : vector<1x16x200xf32> to vector<16x200xf32>
    %182 = vector.shape_cast %179 : vector<16x200xf32> to vector<1x16x200xf32>
    tpu.vector_store %arg13[%c0_71, %c0_72, %c0_73], %182 {strides = array<i32>} : memref<1x16x200xf32, #tpu.memory_space<vmem>>, vector<1x16x200xf32>,
    return
  }
  func.func @transform_0(%arg0: i32) -> (i32, i32, i32) {
    %c0_i32 = arith.constant 0 : i32
    %c0_i32_0 = arith.constant 0 : i32
    %c0_i32_1 = arith.constant 0 : i32
    return %arg0, %c0_i32, %c0_i32_0 : i32, i32, i32
  }
  func.func @transform_1(%arg0: i32) -> (i32, i32) {
    %c0_i32 = arith.constant 0 : i32
    %c0_i32_0 = arith.constant 0 : i32
    %c0_i32_1 = arith.constant 0 : i32
    return %c0_i32, %c0_i32_0 : i32, i32
  }
  func.func @transform_2(%arg0: i32) -> (i32, i32) {
    %c0_i32 = arith.constant 0 : i32
    %c0_i32_0 = arith.constant 0 : i32
    %c0_i32_1 = arith.constant 0 : i32
    return %c0_i32, %c0_i32_0 : i32, i32
  }
  func.func @transform_3(%arg0: i32) -> (i32, i32) {
    %c0_i32 = arith.constant 0 : i32
    %c0_i32_0 = arith.constant 0 : i32
    %c0_i32_1 = arith.constant 0 : i32
    return %c0_i32, %c0_i32_0 : i32, i32
  }
  func.func @transform_4(%arg0: i32) -> (i32, i32) {
    %c0_i32 = arith.constant 0 : i32
    %c0_i32_0 = arith.constant 0 : i32
    %c0_i32_1 = arith.constant 0 : i32
    return %c0_i32, %c0_i32_0 : i32, i32
  }
  func.func @transform_5(%arg0: i32) -> (i32, i32) {
    %c0_i32 = arith.constant 0 : i32
    %c0_i32_0 = arith.constant 0 : i32
    %c0_i32_1 = arith.constant 0 : i32
    return %c0_i32, %c0_i32_0 : i32, i32
  }
  func.func @transform_6(%arg0: i32) -> (i32, i32) {
    %c0_i32 = arith.constant 0 : i32
    %c0_i32_0 = arith.constant 0 : i32
    %c0_i32_1 = arith.constant 0 : i32
    return %c0_i32, %c0_i32_0 : i32, i32
  }
  func.func @transform_7(%arg0: i32) -> (i32, i32) {
    %c0_i32 = arith.constant 0 : i32
    %c0_i32_0 = arith.constant 0 : i32
    %c0_i32_1 = arith.constant 0 : i32
    return %c0_i32, %c0_i32_0 : i32, i32
  }
  func.func @transform_8(%arg0: i32) -> (i32, i32) {
    %c0_i32 = arith.constant 0 : i32
    %c0_i32_0 = arith.constant 0 : i32
    %c0_i32_1 = arith.constant 0 : i32
    return %c0_i32, %c0_i32_0 : i32, i32
  }
  func.func @transform_9(%arg0: i32) -> (i32, i32) {
    %c0_i32 = arith.constant 0 : i32
    %c0_i32_0 = arith.constant 0 : i32
    %c0_i32_1 = arith.constant 0 : i32
    return %c0_i32, %c0_i32_0 : i32, i32
  }
  func.func @transform_10(%arg0: i32) -> (i32, i32) {
    %c0_i32 = arith.constant 0 : i32
    %c0_i32_0 = arith.constant 0 : i32
    %c0_i32_1 = arith.constant 0 : i32
    return %c0_i32, %c0_i32_0 : i32, i32
  }
  func.func @transform_11(%arg0: i32) -> (i32, i32) {
    %c0_i32 = arith.constant 0 : i32
    %c0_i32_0 = arith.constant 0 : i32
    %c0_i32_1 = arith.constant 0 : i32
    return %c0_i32, %c0_i32_0 : i32, i32
  }
  func.func @transform_12(%arg0: i32) -> (i32, i32, i32) {
    %c0_i32 = arith.constant 0 : i32
    %c0_i32_0 = arith.constant 0 : i32
    %c0_i32_1 = arith.constant 0 : i32
    return %arg0, %c0_i32, %c0_i32_0 : i32, i32, i32
  }
}

</mosaic_0001>

<llo_original>
// kernel: block_forward.1
$region0: #{block_forward.1}
  #allocation0 [shape = 'u32[]', space=smem, size = 0x4, offset = 0x4, fixed_abs, tag = 'smem constant byte address 0x4 - core index']
  #allocation1 [shape = 'u32[144,128]{1,0:T(1,128)}', space=vmem, size = 0x12000, scoped, tag = 'internal scratch']
  %s0 = inlined_call_operand.vmem [shape: f32[2,16,200], index: 0, kind: input, shape index: {}]
  %s1 = inlined_call_operand.vmem [shape: f32[1,200], index: 1, kind: input, shape index: {}]
  %s2 = inlined_call_operand.vmem [shape: f32[1,200], index: 2, kind: input, shape index: {}]
  %s3 = inlined_call_operand.vmem [shape: f32[200,600], index: 3, kind: input, shape index: {}]
  %s4 = inlined_call_operand.vmem [shape: f32[200,200], index: 4, kind: input, shape index: {}]
  %s5 = inlined_call_operand.vmem [shape: f32[1,200], index: 5, kind: input, shape index: {}]
  %s6 = inlined_call_operand.vmem [shape: f32[1,200], index: 6, kind: input, shape index: {}]
  %s7 = inlined_call_operand.vmem [shape: f32[1,200], index: 7, kind: input, shape index: {}]
  %s8 = inlined_call_operand.vmem [shape: f32[200,800], index: 8, kind: input, shape index: {}]
  %s9 = inlined_call_operand.vmem [shape: f32[1,800], index: 9, kind: input, shape index: {}]
  %s10 = inlined_call_operand.vmem [shape: f32[800,200], index: 10, kind: input, shape index: {}]
  %s11 = inlined_call_operand.vmem [shape: f32[1,200], index: 11, kind: input, shape index: {}]
  %s12 = inlined_call_operand.hbm [shape: f32[2,16,200], index: 12, kind: output, shape index: {}]
  %s13 = sld [smem:[#allocation0]]
  $region81: #{block_forward.1} parent=0
    _
  %s15 = ssub.s32 1, %s13
  %s16 = scalar_select 0, %s15, %s13
  $region1: #{block_forward.1} parent=0
    #allocation2 [shape = 'u8[32768]{0}', space=vmem, size = 0x8000, scoped, tag = 'output window, operand 0']
    #allocation3 [shape = 's32[2]{0}', space=sflag, size = 0x8, scoped, tag = 'scoped memory for block_forward.1']
    %17 = vsyncpa [#allocation3], 0
    %s18 = scalar_lea.sflag [#allocation3], 1
    %19 = vsyncpa %s18, 0
    loop: start=0, step=1, limit=4
    $region2: #{block_forward.1} parent=1 // loop_pre_header
      _
    $region3: #{block_forward.1} parent=1 // loop_header
      %s21 = sphi 0, %s25
      %p22 = scmp.ge.s32.totalorder %s21, 4
      %s31 = sphi 0, %s33
      %s34 = sphi 0, %s31
      %s35 = sphi 0, %s34
      %s51 = sphi 0, %s35
      %s55 = sphi 0, %s55
      %s57 = sphi 0, %s55
      %s58 = sphi 0, %s57
      %s72 = sphi 0, %s58
      %s76 = sphi 0, %s76
      %s78 = sphi 0, %s76
      %s79 = sphi 0, %s78
      %s93 = sphi 0, %s79
      %s97 = sphi 0, %s97
      %s99 = sphi 0, %s97
      %s100 = sphi 0, %s99
      %s114 = sphi 0, %s100
      %s118 = sphi 0, %s118
      %s120 = sphi 0, %s118
      %s121 = sphi 0, %s120
      %s135 = sphi 0, %s121
      %s139 = sphi 0, %s139
      %s141 = sphi 0, %s139
      %s142 = sphi 0, %s141
      %s156 = sphi 0, %s142
      %s160 = sphi 0, %s160
      %s162 = sphi 0, %s160
      %s163 = sphi 0, %s162
      %s177 = sphi 0, %s163
      %s181 = sphi 0, %s181
      %s183 = sphi 0, %s181
      %s184 = sphi 0, %s183
      %s198 = sphi 0, %s184
      %s202 = sphi 0, %s202
      %s204 = sphi 0, %s202
      %s205 = sphi 0, %s204
      %s219 = sphi 0, %s205
      %s223 = sphi 0, %s223
      %s225 = sphi 0, %s223
      %s226 = sphi 0, %s225
      %s240 = sphi 0, %s226
      %s244 = sphi 0, %s244
      %s246 = sphi 0, %s244
      %s247 = sphi 0, %s246
      %s261 = sphi 0, %s247
      %s265 = sphi 0, %s265
      %s267 = sphi 0, %s265
      %s268 = sphi 0, %s267
      %s282 = sphi 0, %s268
      %s288 = sphi 0, %s290
      %s291 = sphi 0, %s288
      %s292 = sphi 0, %s291
      %s308 = sphi 0, %s292
    $region4: #{block_forward.1} parent=1 // loop_header_branch
      %24 = sbr.rel (%p22) target = $region8
    $region5: #{block_forward.1} parent=1 // loop_body
      %s26 = ssub.s32 %s21, 1
      %s27 = ssub.s32 %s21, 2
      %s28 = sadd.s32 %s21, 1
      %s29 = ssub.s32 %s21, %s28
      %p30 = scmp.eq.s32.totalorder %s29, 0
      %s32 = sadd.s32 %s31, 1
      %s33 = scalar_select %p30, %s31, %s32
      %p36 = pneg %p30
      %p37 = scmp.eq.s32.totalorder %s21, 1
      %p38 = por %p36, %p37
      %p39 = scmp.ne.s32.totalorder %s31, %s34
      %p40 = scmp.eq.s32.totalorder %s21, 0
      %p41 = por %p39, %p40
      %p42 = scmp.ne.s32.totalorder %s31, %s34
      %p43 = scmp.eq.s32.totalorder %s26, 1
      %p44 = por %p42, %p43
      %p45 = scmp.ne.s32.totalorder %s34, %s35
      %p46 = scmp.eq.s32.totalorder %s26, 0
      %p47 = por %p45, %p46
      %p48 = scmp.ne.s32.totalorder %s34, %s35
      %p49 = scmp.eq.s32.totalorder %s27, 1
      %p50 = por %p48, %p49
      %p52 = scmp.ne.s32.totalorder %s35, %s51
      %p53 = scmp.eq.s32.totalorder %s27, 0
      %p54 = por %p52, %p53
      %s56 = sadd.s32 %s55, 1
      %p59 = scmp.eq.s32.totalorder %s21, 1
      %p60 = scmp.ne.s32.totalorder %s55, %s57
      %p61 = scmp.eq.s32.totalorder %s21, 0
      %p62 = por %p60, %p61
      %p63 = scmp.ne.s32.totalorder %s55, %s57
      %p64 = scmp.eq.s32.totalorder %s26, 1
      %p65 = por %p63, %p64
      %p66 = scmp.ne.s32.totalorder %s57, %s58
      %p67 = scmp.eq.s32.totalorder %s26, 0
      %p68 = por %p66, %p67
      %p69 = scmp.ne.s32.totalorder %s57, %s58
      %p70 = scmp.eq.s32.totalorder %s27, 1
      %p71 = por %p69, %p70
      %p73 = scmp.ne.s32.totalorder %s58, %s72
      %p74 = scmp.eq.s32.totalorder %s27, 0
      %p75 = por %p73, %p74
      %s77 = sadd.s32 %s76, 1
      %p80 = scmp.eq.s32.totalorder %s21, 1
      %p81 = scmp.ne.s32.totalorder %s76, %s78
      %p82 = scmp.eq.s32.totalorder %s21, 0
      %p83 = por %p81, %p82
      %p84 = scmp.ne.s32.totalorder %s76, %s78
      %p85 = scmp.eq.s32.totalorder %s26, 1
      %p86 = por %p84, %p85
      %p87 = scmp.ne.s32.totalorder %s78, %s79
      %p88 = scmp.eq.s32.totalorder %s26, 0
      %p89 = por %p87, %p88
      %p90 = scmp.ne.s32.totalorder %s78, %s79
      %p91 = scmp.eq.s32.totalorder %s27, 1
      %p92 = por %p90, %p91
      %p94 = scmp.ne.s32.totalorder %s79, %s93
      %p95 = scmp.eq.s32.totalorder %s27, 0
      %p96 = por %p94, %p95
      %s98 = sadd.s32 %s97, 1
      %p101 = scmp.eq.s32.totalorder %s21, 1
      %p102 = scmp.ne.s32.totalorder %s97, %s99
      %p103 = scmp.eq.s32.totalorder %s21, 0
      %p104 = por %p102, %p103
      %p105 = scmp.ne.s32.totalorder %s97, %s99
      %p106 = scmp.eq.s32.totalorder %s26, 1
      %p107 = por %p105, %p106
      %p108 = scmp.ne.s32.totalorder %s99, %s100
      %p109 = scmp.eq.s32.totalorder %s26, 0
      %p110 = por %p108, %p109
      %p111 = scmp.ne.s32.totalorder %s99, %s100
      %p112 = scmp.eq.s32.totalorder %s27, 1
      %p113 = por %p111, %p112
      %p115 = scmp.ne.s32.totalorder %s100, %s114
      %p116 = scmp.eq.s32.totalorder %s27, 0
      %p117 = por %p115, %p116
      %s119 = sadd.s32 %s118, 1
      %p122 = scmp.eq.s32.totalorder %s21, 1
      %p123 = scmp.ne.s32.totalorder %s118, %s120
      %p124 = scmp.eq.s32.totalorder %s21, 0
      %p125 = por %p123, %p124
      %p126 = scmp.ne.s32.totalorder %s118, %s120
      %p127 = scmp.eq.s32.totalorder %s26, 1
      %p128 = por %p126, %p127
      %p129 = scmp.ne.s32.totalorder %s120, %s121
      %p130 = scmp.eq.s32.totalorder %s26, 0
      %p131 = por %p129, %p130
      %p132 = scmp.ne.s32.totalorder %s120, %s121
      %p133 = scmp.eq.s32.totalorder %s27, 1
      %p134 = por %p132, %p133
      %p136 = scmp.ne.s32.totalorder %s121, %s135
      %p137 = scmp.eq.s32.totalorder %s27, 0
      %p138 = por %p136, %p137
      %s140 = sadd.s32 %s139, 1
      %p143 = scmp.eq.s32.totalorder %s21, 1
      %p144 = scmp.ne.s32.totalorder %s139, %s141
      %p145 = scmp.eq.s32.totalorder %s21, 0
      %p146 = por %p144, %p145
      %p147 = scmp.ne.s32.totalorder %s139, %s141
      %p148 = scmp.eq.s32.totalorder %s26, 1
      %p149 = por %p147, %p148
      %p150 = scmp.ne.s32.totalorder %s141, %s142
      %p151 = scmp.eq.s32.totalorder %s26, 0
      %p152 = por %p150, %p151
      %p153 = scmp.ne.s32.totalorder %s141, %s142
      %p154 = scmp.eq.s32.totalorder %s27, 1
      %p155 = por %p153, %p154
      %p157 = scmp.ne.s32.totalorder %s142, %s156
      %p158 = scmp.eq.s32.totalorder %s27, 0
      %p159 = por %p157, %p158
      %s161 = sadd.s32 %s160, 1
      %p164 = scmp.eq.s32.totalorder %s21, 1
      %p165 = scmp.ne.s32.totalorder %s160, %s162
      %p166 = scmp.eq.s32.totalorder %s21, 0
      %p167 = por %p165, %p166
      %p168 = scmp.ne.s32.totalorder %s160, %s162
      %p169 = scmp.eq.s32.totalorder %s26, 1
      %p170 = por %p168, %p169
      %p171 = scmp.ne.s32.totalorder %s162, %s163
      %p172 = scmp.eq.s32.totalorder %s26, 0
      %p173 = por %p171, %p172
      %p174 = scmp.ne.s32.totalorder %s162, %s163
      %p175 = scmp.eq.s32.totalorder %s27, 1
      %p176 = por %p174, %p175
      %p178 = scmp.ne.s32.totalorder %s163, %s177
      %p179 = scmp.eq.s32.totalorder %s27, 0
      %p180 = por %p178, %p179
      %s182 = sadd.s32 %s181, 1
      %p185 = scmp.eq.s32.totalorder %s21, 1
      %p186 = scmp.ne.s32.totalorder %s181, %s183
      %p187 = scmp.eq.s32.totalorder %s21, 0
      %p188 = por %p186, %p187
      %p189 = scmp.ne.s32.totalorder %s181, %s183
      %p190 = scmp.eq.s32.totalorder %s26, 1
      %p191 = por %p189, %p190
      %p192 = scmp.ne.s32.totalorder %s183, %s184
      %p193 = scmp.eq.s32.totalorder %s26, 0
      %p194 = por %p192, %p193
      %p195 = scmp.ne.s32.totalorder %s183, %s184
      %p196 = scmp.eq.s32.totalorder %s27, 1
      %p197 = por %p195, %p196
      %p199 = scmp.ne.s32.totalorder %s184, %s198
      %p200 = scmp.eq.s32.totalorder %s27, 0
      %p201 = por %p199, %p200
      %s203 = sadd.s32 %s202, 1
      %p206 = scmp.eq.s32.totalorder %s21, 1
      %p207 = scmp.ne.s32.totalorder %s202, %s204
      %p208 = scmp.eq.s32.totalorder %s21, 0
      %p209 = por %p207, %p208
      %p210 = scmp.ne.s32.totalorder %s202, %s204
      %p211 = scmp.eq.s32.totalorder %s26, 1
      %p212 = por %p210, %p211
      %p213 = scmp.ne.s32.totalorder %s204, %s205
      %p214 = scmp.eq.s32.totalorder %s26, 0
      %p215 = por %p213, %p214
      %p216 = scmp.ne.s32.totalorder %s204, %s205
      %p217 = scmp.eq.s32.totalorder %s27, 1
      %p218 = por %p216, %p217
      %p220 = scmp.ne.s32.totalorder %s205, %s219
      %p221 = scmp.eq.s32.totalorder %s27, 0
      %p222 = por %p220, %p221
      %s224 = sadd.s32 %s223, 1
      %p227 = scmp.eq.s32.totalorder %s21, 1
      %p228 = scmp.ne.s32.totalorder %s223, %s225
      %p229 = scmp.eq.s32.totalorder %s21, 0
      %p230 = por %p228, %p229
      %p231 = scmp.ne.s32.totalorder %s223, %s225
      %p232 = scmp.eq.s32.totalorder %s26, 1
      %p233 = por %p231, %p232
      %p234 = scmp.ne.s32.totalorder %s225, %s226
      %p235 = scmp.eq.s32.totalorder %s26, 0
      %p236 = por %p234, %p235
      %p237 = scmp.ne.s32.totalorder %s225, %s226
      %p238 = scmp.eq.s32.totalorder %s27, 1
      %p239 = por %p237, %p238
      %p241 = scmp.ne.s32.totalorder %s226, %s240
      %p242 = scmp.eq.s32.totalorder %s27, 0
      %p243 = por %p241, %p242
      %s245 = sadd.s32 %s244, 1
      %p248 = scmp.eq.s32.totalorder %s21, 1
      %p249 = scmp.ne.s32.totalorder %s244, %s246
      %p250 = scmp.eq.s32.totalorder %s21, 0
      %p251 = por %p249, %p250
      %p252 = scmp.ne.s32.totalorder %s244, %s246
      %p253 = scmp.eq.s32.totalorder %s26, 1
      %p254 = por %p252, %p253
      %p255 = scmp.ne.s32.totalorder %s246, %s247
      %p256 = scmp.eq.s32.totalorder %s26, 0
      %p257 = por %p255, %p256
      %p258 = scmp.ne.s32.totalorder %s246, %s247
      %p259 = scmp.eq.s32.totalorder %s27, 1
      %p260 = por %p258, %p259
      %p262 = scmp.ne.s32.totalorder %s247, %s261
      %p263 = scmp.eq.s32.totalorder %s27, 0
      %p264 = por %p262, %p263
      %s266 = sadd.s32 %s265, 1
      %p269 = scmp.eq.s32.totalorder %s21, 1
      %p270 = scmp.ne.s32.totalorder %s265, %s267
      %p271 = scmp.eq.s32.totalorder %s21, 0
      %p272 = por %p270, %p271
      %p273 = scmp.ne.s32.totalorder %s265, %s267
      %p274 = scmp.eq.s32.totalorder %s26, 1
      %p275 = por %p273, %p274
      %p276 = scmp.ne.s32.totalorder %s267, %s268
      %p277 = scmp.eq.s32.totalorder %s26, 0
      %p278 = por %p276, %p277
      %p279 = scmp.ne.s32.totalorder %s267, %s268
      %p280 = scmp.eq.s32.totalorder %s27, 1
      %p281 = por %p279, %p280
      %p283 = scmp.ne.s32.totalorder %s268, %s282
      %p284 = scmp.eq.s32.totalorder %s27, 0
      %p285 = por %p283, %p284
      %s286 = ssub.s32 %s21, %s28
      %p287 = scmp.eq.s32.totalorder %s286, 0
      %s289 = sadd.s32 %s288, 1
      %s290 = scalar_select %p287, %s288, %s289
      %p293 = pneg %p287
      %p294 = scmp.eq.s32.totalorder %s21, 1
      %p295 = por %p293, %p294
      %p296 = scmp.ne.s32.totalorder %s288, %s291
      %p297 = scmp.eq.s32.totalorder %s21, 0
      %p298 = por %p296, %p297
      %p299 = scmp.ne.s32.totalorder %s288, %s291
      %p300 = scmp.eq.s32.totalorder %s26, 1
      %p301 = por %p299, %p300
      %p302 = scmp.ne.s32.totalorder %s291, %s292
      %p303 = scmp.eq.s32.totalorder %s26, 0
      %p304 = por %p302, %p303
      %p305 = scmp.ne.s32.totalorder %s291, %s292
      %p306 = scmp.eq.s32.totalorder %s27, 1
      %p307 = por %p305, %p306
      %p309 = scmp.ne.s32.totalorder %s292, %s308
      %p310 = scmp.eq.s32.totalorder %s27, 0
      %p311 = por %p309, %p310
      %p312 = scmp.le.s32.totalorder 1, %s21
      %p313 = scmp.lt.s32.totalorder %s21, 3
      %p314 = pnand %p312, %p313
      %p315 = pneg %p314
      // Predicated region
      $region9: #{block_forward.1} parent=5 // pred_check
        _
      $region10: #{block_forward.1} parent=5 // pred_check_branch
        %317 = sbr.rel (%p314) target = $region12
      $region11: #{block_forward.1} parent=5 // pred_region
        %s318 = ssub.s32 %s21, 1
        // Predicated region
        $region13: #{block_forward.1} parent=11 // pred_check
          %p319 = pneg %p68
        $region14: #{block_forward.1} parent=11 // pred_check_branch
          %321 = sbr.rel (%p319) target = $region16
        $region15: #{block_forward.1} parent=11 // pred_region
          _
        $region16: #{block_forward.1} parent=11 // pred_fallthru
          _
        // Predicated region
        $region17: #{block_forward.1} parent=11 // pred_check
          %p322 = pneg %p89
        $region18: #{block_forward.1} parent=11 // pred_check_branch
          %324 = sbr.rel (%p322) target = $region20
        $region19: #{block_forward.1} parent=11 // pred_region
          _
        $region20: #{block_forward.1} parent=11 // pred_fallthru
          _
        // Predicated region
        $region21: #{block_forward.1} parent=11 // pred_check
          %p325 = pneg %p110
        $region22: #{block_forward.1} parent=11 // pred_check_branch
          %327 = sbr.rel (%p325) target = $region24
        $region23: #{block_forward.1} parent=11 // pred_region
          _
        $region24: #{block_forward.1} parent=11 // pred_fallthru
          _
        // Predicated region
        $region25: #{block_forward.1} parent=11 // pred_check
          %p328 = pneg %p131
        $region26: #{block_forward.1} parent=11 // pred_check_branch
          %330 = sbr.rel (%p328) target = $region28
        $region27: #{block_forward.1} parent=11 // pred_region
          _
        $region28: #{block_forward.1} parent=11 // pred_fallthru
          _
        // Predicated region
        $region29: #{block_forward.1} parent=11 // pred_check
          %p331 = pneg %p152
        $region30: #{block_forward.1} parent=11 // pred_check_branch
          %333 = sbr.rel (%p331) target = $region32
        $region31: #{block_forward.1} parent=11 // pred_region
          _
        $region32: #{block_forward.1} parent=11 // pred_fallthru
          _
        // Predicated region
        $region33: #{block_forward.1} parent=11 // pred_check
          %p334 = pneg %p173
        $region34: #{block_forward.1} parent=11 // pred_check_branch
          %336 = sbr.rel (%p334) target = $region36
        $region35: #{block_forward.1} parent=11 // pred_region
          _
        $region36: #{block_forward.1} parent=11 // pred_fallthru
          _
        // Predicated region
        $region37: #{block_forward.1} parent=11 // pred_check
          %p337 = pneg %p194
        $region38: #{block_forward.1} parent=11 // pred_check_branch
          %339 = sbr.rel (%p337) target = $region40
        $region39: #{block_forward.1} parent=11 // pred_region
          _
        $region40: #{block_forward.1} parent=11 // pred_fallthru
          _
        // Predicated region
        $region41: #{block_forward.1} parent=11 // pred_check
          %p340 = pneg %p215
        $region42: #{block_forward.1} parent=11 // pred_check_branch
          %342 = sbr.rel (%p340) target = $region44
        $region43: #{block_forward.1} parent=11 // pred_region
          _
        $region44: #{block_forward.1} parent=11 // pred_fallthru
          _
        // Predicated region
        $region45: #{block_forward.1} parent=11 // pred_check
          %p343 = pneg %p236
        $region46: #{block_forward.1} parent=11 // pred_check_branch
          %345 = sbr.rel (%p343) target = $region48
        $region47: #{block_forward.1} parent=11 // pred_region
          _
        $region48: #{block_forward.1} parent=11 // pred_fallthru
          _
        // Predicated region
        $region49: #{block_forward.1} parent=11 // pred_check
          %p346 = pneg %p257
        $region50: #{block_forward.1} parent=11 // pred_check_branch
          %348 = sbr.rel (%p346) target = $region52
        $region51: #{block_forward.1} parent=11 // pred_region
          _
        $region52: #{block_forward.1} parent=11 // pred_fallthru
          _
        // Predicated region
        $region53: #{block_forward.1} parent=11 // pred_check
          %p349 = pneg %p278
        $region54: #{block_forward.1} parent=11 // pred_check_branch
          %351 = sbr.rel (%p349) target = $region56
        $region55: #{block_forward.1} parent=11 // pred_region
          _
        $region56: #{block_forward.1} parent=11 // pred_fallthru
          _
      $region12: #{block_forward.1} parent=5 // pred_fallthru
        _
      %p352 = scmp.lt.s32.totalorder %s21, 2
      // Predicated region
      $region57: #{block_forward.1} parent=5 // pred_check
        %p353 = pneg %p352
      $region58: #{block_forward.1} parent=5 // pred_check_branch
        %355 = sbr.rel (%p353) target = $region60
      $region59: #{block_forward.1} parent=5 // pred_region
        // Predicated region
        $region61: #{block_forward.1} parent=59 // pred_check
          %p356 = pneg %p41
        $region62: #{block_forward.1} parent=59 // pred_check_branch
          %358 = sbr.rel (%p356) target = $region64
        $region63: #{block_forward.1} parent=59 // pred_region
          %p359 = scmp.lt.s32.totalorder %s21, 1
          %s360 = scalar_select %p359, %s21, 1
          %s361 = smul.addr %s360, 4
          %s362 = smul.addr %s361, 8
          %s363 = scalar_lea.vmem %s0, %s362
        $region64: #{block_forward.1} parent=59 // pred_fallthru
          _
      $region60: #{block_forward.1} parent=5 // pred_fallthru
        _
      %p364 = scmp.le.s32.totalorder 1, %s21
      %p365 = scmp.lt.s32.totalorder %s21, 3
      %p366 = pnand %p364, %p365
      %p367 = pneg %p366
      // Predicated region
      $region65: #{block_forward.1} parent=5 // pred_check
        _
      $region66: #{block_forward.1} parent=5 // pred_check_branch
        %369 = sbr.rel (%p366) target = $region68
      $region67: #{block_forward.1} parent=5 // pred_region
        %s370 = ssub.s32 %s21, 1
        %p371 = scmp.lt.s32.totalorder %s26, 1
        %s372 = scalar_select %p371, %s26, 1
        %s373 = smul.addr %s372, 4
        %s374 = smul.addr %s373, 8
        %s375 = scalar_lea.vmem %s0, %s374
        %p376 = pneg %p47
        %p377 = pneg %p44
        %p378 = pneg %p68
        %p379 = pneg %p65
        %p380 = pneg %p89
        %p381 = pneg %p86
        %p382 = pneg %p110
        %p383 = pneg %p107
        %p384 = pneg %p131
        %p385 = pneg %p128
        %p386 = pneg %p152
        %p387 = pneg %p149
        %p388 = pneg %p173
        %p389 = pneg %p170
        %p390 = pneg %p194
        %p391 = pneg %p191
        %p392 = pneg %p215
        %p393 = pneg %p212
        %p394 = pneg %p236
        %p395 = pneg %p233
        %p396 = pneg %p257
        %p397 = pneg %p254
        %p398 = pneg %p278
        %p399 = pneg %p275
        %p400 = pneg %p304
        %p401 = pneg %p301
        %s402 = sand.u32 %s291, 1
        %s403 = scalar_lea.sflag [#allocation3], %s402
        %s404 = sand.u32 %s291, 1
        %s405 = smul.addr %s404, 32
        %s406 = scalar_lea.vmem [#allocation2], %s405
        %p407 = scmp.lt.s32.totalorder %s26, 1
        %s408 = scalar_select %p407, %s26, 1
        %s409 = smul.addr %s408, 4
        %s410 = smul.addr %s409, 8
        %s411 = scalar_lea.vmem %s0, %s410
        %v412 = vld [vmem:[%s411] sm:$0xff]
        %v413 = vld [vmem:[%s411 + $0x8] sm:$0xff]
        %v414 = vld [vmem:[%s411 + $0x10] sm:$0xff]
        %v415 = vld [vmem:[%s411 + $0x18] sm:$0xff]
        %v416 = vld [vmem:[%s1] sm:$0x3]
        %v417 = vld [vmem:[%s2] sm:$0x3]
        %vm418 = vcmask 588800
        %v419 = vsel %vm418, %v413, 0.0
        %v420 = vadd.f32 %v412, %v419
        %421 = vadd.xlane.f32.xlu0 %v420
        %v422 = vpop.xlane.xlu0 %421
        %v423 = vsel %vm418, %v415, 0.0
        %v424 = vadd.f32 %v414, %v423
        %425 = vadd.xlane.f32.xlu0 %v424
        %v426 = vpop.xlane.xlu0 %425
        %v427 = vrcp.pop 200.0
        %v428 = vmul.f32 %v422, %v427
        %v429 = vmul.f32 %v426, %v427
        %v430 = vsub.f32 %v412, %v428
        %v431 = vsub.f32 %v413, %v428
        %v432 = vsub.f32 %v414, %v429
        %v433 = vsub.f32 %v415, %v429
        %v434 = vmul.f32 %v430, %v430
        %v435 = vmul.f32 %v431, %v431
        %v436 = vmul.f32 %v432, %v432
        %v437 = vmul.f32 %v433, %v433
        %v438 = vsel %vm418, %v435, 0.0
        %v439 = vadd.f32 %v434, %v438
        %440 = vadd.xlane.f32.xlu0 %v439
        %v441 = vpop.xlane.xlu0 %440
        %v442 = vsel %vm418, %v437, 0.0
        %v443 = vadd.f32 %v436, %v442
        %444 = vadd.xlane.f32.xlu0 %v443
        %v445 = vpop.xlane.xlu0 %444
        %v446 = vmul.f32 %v441, %v427
        %v447 = vmul.f32 %v445, %v427
        %v448 = vadd.f32 %v446, 1e-05
        %v449 = vadd.f32 %v447, 1e-05
        %v450 = vrsqrt.pop %v448
        %v451 = vrsqrt.pop %v449
        %v452 = vmul.f32 %v430, %v450
        %v453 = vmul.f32 %v431, %v450
        %v454 = vmul.f32 %v432, %v451
        %v455 = vmul.f32 %v433, %v451
        %v457 = vlaneseq
        %v458 = vshrl.u32 %v457, 7
        %v459 = vsub.s32 0, %v458
        %v460 = vrot.slane %v416, %v459
        %v461 = vlaneseq
        %v462 = vshrl.u32 %v461, 7
        %v463 = vsub.s32 1, %v462
        %v464 = vrot.slane %v416, %v463
        %v467 = vmul.f32 %v452, %v460
        %v468 = vmul.f32 %v453, %v464
        %v469 = vmul.f32 %v454, %v460
        %v470 = vmul.f32 %v455, %v464
        %v472 = vlaneseq
        %v473 = vshrl.u32 %v472, 7
        %v474 = vsub.s32 0, %v473
        %v475 = vrot.slane %v417, %v474
        %v476 = vlaneseq
        %v477 = vshrl.u32 %v476, 7
        %v478 = vsub.s32 1, %v477
        %v479 = vrot.slane %v417, %v478
        %v482 = vadd.f32 %v467, %v475
        %v483 = vadd.f32 %v468, %v479
        %v484 = vadd.f32 %v469, %v475
        %v485 = vadd.f32 %v470, %v479
        %v486 = vld [vmem:[%s3] sm:$0xff]
        %v487 = vld [vmem:[%s3 + $0x8] sm:$0xff]
        %v488 = vld [vmem:[%s3 + $0x10] sm:$0xff]
        %v489 = vld [vmem:[%s3 + $0x18] sm:$0xff]
        %v490 = vld [vmem:[%s3 + $0x20] sm:$0xff]
        %v491 = vld [vmem:[%s3 + $0x28] sm:$0xff]
        %v492 = vld [vmem:[%s3 + $0x30] sm:$0xff]
        %v493 = vld [vmem:[%s3 + $0x38] sm:$0xff]
        %v494 = vld [vmem:[%s3 + $0x40] sm:$0xff]
        %v495 = vld [vmem:[%s3 + $0x48] sm:$0xff]
        %v496 = vld [vmem:[%s3 + $0x50] sm:$0xff]
        %v497 = vld [vmem:[%s3 + $0x58] sm:$0xff]
        %v498 = vld [vmem:[%s3 + $0x60] sm:$0xff]
        %v499 = vld [vmem:[%s3 + $0x68] sm:$0xff]
        %v500 = vld [vmem:[%s3 + $0x70] sm:$0xff]
        %v501 = vld [vmem:[%s3 + $0x78] sm:$0xff]
        %v502 = vld [vmem:[%s3 + $0x80] sm:$0xff]
        %v503 = vld [vmem:[%s3 + $0x88] sm:$0xff]
        %v504 = vld [vmem:[%s3 + $0x90] sm:$0xff]
        %v505 = vld [vmem:[%s3 + $0x98] sm:$0xff]
        %v506 = vld [vmem:[%s3 + $0xa0] sm:$0xff]
        %v507 = vld [vmem:[%s3 + $0xa8] sm:$0xff]
        %v508 = vld [vmem:[%s3 + $0xb0] sm:$0xff]
        %v509 = vld [vmem:[%s3 + $0xb8] sm:$0xff]
        %v510 = vld [vmem:[%s3 + $0xc0] sm:$0xff]
        %v511 = vld [vmem:[%s3 + $0xc8] sm:$0xff]
        %v512 = vld [vmem:[%s3 + $0xd0] sm:$0xff]
        %v513 = vld [vmem:[%s3 + $0xd8] sm:$0xff]
        %v514 = vld [vmem:[%s3 + $0xe0] sm:$0xff]
        %v515 = vld [vmem:[%s3 + $0xe8] sm:$0xff]
        %v516 = vld [vmem:[%s3 + $0xf0] sm:$0xff]
        %v517 = vld [vmem:[%s3 + $0xf8] sm:$0xff]
        %v518 = vld [vmem:[%s3 + $0x100] sm:$0xff]
        %v519 = vld [vmem:[%s3 + $0x108] sm:$0xff]
        %v520 = vld [vmem:[%s3 + $0x110] sm:$0xff]
        %v521 = vld [vmem:[%s3 + $0x118] sm:$0xff]
        %v522 = vld [vmem:[%s3 + $0x120] sm:$0xff]
        %v523 = vld [vmem:[%s3 + $0x128] sm:$0xff]
        %v524 = vld [vmem:[%s3 + $0x130] sm:$0xff]
        %v525 = vld [vmem:[%s3 + $0x138] sm:$0xff]
        %v526 = vld [vmem:[%s3 + $0x140] sm:$0xff]
        %v527 = vld [vmem:[%s3 + $0x148] sm:$0xff]
        %v528 = vld [vmem:[%s3 + $0x150] sm:$0xff]
        %v529 = vld [vmem:[%s3 + $0x158] sm:$0xff]
        %v530 = vld [vmem:[%s3 + $0x160] sm:$0xff]
        %v531 = vld [vmem:[%s3 + $0x168] sm:$0xff]
        %v532 = vld [vmem:[%s3 + $0x170] sm:$0xff]
        %v533 = vld [vmem:[%s3 + $0x178] sm:$0xff]
        %v534 = vld [vmem:[%s3 + $0x180] sm:$0xff]
        %v535 = vld [vmem:[%s3 + $0x188] sm:$0xff]
        %v536 = vld [vmem:[%s3 + $0x190] sm:$0xff]
        %v537 = vld [vmem:[%s3 + $0x198] sm:$0xff]
        %v538 = vld [vmem:[%s3 + $0x1a0] sm:$0xff]
        %v539 = vld [vmem:[%s3 + $0x1a8] sm:$0xff]
        %v540 = vld [vmem:[%s3 + $0x1b0] sm:$0xff]
        %v541 = vld [vmem:[%s3 + $0x1b8] sm:$0xff]
        %v542 = vld [vmem:[%s3 + $0x1c0] sm:$0xff]
        %v543 = vld [vmem:[%s3 + $0x1c8] sm:$0xff]
        %v544 = vld [vmem:[%s3 + $0x1d0] sm:$0xff]
        %v545 = vld [vmem:[%s3 + $0x1d8] sm:$0xff]
        %v546 = vld [vmem:[%s3 + $0x1e0] sm:$0xff]
        %v547 = vld [vmem:[%s3 + $0x1e8] sm:$0xff]
        %v548 = vld [vmem:[%s3 + $0x1f0] sm:$0xff]
        %v549 = vld [vmem:[%s3 + $0x1f8] sm:$0xff]
        %v550 = vld [vmem:[%s3 + $0x200] sm:$0xff]
        %v551 = vld [vmem:[%s3 + $0x208] sm:$0xff]
        %v552 = vld [vmem:[%s3 + $0x210] sm:$0xff]
        %v553 = vld [vmem:[%s3 + $0x218] sm:$0xff]
        %v554 = vld [vmem:[%s3 + $0x220] sm:$0xff]
        %v555 = vld [vmem:[%s3 + $0x228] sm:$0xff]
        %v556 = vld [vmem:[%s3 + $0x230] sm:$0xff]
        %v557 = vld [vmem:[%s3 + $0x238] sm:$0xff]
        %v558 = vld [vmem:[%s3 + $0x240] sm:$0xff]
        %v559 = vld [vmem:[%s3 + $0x248] sm:$0xff]
        %v560 = vld [vmem:[%s3 + $0x250] sm:$0xff]
        %v561 = vld [vmem:[%s3 + $0x258] sm:$0xff]
        %v562 = vld [vmem:[%s3 + $0x260] sm:$0xff]
        %v563 = vld [vmem:[%s3 + $0x268] sm:$0xff]
        %v564 = vld [vmem:[%s3 + $0x270] sm:$0xff]
        %v565 = vld [vmem:[%s3 + $0x278] sm:$0xff]
        %v566 = vld [vmem:[%s3 + $0x280] sm:$0xff]
        %v567 = vld [vmem:[%s3 + $0x288] sm:$0xff]
        %v568 = vld [vmem:[%s3 + $0x290] sm:$0xff]
        %v569 = vld [vmem:[%s3 + $0x298] sm:$0xff]
        %v570 = vld [vmem:[%s3 + $0x2a0] sm:$0xff]
        %v571 = vld [vmem:[%s3 + $0x2a8] sm:$0xff]
        %v572 = vld [vmem:[%s3 + $0x2b0] sm:$0xff]
        %v573 = vld [vmem:[%s3 + $0x2b8] sm:$0xff]
        %v574 = vld [vmem:[%s3 + $0x2c0] sm:$0xff]
        %v575 = vld [vmem:[%s3 + $0x2c8] sm:$0xff]
        %v576 = vld [vmem:[%s3 + $0x2d0] sm:$0xff]
        %v577 = vld [vmem:[%s3 + $0x2d8] sm:$0xff]
        %v578 = vld [vmem:[%s3 + $0x2e0] sm:$0xff]
        %v579 = vld [vmem:[%s3 + $0x2e8] sm:$0xff]
        %v580 = vld [vmem:[%s3 + $0x2f0] sm:$0xff]
        %v581 = vld [vmem:[%s3 + $0x2f8] sm:$0xff]
        %v582 = vld [vmem:[%s3 + $0x300] sm:$0xff]
        %v583 = vld [vmem:[%s3 + $0x308] sm:$0xff]
        %v584 = vld [vmem:[%s3 + $0x310] sm:$0xff]
        %v585 = vld [vmem:[%s3 + $0x318] sm:$0xff]
        %v586 = vld [vmem:[%s3 + $0x320] sm:$0xff]
        %v587 = vld [vmem:[%s3 + $0x328] sm:$0xff]
        %v588 = vld [vmem:[%s3 + $0x330] sm:$0xff]
        %v589 = vld [vmem:[%s3 + $0x338] sm:$0xff]
        %v590 = vld [vmem:[%s3 + $0x340] sm:$0xff]
        %v591 = vld [vmem:[%s3 + $0x348] sm:$0xff]
        %v592 = vld [vmem:[%s3 + $0x350] sm:$0xff]
        %v593 = vld [vmem:[%s3 + $0x358] sm:$0xff]
        %v594 = vld [vmem:[%s3 + $0x360] sm:$0xff]
        %v595 = vld [vmem:[%s3 + $0x368] sm:$0xff]
        %v596 = vld [vmem:[%s3 + $0x370] sm:$0xff]
        %v597 = vld [vmem:[%s3 + $0x378] sm:$0xff]
        %v598 = vld [vmem:[%s3 + $0x380] sm:$0xff]
        %v599 = vld [vmem:[%s3 + $0x388] sm:$0xff]
        %v600 = vld [vmem:[%s3 + $0x390] sm:$0xff]
        %v601 = vld [vmem:[%s3 + $0x398] sm:$0xff]
        %v602 = vld [vmem:[%s3 + $0x3a0] sm:$0xff]
        %v603 = vld [vmem:[%s3 + $0x3a8] sm:$0xff]
        %v604 = vld [vmem:[%s3 + $0x3b0] sm:$0xff]
        %v605 = vld [vmem:[%s3 + $0x3b8] sm:$0xff]
        %v606 = vld [vmem:[%s3 + $0x3c0] sm:$0xff]
        %v607 = vld [vmem:[%s3 + $0x3c8] sm:$0xff]
        %v608 = vld [vmem:[%s3 + $0x3d0] sm:$0xff]
        %v609 = vld [vmem:[%s3 + $0x3d8] sm:$0xff]
        %v610 = vld [vmem:[%s3 + $0x3e0] sm:$0xff]
        %v612 = vsel %vm418, %v483, 0
        %v615 = vsel %vm418, %v485, 0
        %617 = vmatprep.subr.mxu0 %v487
        %618 = vmatpush1.msra.mxu0 %v486
        %619 = vmatprep.subr.mxu0 %v492
        %620 = vmatpush1.msra.mxu0 %v491
        %621 = vmatprep.subr.mxu0 %v497
        %622 = vmatpush1.msra.mxu0 %v496
        %623 = vmatprep.subr.mxu0 %v502
        %624 = vmatpush1.msra.mxu0 %v501
        %625 = vmatprep.subr.mxu0 %v507
        %626 = vmatpush1.msra.mxu0 %v506
        %627 = vmatprep.subr.mxu0 %v512
        %628 = vmatpush1.msra.mxu0 %v511
        %629 = vmatprep.subr.mxu0 %v517
        %630 = vmatpush1.msra.mxu0 %v516
        %631 = vmatprep.subr.mxu0 %v522
        %632 = vmatpush1.msra.mxu0 %v521
        %633 = vmatprep.subr.mxu0 %v527
        %634 = vmatpush1.msra.mxu0 %v526
        %635 = vmatprep.subr.mxu0 %v532
        %636 = vmatpush1.msra.mxu0 %v531
        %637 = vmatprep.subr.mxu0 %v537
        %638 = vmatpush1.msra.mxu0 %v536
        %639 = vmatprep.subr.mxu0 %v542
        %640 = vmatpush1.msra.mxu0 %v541
        %641 = vmatprep.subr.mxu0 %v547
        %642 = vmatpush1.msra.mxu0 %v546
        %643 = vmatprep.subr.mxu0 %v552
        %644 = vmatpush1.msra.mxu0 %v551
        %645 = vmatprep.subr.mxu0 %v557
        %646 = vmatpush1.msra.mxu0 %v556
        %647 = vmatprep.subr.mxu0 %v562
        %648 = vmatpush1.msra.mxu0 %v561
        %649 = vmatprep.subr.mxu0 %v567
        %650 = vmatpush1.msra.mxu0 %v566
        %651 = vmatprep.subr.mxu0 %v572
        %652 = vmatpush1.msra.mxu0 %v571
        %653 = vmatprep.subr.mxu0 %v577
        %654 = vmatpush1.msra.mxu0 %v576
        %655 = vmatprep.subr.mxu0 %v582
        %656 = vmatpush1.msra.mxu0 %v581
        %657 = vmatprep.subr.mxu0 %v587
        %658 = vmatpush1.msra.mxu0 %v586
        %659 = vmatprep.subr.mxu0 %v592
        %660 = vmatpush1.msra.mxu0 %v591
        %661 = vmatprep.subr.mxu0 %v597
        %662 = vmatpush1.msra.mxu0 %v596
        %663 = vmatprep.subr.mxu0 %v602
        %664 = vmatpush1.msra.mxu0 %v601
        %665 = vmatprep.subr.mxu0 %v607
        %666 = vmatpush1.msra.mxu0 %v606
        %667 = vmatprep.subr.mxu0 0.0
        %668 = vmatpush1.msra.mxu0 0.0
        %669 = vmatprep.subr.mxu0 0.0
        %670 = vmatpush1.msra.mxu0 0.0
        %671 = vmatprep.subr.mxu0 0.0
        %672 = vmatpush1.msra.mxu0 0.0
        %673 = vmatprep.subr.mxu0 0.0
        %674 = vmatpush1.msra.mxu0 0.0
        %675 = vmatprep.subr.mxu0 0.0
        %676 = vmatpush1.msra.mxu0 0.0
        %677 = vmatprep.subr.mxu0 0.0
        %678 = vmatpush1.msra.mxu0 0.0
        %679 = vmatprep.subr.mxu0 0.0
        %680 = vmatpush1.msra.mxu0 0.0
        %681 = vmatprep.mubr.f32.mxu0 %v612
        %682 = vmatmul.mubr.f32.gmra.mrb[0].mxu0 %v482
        %v683 = vpop.f32.mrb[0].mxu0
        %v684 = vadd.f32 0.0, %v683
        %v685 = vpop.f32.mrb[0].mxu0
        %v686 = vadd.f32 0.0, %v685
        %687 = vmatprep.mubr.f32.mxu0 %v615
        %688 = vmatmul.mubr.f32.gmra.mrb[0].mxu0 %v484
        %v689 = vpop.f32.mrb[0].mxu0
        %v690 = vadd.f32 0.0, %v689
        %v691 = vpop.f32.mrb[0].mxu0
        %v692 = vadd.f32 0.0, %v691
        %693 = vdwg.mxu0
        %694 = vmatprep.subr.mxu0 %v489
        %695 = vmatpush1.msra.mxu0 %v488
        %696 = vmatprep.subr.mxu0 %v494
        %697 = vmatpush1.msra.mxu0 %v493
        %698 = vmatprep.subr.mxu0 %v499
        %699 = vmatpush1.msra.mxu0 %v498
        %700 = vmatprep.subr.mxu0 %v504
        %701 = vmatpush1.msra.mxu0 %v503
        %702 = vmatprep.subr.mxu0 %v509
        %703 = vmatpush1.msra.mxu0 %v508
        %704 = vmatprep.subr.mxu0 %v514
        %705 = vmatpush1.msra.mxu0 %v513
        %706 = vmatprep.subr.mxu0 %v519
        %707 = vmatpush1.msra.mxu0 %v518
        %708 = vmatprep.subr.mxu0 %v524
        %709 = vmatpush1.msra.mxu0 %v523
        %710 = vmatprep.subr.mxu0 %v529
        %711 = vmatpush1.msra.mxu0 %v528
        %712 = vmatprep.subr.mxu0 %v534
        %713 = vmatpush1.msra.mxu0 %v533
        %714 = vmatprep.subr.mxu0 %v539
        %715 = vmatpush1.msra.mxu0 %v538
        %716 = vmatprep.subr.mxu0 %v544
        %717 = vmatpush1.msra.mxu0 %v543
        %718 = vmatprep.subr.mxu0 %v549
        %719 = vmatpush1.msra.mxu0 %v548
        %720 = vmatprep.subr.mxu0 %v554
        %721 = vmatpush1.msra.mxu0 %v553
        %722 = vmatprep.subr.mxu0 %v559
        %723 = vmatpush1.msra.mxu0 %v558
        %724 = vmatprep.subr.mxu0 %v564
        %725 = vmatpush1.msra.mxu0 %v563
        %726 = vmatprep.subr.mxu0 %v569
        %727 = vmatpush1.msra.mxu0 %v568
        %728 = vmatprep.subr.mxu0 %v574
        %729 = vmatpush1.msra.mxu0 %v573
        %730 = vmatprep.subr.mxu0 %v579
        %731 = vmatpush1.msra.mxu0 %v578
        %732 = vmatprep.subr.mxu0 %v584
        %733 = vmatpush1.msra.mxu0 %v583
        %734 = vmatprep.subr.mxu0 %v589
        %735 = vmatpush1.msra.mxu0 %v588
        %736 = vmatprep.subr.mxu0 %v594
        %737 = vmatpush1.msra.mxu0 %v593
        %738 = vmatprep.subr.mxu0 %v599
        %739 = vmatpush1.msra.mxu0 %v598
        %740 = vmatprep.subr.mxu0 %v604
        %741 = vmatpush1.msra.mxu0 %v603
        %742 = vmatprep.subr.mxu0 %v609
        %743 = vmatpush1.msra.mxu0 %v608
        %744 = vmatprep.subr.mxu0 0.0
        %745 = vmatpush1.msra.mxu0 0.0
        %746 = vmatprep.subr.mxu0 0.0
        %747 = vmatpush1.msra.mxu0 0.0
        %748 = vmatprep.subr.mxu0 0.0
        %749 = vmatpush1.msra.mxu0 0.0
        %750 = vmatprep.subr.mxu0 0.0
        %751 = vmatpush1.msra.mxu0 0.0
        %752 = vmatprep.subr.mxu0 0.0
        %753 = vmatpush1.msra.mxu0 0.0
        %754 = vmatprep.subr.mxu0 0.0
        %755 = vmatpush1.msra.mxu0 0.0
        %756 = vmatprep.subr.mxu0 0.0
        %757 = vmatpush1.msra.mxu0 0.0
        %758 = vmatprep.mubr.f32.mxu0 %v612
        %759 = vmatmul.mubr.f32.gmra.mrb[0].mxu0 %v482
        %v760 = vpop.f32.mrb[0].mxu0
        %v761 = vadd.f32 0.0, %v760
        %v762 = vpop.f32.mrb[0].mxu0
        %v763 = vadd.f32 0.0, %v762
        %764 = vmatprep.mubr.f32.mxu0 %v615
        %765 = vmatmul.mubr.f32.gmra.mrb[0].mxu0 %v484
        %v766 = vpop.f32.mrb[0].mxu0
        %v767 = vadd.f32 0.0, %v766
        %v768 = vpop.f32.mrb[0].mxu0
        %v769 = vadd.f32 0.0, %v768
        %770 = vdwg.mxu0
        %771 = vmatprep.subr.mxu0 0.0
        %772 = vmatpush1.msra.mxu0 %v490
        %773 = vmatprep.subr.mxu0 0.0
        %774 = vmatpush1.msra.mxu0 %v495
        %775 = vmatprep.subr.mxu0 0.0
        %776 = vmatpush1.msra.mxu0 %v500
        %777 = vmatprep.subr.mxu0 0.0
        %778 = vmatpush1.msra.mxu0 %v505
        %779 = vmatprep.subr.mxu0 0.0
        %780 = vmatpush1.msra.mxu0 %v510
        %781 = vmatprep.subr.mxu0 0.0
        %782 = vmatpush1.msra.mxu0 %v515
        %783 = vmatprep.subr.mxu0 0.0
        %784 = vmatpush1.msra.mxu0 %v520
        %785 = vmatprep.subr.mxu0 0.0
        %786 = vmatpush1.msra.mxu0 %v525
        %787 = vmatprep.subr.mxu0 0.0
        %788 = vmatpush1.msra.mxu0 %v530
        %789 = vmatprep.subr.mxu0 0.0
        %790 = vmatpush1.msra.mxu0 %v535
        %791 = vmatprep.subr.mxu0 0.0
        %792 = vmatpush1.msra.mxu0 %v540
        %793 = vmatprep.subr.mxu0 0.0
        %794 = vmatpush1.msra.mxu0 %v545
        %795 = vmatprep.subr.mxu0 0.0
        %796 = vmatpush1.msra.mxu0 %v550
        %797 = vmatprep.subr.mxu0 0.0
        %798 = vmatpush1.msra.mxu0 %v555
        %799 = vmatprep.subr.mxu0 0.0
        %800 = vmatpush1.msra.mxu0 %v560
        %801 = vmatprep.subr.mxu0 0.0
        %802 = vmatpush1.msra.mxu0 %v565
        %803 = vmatprep.subr.mxu0 0.0
        %804 = vmatpush1.msra.mxu0 %v570
        %805 = vmatprep.subr.mxu0 0.0
        %806 = vmatpush1.msra.mxu0 %v575
        %807 = vmatprep.subr.mxu0 0.0
        %808 = vmatpush1.msra.mxu0 %v580
        %809 = vmatprep.subr.mxu0 0.0
        %810 = vmatpush1.msra.mxu0 %v585
        %811 = vmatprep.subr.mxu0 0.0
        %812 = vmatpush1.msra.mxu0 %v590
        %813 = vmatprep.subr.mxu0 0.0
        %814 = vmatpush1.msra.mxu0 %v595
        %815 = vmatprep.subr.mxu0 0.0
        %816 = vmatpush1.msra.mxu0 %v600
        %817 = vmatprep.subr.mxu0 0.0
        %818 = vmatpush1.msra.mxu0 %v605
        %819 = vmatprep.subr.mxu0 0.0
        %820 = vmatpush1.msra.mxu0 %v610
        %821 = vmatprep.subr.mxu0 0.0
        %822 = vmatpush1.msra.mxu0 0.0
        %823 = vmatprep.subr.mxu0 0.0
        %824 = vmatpush1.msra.mxu0 0.0
        %825 = vmatprep.subr.mxu0 0.0
        %826 = vmatpush1.msra.mxu0 0.0
        %827 = vmatprep.subr.mxu0 0.0
        %828 = vmatpush1.msra.mxu0 0.0
        %829 = vmatprep.subr.mxu0 0.0
        %830 = vmatpush1.msra.mxu0 0.0
        %831 = vmatprep.subr.mxu0 0.0
        %832 = vmatpush1.msra.mxu0 0.0
        %833 = vmatprep.subr.mxu0 0.0
        %834 = vmatpush1.msra.mxu0 0.0
        %835 = vmatprep.mubr.f32.mxu0 %v612
        %836 = vmatmul.mubr.f32.gmra.mrb[0].mxu0 %v482
        %v837 = vpop.f32.mrb[0].mxu0
        %v838 = vadd.f32 0.0, %v837
        %v839 = vpop.f32.mrb[0].mxu0
        %840 = vmatprep.mubr.f32.mxu0 %v615
        %841 = vmatmul.mubr.f32.gmra.mrb[0].mxu0 %v484
        %v842 = vpop.f32.mrb[0].mxu0
        %v843 = vadd.f32 0.0, %v842
        %v844 = vpop.f32.mrb[0].mxu0
        %845 = vdwg.mxu0
        %v846 = vlaneseq
        %v847 = vshrl.u32 %v846, 7
        %v848 = vadd.s32 %v847, 8
        %v849 = vlaneseq
        %v850 = vand.u32 %v849, 127
        %vm851 = vcmp.le.s32.totalorder %v850, %v847
        %vm852 = vcmp.le.s32.totalorder %v850, %v848
        %855 = vrot.lane.b32.xlu0 %v686, 56
        %v856 = vpop.permute.xlu0 %855
        %857 = vrot.lane.b32.xlu0 %v692, 56
        %v858 = vpop.permute.xlu0 %857
        %vm859 = vcmask 326656
        %v861 = vsel %vm859, %v684, 0
        %v864 = vsel %vm859, %v690, 0
        %v866 = vsel %vm859, %v856, 0
        %v868 = vsel %vm859, %v858, 0
        %870 = vmatprep.subr.mxu0 0.0
        %871 = vmatpush1.xpose.msra.mxu0 %v866
        %872 = vmatprep.subr.mxu0 0.0
        %873 = vmatpush1.xpose.msra.mxu0 %v868
        %874 = vmatprep.subr.mxu0 0.0
        %875 = vmatpush1.xpose.msra.mxu0 0.0
        %876 = vmatprep.subr.mxu0 0.0
        %877 = vmatpush1.xpose.msra.mxu0 0.0
        %878 = vmatprep.subr.mxu0 0.0
        %879 = vmatpush1.xpose.msra.mxu0 0.0
        %880 = vmatprep.subr.mxu0 0.0
        %881 = vmatpush1.xpose.msra.mxu0 0.0
        %882 = vmatprep.subr.mxu0 0.0
        %883 = vmatpush1.xpose.msra.mxu0 0.0
        %884 = vmatprep.subr.mxu0 0.0
        %885 = vmatpush1.xpose.msra.mxu0 0.0
        %886 = vmatprep.subr.mxu0 0.0
        %887 = vmatpush1.xpose.msra.mxu0 0.0
        %888 = vmatprep.subr.mxu0 0.0
        %889 = vmatpush1.xpose.msra.mxu0 0.0
        %890 = vmatprep.subr.mxu0 0.0
        %891 = vmatpush1.xpose.msra.mxu0 0.0
        %892 = vmatprep.subr.mxu0 0.0
        %893 = vmatpush1.xpose.msra.mxu0 0.0
        %894 = vmatprep.subr.mxu0 0.0
        %895 = vmatpush1.xpose.msra.mxu0 0.0
        %896 = vmatprep.subr.mxu0 0.0
        %897 = vmatpush1.xpose.msra.mxu0 0.0
        %898 = vmatprep.subr.mxu0 0.0
        %899 = vmatpush1.xpose.msra.mxu0 0.0
        %900 = vmatprep.subr.mxu0 0.0
        %901 = vmatpush1.xpose.msra.mxu0 0.0
        %902 = vmatprep.subr.mxu0 0.0
        %903 = vmatpush1.xpose.msra.mxu0 0.0
        %904 = vmatprep.subr.mxu0 0.0
        %905 = vmatpush1.xpose.msra.mxu0 0.0
        %906 = vmatprep.subr.mxu0 0.0
        %907 = vmatpush1.xpose.msra.mxu0 0.0
        %908 = vmatprep.subr.mxu0 0.0
        %909 = vmatpush1.xpose.msra.mxu0 0.0
        %910 = vmatprep.subr.mxu0 0.0
        %911 = vmatpush1.xpose.msra.mxu0 0.0
        %912 = vmatprep.subr.mxu0 0.0
        %913 = vmatpush1.xpose.msra.mxu0 0.0
        %914 = vmatprep.subr.mxu0 0.0
        %915 = vmatpush1.xpose.msra.mxu0 0.0
        %916 = vmatprep.subr.mxu0 0.0
        %917 = vmatpush1.xpose.msra.mxu0 0.0
        %918 = vmatprep.subr.mxu0 0.0
        %919 = vmatpush1.xpose.msra.mxu0 0.0
        %920 = vmatprep.subr.mxu0 0.0
        %921 = vmatpush1.xpose.msra.mxu0 0.0
        %922 = vmatprep.subr.mxu0 0.0
        %923 = vmatpush1.xpose.msra.mxu0 0.0
        %924 = vmatprep.subr.mxu0 0.0
        %925 = vmatpush1.xpose.msra.mxu0 0.0
        %926 = vmatprep.subr.mxu0 0.0
        %927 = vmatpush1.xpose.msra.mxu0 0.0
        %928 = vmatprep.subr.mxu0 0.0
        %929 = vmatpush1.xpose.msra.mxu0 0.0
        %930 = vmatprep.subr.mxu0 0.0
        %931 = vmatpush1.xpose.msra.mxu0 0.0
        %932 = vmatprep.subr.mxu0 0.0
        %933 = vmatpush1.xpose.msra.mxu0 0.0
        %934 = vmatprep.mubr.f32.mxu0 0.0
        %935 = vmatmul.mubr.f32.gmra.mrb[0].mxu0 %v861
        %v936 = vpop.f32.mrb[0].mxu0
        %v937 = vadd.f32 0.0, %v936
        %v938 = vpop.f32.mrb[0].mxu0
        %939 = vmatprep.mubr.f32.mxu0 0.0
        %940 = vmatmul.mubr.f32.gmra.mrb[0].mxu0 %v864
        %v941 = vpop.f32.mrb[0].mxu0
        %v942 = vadd.f32 0.0, %v941
        %v943 = vpop.f32.mrb[0].mxu0
        %944 = vdwg.mxu0
        %v945 = vmul.f32 %v937, 0.15811388
        %v946 = vmul.f32 %v942, 0.15811388
        %v947 = vsel %vm851, %v945, -inf
        %v948 = vsel %vm852, %v946, -inf
        %vm949 = vcmask 130048
        %v950 = vsel %vm949, %v947, -inf
        %951 = vmax.xlane.f32.xlu0 %v950
        %v952 = vpop.xlane.xlu0 %951
        %v953 = vsel %vm949, %v948, -inf
        %954 = vmax.xlane.f32.xlu0 %v953
        %v955 = vpop.xlane.xlu0 %954
        %v956 = vsub.f32 %v947, %v952
        %v957 = vsub.f32 %v948, %v955
        %v958 = vmul.f32 %v956, 1.442695
        %v959 = vpow.pop %v958
        %v960 = vmul.f32 %v957, 1.442695
        %v961 = vpow.pop %v960
        %v962 = vsel %vm949, %v959, 0.0
        %963 = vadd.xlane.f32.xlu0 %v962
        %v964 = vpop.xlane.xlu0 %963
        %v965 = vsel %vm949, %v961, 0.0
        %966 = vadd.xlane.f32.xlu0 %v965
        %v967 = vpop.xlane.xlu0 %966
        %v968 = vrcp.pop %v964
        %v969 = vrcp.pop %v967
        %v970 = vmul.f32 %v959, %v968
        %v971 = vmul.f32 %v961, %v969
        %974 = vrot.lane.b32.xlu0 %v763, 112
        %v975 = vpop.permute.xlu0 %974
        %976 = vrot.lane.b32.xlu0 %v769, 112
        %v977 = vpop.permute.xlu0 %976
        %v981 = vsel %vm949, %v970, 0
        %v984 = vsel %vm949, %v971, 0
        %986 = vmatprep.subr.mxu0 0.0
        %987 = vmatpush1.msra.mxu0 %v975
        %988 = vmatprep.subr.mxu0 0.0
        %989 = vmatpush1.msra.mxu0 %v977
        %990 = vmatprep.subr.mxu0 0.0
        %991 = vmatpush1.msra.mxu0 0.0
        %992 = vmatprep.subr.mxu0 0.0
        %993 = vmatpush1.msra.mxu0 0.0
        %994 = vmatprep.subr.mxu0 0.0
        %995 = vmatpush1.msra.mxu0 0.0
        %996 = vmatprep.subr.mxu0 0.0
        %997 = vmatpush1.msra.mxu0 0.0
        %998 = vmatprep.subr.mxu0 0.0
        %999 = vmatpush1.msra.mxu0 0.0
        %1000 = vmatprep.subr.mxu0 0.0
        %1001 = vmatpush1.msra.mxu0 0.0
        %1002 = vmatprep.subr.mxu0 0.0
        %1003 = vmatpush1.msra.mxu0 0.0
        %1004 = vmatprep.subr.mxu0 0.0
        %1005 = vmatpush1.msra.mxu0 0.0
        %1006 = vmatprep.subr.mxu0 0.0
        %1007 = vmatpush1.msra.mxu0 0.0
        %1008 = vmatprep.subr.mxu0 0.0
        %1009 = vmatpush1.msra.mxu0 0.0
        %1010 = vmatprep.subr.mxu0 0.0
        %1011 = vmatpush1.msra.mxu0 0.0
        %1012 = vmatprep.subr.mxu0 0.0
        %1013 = vmatpush1.msra.mxu0 0.0
        %1014 = vmatprep.subr.mxu0 0.0
        %1015 = vmatpush1.msra.mxu0 0.0
        %1016 = vmatprep.subr.mxu0 0.0
        %1017 = vmatpush1.msra.mxu0 0.0
        %1018 = vmatprep.subr.mxu0 0.0
        %1019 = vmatpush1.msra.mxu0 0.0
        %1020 = vmatprep.subr.mxu0 0.0
        %1021 = vmatpush1.msra.mxu0 0.0
        %1022 = vmatprep.subr.mxu0 0.0
        %1023 = vmatpush1.msra.mxu0 0.0
        %1024 = vmatprep.subr.mxu0 0.0
        %1025 = vmatpush1.msra.mxu0 0.0
        %1026 = vmatprep.subr.mxu0 0.0
        %1027 = vmatpush1.msra.mxu0 0.0
        %1028 = vmatprep.subr.mxu0 0.0
        %1029 = vmatpush1.msra.mxu0 0.0
        %1030 = vmatprep.subr.mxu0 0.0
        %1031 = vmatpush1.msra.mxu0 0.0
        %1032 = vmatprep.subr.mxu0 0.0
        %1033 = vmatpush1.msra.mxu0 0.0
        %1034 = vmatprep.subr.mxu0 0.0
        %1035 = vmatpush1.msra.mxu0 0.0
        %1036 = vmatprep.subr.mxu0 0.0
        %1037 = vmatpush1.msra.mxu0 0.0
        %1038 = vmatprep.subr.mxu0 0.0
        %1039 = vmatpush1.msra.mxu0 0.0
        %1040 = vmatprep.subr.mxu0 0.0
        %1041 = vmatpush1.msra.mxu0 0.0
        %1042 = vmatprep.subr.mxu0 0.0
        %1043 = vmatpush1.msra.mxu0 0.0
        %1044 = vmatprep.subr.mxu0 0.0
        %1045 = vmatpush1.msra.mxu0 0.0
        %1046 = vmatprep.subr.mxu0 0.0
        %1047 = vmatpush1.msra.mxu0 0.0
        %1048 = vmatprep.subr.mxu0 0.0
        %1049 = vmatpush1.msra.mxu0 0.0
        %1050 = vmatprep.mubr.f32.mxu0 0.0
        %1051 = vmatmul.mubr.f32.gmra.mrb[0].mxu0 %v981
        %v1052 = vpop.f32.mrb[0].mxu0
        %v1053 = vadd.f32 0.0, %v1052
        %v1054 = vpop.f32.mrb[0].mxu0
        %1055 = vmatprep.mubr.f32.mxu0 0.0
        %1056 = vmatmul.mubr.f32.gmra.mrb[0].mxu0 %v984
        %v1057 = vpop.f32.mrb[0].mxu0
        %v1058 = vadd.f32 0.0, %v1057
        %v1059 = vpop.f32.mrb[0].mxu0
        %1060 = vdwg.mxu0
        %1061 = vrot.lane.b32.xlu0 %v684, 88
        %v1062 = vpop.permute.xlu0 %1061
        %1063 = vrot.lane.b32.xlu0 %v690, 88
        %v1064 = vpop.permute.xlu0 %1063
        %1067 = vrot.lane.b32.xlu0 %v686, 16
        %v1068 = vpop.permute.xlu0 %1067
        %1069 = vrot.lane.b32.xlu0 %v761, 16
        %v1070 = vpop.permute.xlu0 %1069
        %1071 = vrot.lane.b32.xlu0 %v692, 16
        %v1072 = vpop.permute.xlu0 %1071
        %1073 = vrot.lane.b32.xlu0 %v767, 16
        %v1074 = vpop.permute.xlu0 %1073
        %v1075 = vsel %vm949, %v1068, %v1070
        %v1076 = vsel %vm949, %v1072, %v1074
        %v1077 = vsel %vm859, %v1062, 0
        %v1079 = vsel %vm859, %v1064, 0
        %v1081 = vsel %vm859, %v1075, 0
        %v1083 = vsel %vm859, %v1076, 0
        %1085 = vmatprep.subr.mxu0 0.0
        %1086 = vmatpush1.xpose.msra.mxu0 %v1081
        %1087 = vmatprep.subr.mxu0 0.0
        %1088 = vmatpush1.xpose.msra.mxu0 %v1083
        %1089 = vmatprep.subr.mxu0 0.0
        %1090 = vmatpush1.xpose.msra.mxu0 0.0
        %1091 = vmatprep.subr.mxu0 0.0
        %1092 = vmatpush1.xpose.msra.mxu0 0.0
        %1093 = vmatprep.subr.mxu0 0.0
        %1094 = vmatpush1.xpose.msra.mxu0 0.0
        %1095 = vmatprep.subr.mxu0 0.0
        %1096 = vmatpush1.xpose.msra.mxu0 0.0
        %1097 = vmatprep.subr.mxu0 0.0
        %1098 = vmatpush1.xpose.msra.mxu0 0.0
        %1099 = vmatprep.subr.mxu0 0.0
        %1100 = vmatpush1.xpose.msra.mxu0 0.0
        %1101 = vmatprep.subr.mxu0 0.0
        %1102 = vmatpush1.xpose.msra.mxu0 0.0
        %1103 = vmatprep.subr.mxu0 0.0
        %1104 = vmatpush1.xpose.msra.mxu0 0.0
        %1105 = vmatprep.subr.mxu0 0.0
        %1106 = vmatpush1.xpose.msra.mxu0 0.0
        %1107 = vmatprep.subr.mxu0 0.0
        %1108 = vmatpush1.xpose.msra.mxu0 0.0
        %1109 = vmatprep.subr.mxu0 0.0
        %1110 = vmatpush1.xpose.msra.mxu0 0.0
        %1111 = vmatprep.subr.mxu0 0.0
        %1112 = vmatpush1.xpose.msra.mxu0 0.0
        %1113 = vmatprep.subr.mxu0 0.0
        %1114 = vmatpush1.xpose.msra.mxu0 0.0
        %1115 = vmatprep.subr.mxu0 0.0
        %1116 = vmatpush1.xpose.msra.mxu0 0.0
        %1117 = vmatprep.subr.mxu0 0.0
        %1118 = vmatpush1.xpose.msra.mxu0 0.0
        %1119 = vmatprep.subr.mxu0 0.0
        %1120 = vmatpush1.xpose.msra.mxu0 0.0
        %1121 = vmatprep.subr.mxu0 0.0
        %1122 = vmatpush1.xpose.msra.mxu0 0.0
        %1123 = vmatprep.subr.mxu0 0.0
        %1124 = vmatpush1.xpose.msra.mxu0 0.0
        %1125 = vmatprep.subr.mxu0 0.0
        %1126 = vmatpush1.xpose.msra.mxu0 0.0
        %1127 = vmatprep.subr.mxu0 0.0
        %1128 = vmatpush1.xpose.msra.mxu0 0.0
        %1129 = vmatprep.subr.mxu0 0.0
        %1130 = vmatpush1.xpose.msra.mxu0 0.0
        %1131 = vmatprep.subr.mxu0 0.0
        %1132 = vmatpush1.xpose.msra.mxu0 0.0
        %1133 = vmatprep.subr.mxu0 0.0
        %1134 = vmatpush1.xpose.msra.mxu0 0.0
        %1135 = vmatprep.subr.mxu0 0.0
        %1136 = vmatpush1.xpose.msra.mxu0 0.0
        %1137 = vmatprep.subr.mxu0 0.0
        %1138 = vmatpush1.xpose.msra.mxu0 0.0
        %1139 = vmatprep.subr.mxu0 0.0
        %1140 = vmatpush1.xpose.msra.mxu0 0.0
        %1141 = vmatprep.subr.mxu0 0.0
        %1142 = vmatpush1.xpose.msra.mxu0 0.0
        %1143 = vmatprep.subr.mxu0 0.0
        %1144 = vmatpush1.xpose.msra.mxu0 0.0
        %1145 = vmatprep.subr.mxu0 0.0
        %1146 = vmatpush1.xpose.msra.mxu0 0.0
        %1147 = vmatprep.subr.mxu0 0.0
        %1148 = vmatpush1.xpose.msra.mxu0 0.0
        %1149 = vmatprep.mubr.f32.mxu0 0.0
        %1150 = vmatmul.mubr.f32.gmra.mrb[0].mxu0 %v1077
        %v1151 = vpop.f32.mrb[0].mxu0
        %v1152 = vadd.f32 0.0, %v1151
        %v1153 = vpop.f32.mrb[0].mxu0
        %1154 = vmatprep.mubr.f32.mxu0 0.0
        %1155 = vmatmul.mubr.f32.gmra.mrb[0].mxu0 %v1079
        %v1156 = vpop.f32.mrb[0].mxu0
        %v1157 = vadd.f32 0.0, %v1156
        %v1158 = vpop.f32.mrb[0].mxu0
        %1159 = vdwg.mxu0
        %v1160 = vmul.f32 %v1152, 0.15811388
        %v1161 = vmul.f32 %v1157, 0.15811388
        %v1162 = vsel %vm851, %v1160, -inf
        %v1163 = vsel %vm852, %v1161, -inf
        %v1164 = vsel %vm949, %v1162, -inf
        %1165 = vmax.xlane.f32.xlu0 %v1164
        %v1166 = vpop.xlane.xlu0 %1165
        %v1167 = vsel %vm949, %v1163, -inf
        %1168 = vmax.xlane.f32.xlu0 %v1167
        %v1169 = vpop.xlane.xlu0 %1168
        %v1170 = vsub.f32 %v1162, %v1166
        %v1171 = vsub.f32 %v1163, %v1169
        %v1172 = vmul.f32 %v1170, 1.442695
        %v1173 = vpow.pop %v1172
        %v1174 = vmul.f32 %v1171, 1.442695
        %v1175 = vpow.pop %v1174
        %v1176 = vsel %vm949, %v1173, 0.0
        %1177 = vadd.xlane.f32.xlu0 %v1176
        %v1178 = vpop.xlane.xlu0 %1177
        %v1179 = vsel %vm949, %v1175, 0.0
        %1180 = vadd.xlane.f32.xlu0 %v1179
        %v1181 = vpop.xlane.xlu0 %1180
        %v1182 = vrcp.pop %v1178
        %v1183 = vrcp.pop %v1181
        %v1184 = vmul.f32 %v1173, %v1182
        %v1185 = vmul.f32 %v1175, %v1183
        %1186 = vrot.lane.b32.xlu0 %v763, 72
        %v1187 = vpop.permute.xlu0 %1186
        %1188 = vrot.lane.b32.xlu0 %v769, 72
        %v1189 = vpop.permute.xlu0 %1188
        %v1193 = vsel %vm949, %v1184, 0
        %v1196 = vsel %vm949, %v1185, 0
        %1198 = vmatprep.subr.mxu0 0.0
        %1199 = vmatpush1.msra.mxu0 %v1187
        %1200 = vmatprep.subr.mxu0 0.0
        %1201 = vmatpush1.msra.mxu0 %v1189
        %1202 = vmatprep.subr.mxu0 0.0
        %1203 = vmatpush1.msra.mxu0 0.0
        %1204 = vmatprep.subr.mxu0 0.0
        %1205 = vmatpush1.msra.mxu0 0.0
        %1206 = vmatprep.subr.mxu0 0.0
        %1207 = vmatpush1.msra.mxu0 0.0
        %1208 = vmatprep.subr.mxu0 0.0
        %1209 = vmatpush1.msra.mxu0 0.0
        %1210 = vmatprep.subr.mxu0 0.0
        %1211 = vmatpush1.msra.mxu0 0.0
        %1212 = vmatprep.subr.mxu0 0.0
        %1213 = vmatpush1.msra.mxu0 0.0
        %1214 = vmatprep.subr.mxu0 0.0
        %1215 = vmatpush1.msra.mxu0 0.0
        %1216 = vmatprep.subr.mxu0 0.0
        %1217 = vmatpush1.msra.mxu0 0.0
        %1218 = vmatprep.subr.mxu0 0.0
        %1219 = vmatpush1.msra.mxu0 0.0
        %1220 = vmatprep.subr.mxu0 0.0
        %1221 = vmatpush1.msra.mxu0 0.0
        %1222 = vmatprep.subr.mxu0 0.0
        %1223 = vmatpush1.msra.mxu0 0.0
        %1224 = vmatprep.subr.mxu0 0.0
        %1225 = vmatpush1.msra.mxu0 0.0
        %1226 = vmatprep.subr.mxu0 0.0
        %1227 = vmatpush1.msra.mxu0 0.0
        %1228 = vmatprep.subr.mxu0 0.0
        %1229 = vmatpush1.msra.mxu0 0.0
        %1230 = vmatprep.subr.mxu0 0.0
        %1231 = vmatpush1.msra.mxu0 0.0
        %1232 = vmatprep.subr.mxu0 0.0
        %1233 = vmatpush1.msra.mxu0 0.0
        %1234 = vmatprep.subr.mxu0 0.0
        %1235 = vmatpush1.msra.mxu0 0.0
        %1236 = vmatprep.subr.mxu0 0.0
        %1237 = vmatpush1.msra.mxu0 0.0
        %1238 = vmatprep.subr.mxu0 0.0
        %1239 = vmatpush1.msra.mxu0 0.0
        %1240 = vmatprep.subr.mxu0 0.0
        %1241 = vmatpush1.msra.mxu0 0.0
        %1242 = vmatprep.subr.mxu0 0.0
        %1243 = vmatpush1.msra.mxu0 0.0
        %1244 = vmatprep.subr.mxu0 0.0
        %1245 = vmatpush1.msra.mxu0 0.0
        %1246 = vmatprep.subr.mxu0 0.0
        %1247 = vmatpush1.msra.mxu0 0.0
        %1248 = vmatprep.subr.mxu0 0.0
        %1249 = vmatpush1.msra.mxu0 0.0
        %1250 = vmatprep.subr.mxu0 0.0
        %1251 = vmatpush1.msra.mxu0 0.0
        %1252 = vmatprep.subr.mxu0 0.0
        %1253 = vmatpush1.msra.mxu0 0.0
        %1254 = vmatprep.subr.mxu0 0.0
        %1255 = vmatpush1.msra.mxu0 0.0
        %1256 = vmatprep.subr.mxu0 0.0
        %1257 = vmatpush1.msra.mxu0 0.0
        %1258 = vmatprep.subr.mxu0 0.0
        %1259 = vmatpush1.msra.mxu0 0.0
        %1260 = vmatprep.subr.mxu0 0.0
        %1261 = vmatpush1.msra.mxu0 0.0
        %1262 = vmatprep.mubr.f32.mxu0 0.0
        %1263 = vmatmul.mubr.f32.gmra.mrb[0].mxu0 %v1193
        %v1264 = vpop.f32.mrb[0].mxu0
        %v1265 = vadd.f32 0.0, %v1264
        %v1266 = vpop.f32.mrb[0].mxu0
        %1267 = vmatprep.mubr.f32.mxu0 0.0
        %1268 = vmatmul.mubr.f32.gmra.mrb[0].mxu0 %v1196
        %v1269 = vpop.f32.mrb[0].mxu0
        %v1270 = vadd.f32 0.0, %v1269
        %v1271 = vpop.f32.mrb[0].mxu0
        %1272 = vdwg.mxu0
        %1273 = vrot.lane.b32.xlu0 %v684, 48
        %v1274 = vpop.permute.xlu0 %1273
        %1275 = vrot.lane.b32.xlu0 %v690, 48
        %v1276 = vpop.permute.xlu0 %1275
        %1277 = vrot.lane.b32.xlu0 %v761, 104
        %v1278 = vpop.permute.xlu0 %1277
        %1279 = vrot.lane.b32.xlu0 %v767, 104
        %v1280 = vpop.permute.xlu0 %1279
        %v1281 = vsel %vm859, %v1274, 0
        %v1283 = vsel %vm859, %v1276, 0
        %v1285 = vsel %vm859, %v1278, 0
        %v1287 = vsel %vm859, %v1280, 0
        %1289 = vmatprep.subr.mxu0 0.0
        %1290 = vmatpush1.xpose.msra.mxu0 %v1285
        %1291 = vmatprep.subr.mxu0 0.0
        %1292 = vmatpush1.xpose.msra.mxu0 %v1287
        %1293 = vmatprep.subr.mxu0 0.0
        %1294 = vmatpush1.xpose.msra.mxu0 0.0
        %1295 = vmatprep.subr.mxu0 0.0
        %1296 = vmatpush1.xpose.msra.mxu0 0.0
        %1297 = vmatprep.subr.mxu0 0.0
        %1298 = vmatpush1.xpose.msra.mxu0 0.0
        %1299 = vmatprep.subr.mxu0 0.0
        %1300 = vmatpush1.xpose.msra.mxu0 0.0
        %1301 = vmatprep.subr.mxu0 0.0
        %1302 = vmatpush1.xpose.msra.mxu0 0.0
        %1303 = vmatprep.subr.mxu0 0.0
        %1304 = vmatpush1.xpose.msra.mxu0 0.0
        %1305 = vmatprep.subr.mxu0 0.0
        %1306 = vmatpush1.xpose.msra.mxu0 0.0
        %1307 = vmatprep.subr.mxu0 0.0
        %1308 = vmatpush1.xpose.msra.mxu0 0.0
        %1309 = vmatprep.subr.mxu0 0.0
        %1310 = vmatpush1.xpose.msra.mxu0 0.0
        %1311 = vmatprep.subr.mxu0 0.0
        %1312 = vmatpush1.xpose.msra.mxu0 0.0
        %1313 = vmatprep.subr.mxu0 0.0
        %1314 = vmatpush1.xpose.msra.mxu0 0.0
        %1315 = vmatprep.subr.mxu0 0.0
        %1316 = vmatpush1.xpose.msra.mxu0 0.0
        %1317 = vmatprep.subr.mxu0 0.0
        %1318 = vmatpush1.xpose.msra.mxu0 0.0
        %1319 = vmatprep.subr.mxu0 0.0
        %1320 = vmatpush1.xpose.msra.mxu0 0.0
        %1321 = vmatprep.subr.mxu0 0.0
        %1322 = vmatpush1.xpose.msra.mxu0 0.0
        %1323 = vmatprep.subr.mxu0 0.0
        %1324 = vmatpush1.xpose.msra.mxu0 0.0
        %1325 = vmatprep.subr.mxu0 0.0
        %1326 = vmatpush1.xpose.msra.mxu0 0.0
        %1327 = vmatprep.subr.mxu0 0.0
        %1328 = vmatpush1.xpose.msra.mxu0 0.0
        %1329 = vmatprep.subr.mxu0 0.0
        %1330 = vmatpush1.xpose.msra.mxu0 0.0
        %1331 = vmatprep.subr.mxu0 0.0
        %1332 = vmatpush1.xpose.msra.mxu0 0.0
        %1333 = vmatprep.subr.mxu0 0.0
        %1334 = vmatpush1.xpose.msra.mxu0 0.0
        %1335 = vmatprep.subr.mxu0 0.0
        %1336 = vmatpush1.xpose.msra.mxu0 0.0
        %1337 = vmatprep.subr.mxu0 0.0
        %1338 = vmatpush1.xpose.msra.mxu0 0.0
        %1339 = vmatprep.subr.mxu0 0.0
        %1340 = vmatpush1.xpose.msra.mxu0 0.0
        %1341 = vmatprep.subr.mxu0 0.0
        %1342 = vmatpush1.xpose.msra.mxu0 0.0
        %1343 = vmatprep.subr.mxu0 0.0
        %1344 = vmatpush1.xpose.msra.mxu0 0.0
        %1345 = vmatprep.subr.mxu0 0.0
        %1346 = vmatpush1.xpose.msra.mxu0 0.0
        %1347 = vmatprep.subr.mxu0 0.0
        %1348 = vmatpush1.xpose.msra.mxu0 0.0
        %1349 = vmatprep.subr.mxu0 0.0
        %1350 = vmatpush1.xpose.msra.mxu0 0.0
        %1351 = vmatprep.subr.mxu0 0.0
        %1352 = vmatpush1.xpose.msra.mxu0 0.0
        %1353 = vmatprep.mubr.f32.mxu0 0.0
        %1354 = vmatmul.mubr.f32.gmra.mrb[0].mxu0 %v1281
        %v1355 = vpop.f32.mrb[0].mxu0
        %v1356 = vadd.f32 0.0, %v1355
        %v1357 = vpop.f32.mrb[0].mxu0
        %1358 = vmatprep.mubr.f32.mxu0 0.0
        %1359 = vmatmul.mubr.f32.gmra.mrb[0].mxu0 %v1283
        %v1360 = vpop.f32.mrb[0].mxu0
        %v1361 = vadd.f32 0.0, %v1360
        %v1362 = vpop.f32.mrb[0].mxu0
        %1363 = vdwg.mxu0
        %v1364 = vmul.f32 %v1356, 0.15811388
        %v1365 = vmul.f32 %v1361, 0.15811388
        %v1366 = vsel %vm851, %v1364, -inf
        %v1367 = vsel %vm852, %v1365, -inf
        %v1368 = vsel %vm949, %v1366, -inf
        %1369 = vmax.xlane.f32.xlu0 %v1368
        %v1370 = vpop.xlane.xlu0 %1369
        %v1371 = vsel %vm949, %v1367, -inf
        %1372 = vmax.xlane.f32.xlu0 %v1371
        %v1373 = vpop.xlane.xlu0 %1372
        %v1374 = vsub.f32 %v1366, %v1370
        %v1375 = vsub.f32 %v1367, %v1373
        %v1376 = vmul.f32 %v1374, 1.442695
        %v1377 = vpow.pop %v1376
        %v1378 = vmul.f32 %v1375, 1.442695
        %v1379 = vpow.pop %v1378
        %v1380 = vsel %vm949, %v1377, 0.0
        %1381 = vadd.xlane.f32.xlu0 %v1380
        %v1382 = vpop.xlane.xlu0 %1381
        %v1383 = vsel %vm949, %v1379, 0.0
        %1384 = vadd.xlane.f32.xlu0 %v1383
        %v1385 = vpop.xlane.xlu0 %1384
        %v1386 = vrcp.pop %v1382
        %v1387 = vrcp.pop %v1385
        %v1388 = vmul.f32 %v1377, %v1386
        %v1389 = vmul.f32 %v1379, %v1387
        %1392 = vrot.lane.b32.xlu0 %v763, 32
        %v1393 = vpop.permute.xlu0 %1392
        %1394 = vrot.lane.b32.xlu0 %v838, 32
        %v1395 = vpop.permute.xlu0 %1394
        %1396 = vrot.lane.b32.xlu0 %v769, 32
        %v1397 = vpop.permute.xlu0 %1396
        %1398 = vrot.lane.b32.xlu0 %v843, 32
        %v1399 = vpop.permute.xlu0 %1398
        %vm1400 = vcmask 261120
        %v1401 = vsel %vm1400, %v1393, %v1395
        %v1402 = vsel %vm1400, %v1397, %v1399
        %v1406 = vsel %vm949, %v1388, 0
        %v1409 = vsel %vm949, %v1389, 0
        %1411 = vmatprep.subr.mxu0 0.0
        %1412 = vmatpush1.msra.mxu0 %v1401
        %1413 = vmatprep.subr.mxu0 0.0
        %1414 = vmatpush1.msra.mxu0 %v1402
        %1415 = vmatprep.subr.mxu0 0.0
        %1416 = vmatpush1.msra.mxu0 0.0
        %1417 = vmatprep.subr.mxu0 0.0
        %1418 = vmatpush1.msra.mxu0 0.0
        %1419 = vmatprep.subr.mxu0 0.0
        %1420 = vmatpush1.msra.mxu0 0.0
        %1421 = vmatprep.subr.mxu0 0.0
        %1422 = vmatpush1.msra.mxu0 0.0
        %1423 = vmatprep.subr.mxu0 0.0
        %1424 = vmatpush1.msra.mxu0 0.0
        %1425 = vmatprep.subr.mxu0 0.0
        %1426 = vmatpush1.msra.mxu0 0.0
        %1427 = vmatprep.subr.mxu0 0.0
        %1428 = vmatpush1.msra.mxu0 0.0
        %1429 = vmatprep.subr.mxu0 0.0
        %1430 = vmatpush1.msra.mxu0 0.0
        %1431 = vmatprep.subr.mxu0 0.0
        %1432 = vmatpush1.msra.mxu0 0.0
        %1433 = vmatprep.subr.mxu0 0.0
        %1434 = vmatpush1.msra.mxu0 0.0
        %1435 = vmatprep.subr.mxu0 0.0
        %1436 = vmatpush1.msra.mxu0 0.0
        %1437 = vmatprep.subr.mxu0 0.0
        %1438 = vmatpush1.msra.mxu0 0.0
        %1439 = vmatprep.subr.mxu0 0.0
        %1440 = vmatpush1.msra.mxu0 0.0
        %1441 = vmatprep.subr.mxu0 0.0
        %1442 = vmatpush1.msra.mxu0 0.0
        %1443 = vmatprep.subr.mxu0 0.0
        %1444 = vmatpush1.msra.mxu0 0.0
        %1445 = vmatprep.subr.mxu0 0.0
        %1446 = vmatpush1.msra.mxu0 0.0
        %1447 = vmatprep.subr.mxu0 0.0
        %1448 = vmatpush1.msra.mxu0 0.0
        %1449 = vmatprep.subr.mxu0 0.0
        %1450 = vmatpush1.msra.mxu0 0.0
        %1451 = vmatprep.subr.mxu0 0.0
        %1452 = vmatpush1.msra.mxu0 0.0
        %1453 = vmatprep.subr.mxu0 0.0
        %1454 = vmatpush1.msra.mxu0 0.0
        %1455 = vmatprep.subr.mxu0 0.0
        %1456 = vmatpush1.msra.mxu0 0.0
        %1457 = vmatprep.subr.mxu0 0.0
        %1458 = vmatpush1.msra.mxu0 0.0
        %1459 = vmatprep.subr.mxu0 0.0
        %1460 = vmatpush1.msra.mxu0 0.0
        %1461 = vmatprep.subr.mxu0 0.0
        %1462 = vmatpush1.msra.mxu0 0.0
        %1463 = vmatprep.subr.mxu0 0.0
        %1464 = vmatpush1.msra.mxu0 0.0
        %1465 = vmatprep.subr.mxu0 0.0
        %1466 = vmatpush1.msra.mxu0 0.0
        %1467 = vmatprep.subr.mxu0 0.0
        %1468 = vmatpush1.msra.mxu0 0.0
        %1469 = vmatprep.subr.mxu0 0.0
        %1470 = vmatpush1.msra.mxu0 0.0
        %1471 = vmatprep.subr.mxu0 0.0
        %1472 = vmatpush1.msra.mxu0 0.0
        %1473 = vmatprep.subr.mxu0 0.0
        %1474 = vmatpush1.msra.mxu0 0.0
        %1475 = vmatprep.mubr.f32.mxu0 0.0
        %1476 = vmatmul.mubr.f32.gmra.mrb[0].mxu0 %v1406
        %v1477 = vpop.f32.mrb[0].mxu0
        %v1478 = vadd.f32 0.0, %v1477
        %v1479 = vpop.f32.mrb[0].mxu0
        %1480 = vmatprep.mubr.f32.mxu0 0.0
        %1481 = vmatmul.mubr.f32.gmra.mrb[0].mxu0 %v1409
        %v1482 = vpop.f32.mrb[0].mxu0
        %v1483 = vadd.f32 0.0, %v1482
        %v1484 = vpop.f32.mrb[0].mxu0
        %1485 = vdwg.mxu0
        %1486 = vrot.lane.b32.xlu0 %v684, 8
        %v1487 = vpop.permute.xlu0 %1486
        %1488 = vrot.lane.b32.xlu0 %v686, 8
        %v1489 = vpop.permute.xlu0 %1488
        %1490 = vrot.lane.b32.xlu0 %v690, 8
        %v1491 = vpop.permute.xlu0 %1490
        %1492 = vrot.lane.b32.xlu0 %v692, 8
        %v1493 = vpop.permute.xlu0 %1492
        %vm1494 = vcmask 64512
        %v1495 = vsel %vm1494, %v1487, %v1489
        %v1496 = vsel %vm1494, %v1491, %v1493
        %1497 = vrot.lane.b32.xlu0 %v761, 64
        %v1498 = vpop.permute.xlu0 %1497
        %1499 = vrot.lane.b32.xlu0 %v767, 64
        %v1500 = vpop.permute.xlu0 %1499
        %v1501 = vsel %vm859, %v1495, 0
        %v1503 = vsel %vm859, %v1496, 0
        %v1505 = vsel %vm859, %v1498, 0
        %v1507 = vsel %vm859, %v1500, 0
        %1509 = vmatprep.subr.mxu0 0.0
        %1510 = vmatpush1.xpose.msra.mxu0 %v1505
        %1511 = vmatprep.subr.mxu0 0.0
        %1512 = vmatpush1.xpose.msra.mxu0 %v1507
        %1513 = vmatprep.subr.mxu0 0.0
        %1514 = vmatpush1.xpose.msra.mxu0 0.0
        %1515 = vmatprep.subr.mxu0 0.0
        %1516 = vmatpush1.xpose.msra.mxu0 0.0
        %1517 = vmatprep.subr.mxu0 0.0
        %1518 = vmatpush1.xpose.msra.mxu0 0.0
        %1519 = vmatprep.subr.mxu0 0.0
        %1520 = vmatpush1.xpose.msra.mxu0 0.0
        %1521 = vmatprep.subr.mxu0 0.0
        %1522 = vmatpush1.xpose.msra.mxu0 0.0
        %1523 = vmatprep.subr.mxu0 0.0
        %1524 = vmatpush1.xpose.msra.mxu0 0.0
        %1525 = vmatprep.subr.mxu0 0.0
        %1526 = vmatpush1.xpose.msra.mxu0 0.0
        %1527 = vmatprep.subr.mxu0 0.0
        %1528 = vmatpush1.xpose.msra.mxu0 0.0
        %1529 = vmatprep.subr.mxu0 0.0
        %1530 = vmatpush1.xpose.msra.mxu0 0.0
        %1531 = vmatprep.subr.mxu0 0.0
        %1532 = vmatpush1.xpose.msra.mxu0 0.0
        %1533 = vmatprep.subr.mxu0 0.0
        %1534 = vmatpush1.xpose.msra.mxu0 0.0
        %1535 = vmatprep.subr.mxu0 0.0
        %1536 = vmatpush1.xpose.msra.mxu0 0.0
        %1537 = vmatprep.subr.mxu0 0.0
        %1538 = vmatpush1.xpose.msra.mxu0 0.0
        %1539 = vmatprep.subr.mxu0 0.0
        %1540 = vmatpush1.xpose.msra.mxu0 0.0
        %1541 = vmatprep.subr.mxu0 0.0
        %1542 = vmatpush1.xpose.msra.mxu0 0.0
        %1543 = vmatprep.subr.mxu0 0.0
        %1544 = vmatpush1.xpose.msra.mxu0 0.0
        %1545 = vmatprep.subr.mxu0 0.0
        %1546 = vmatpush1.xpose.msra.mxu0 0.0
        %1547 = vmatprep.subr.mxu0 0.0
        %1548 = vmatpush1.xpose.msra.mxu0 0.0
        %1549 = vmatprep.subr.mxu0 0.0
        %1550 = vmatpush1.xpose.msra.mxu0 0.0
        %1551 = vmatprep.subr.mxu0 0.0
        %1552 = vmatpush1.xpose.msra.mxu0 0.0
        %1553 = vmatprep.subr.mxu0 0.0
        %1554 = vmatpush1.xpose.msra.mxu0 0.0
        %1555 = vmatprep.subr.mxu0 0.0
        %1556 = vmatpush1.xpose.msra.mxu0 0.0
        %1557 = vmatprep.subr.mxu0 0.0
        %1558 = vmatpush1.xpose.msra.mxu0 0.0
        %1559 = vmatprep.subr.mxu0 0.0
        %1560 = vmatpush1.xpose.msra.mxu0 0.0
        %1561 = vmatprep.subr.mxu0 0.0
        %1562 = vmatpush1.xpose.msra.mxu0 0.0
        %1563 = vmatprep.subr.mxu0 0.0
        %1564 = vmatpush1.xpose.msra.mxu0 0.0
        %1565 = vmatprep.subr.mxu0 0.0
        %1566 = vmatpush1.xpose.msra.mxu0 0.0
        %1567 = vmatprep.subr.mxu0 0.0
        %1568 = vmatpush1.xpose.msra.mxu0 0.0
        %1569 = vmatprep.subr.mxu0 0.0
        %1570 = vmatpush1.xpose.msra.mxu0 0.0
        %1571 = vmatprep.subr.mxu0 0.0
        %1572 = vmatpush1.xpose.msra.mxu0 0.0
        %1573 = vmatprep.mubr.f32.mxu0 0.0
        %1574 = vmatmul.mubr.f32.gmra.mrb[0].mxu0 %v1501
        %v1575 = vpop.f32.mrb[0].mxu0
        %v1576 = vadd.f32 0.0, %v1575
        %v1577 = vpop.f32.mrb[0].mxu0
        %1578 = vmatprep.mubr.f32.mxu0 0.0
        %1579 = vmatmul.mubr.f32.gmra.mrb[0].mxu0 %v1503
        %v1580 = vpop.f32.mrb[0].mxu0
        %v1581 = vadd.f32 0.0, %v1580
        %v1582 = vpop.f32.mrb[0].mxu0
        %1583 = vdwg.mxu0
        %v1584 = vmul.f32 %v1576, 0.15811388
        %v1585 = vmul.f32 %v1581, 0.15811388
        %v1586 = vsel %vm851, %v1584, -inf
        %v1587 = vsel %vm852, %v1585, -inf
        %v1588 = vsel %vm949, %v1586, -inf
        %1589 = vmax.xlane.f32.xlu0 %v1588
        %v1590 = vpop.xlane.xlu0 %1589
        %v1591 = vsel %vm949, %v1587, -inf
        %1592 = vmax.xlane.f32.xlu0 %v1591
        %v1593 = vpop.xlane.xlu0 %1592
        %v1594 = vsub.f32 %v1586, %v1590
        %v1595 = vsub.f32 %v1587, %v1593
        %v1596 = vmul.f32 %v1594, 1.442695
        %v1597 = vpow.pop %v1596
        %v1598 = vmul.f32 %v1595, 1.442695
        %v1599 = vpow.pop %v1598
        %v1600 = vsel %vm949, %v1597, 0.0
        %1601 = vadd.xlane.f32.xlu0 %v1600
        %v1602 = vpop.xlane.xlu0 %1601
        %v1603 = vsel %vm949, %v1599, 0.0
        %1604 = vadd.xlane.f32.xlu0 %v1603
        %v1605 = vpop.xlane.xlu0 %1604
        %v1606 = vrcp.pop %v1602
        %v1607 = vrcp.pop %v1605
        %v1608 = vmul.f32 %v1597, %v1606
        %v1609 = vmul.f32 %v1599, %v1607
        %1610 = vrot.lane.b32.xlu0 %v838, 120
        %v1611 = vpop.permute.xlu0 %1610
        %1612 = vrot.lane.b32.xlu0 %v843, 120
        %v1613 = vpop.permute.xlu0 %1612
        %v1617 = vsel %vm949, %v1608, 0
        %v1620 = vsel %vm949, %v1609, 0
        %1622 = vmatprep.subr.mxu0 0.0
        %1623 = vmatpush1.msra.mxu0 %v1611
        %1624 = vmatprep.subr.mxu0 0.0
        %1625 = vmatpush1.msra.mxu0 %v1613
        %1626 = vmatprep.subr.mxu0 0.0
        %1627 = vmatpush1.msra.mxu0 0.0
        %1628 = vmatprep.subr.mxu0 0.0
        %1629 = vmatpush1.msra.mxu0 0.0
        %1630 = vmatprep.subr.mxu0 0.0
        %1631 = vmatpush1.msra.mxu0 0.0
        %1632 = vmatprep.subr.mxu0 0.0
        %1633 = vmatpush1.msra.mxu0 0.0
        %1634 = vmatprep.subr.mxu0 0.0
        %1635 = vmatpush1.msra.mxu0 0.0
        %1636 = vmatprep.subr.mxu0 0.0
        %1637 = vmatpush1.msra.mxu0 0.0
        %1638 = vmatprep.subr.mxu0 0.0
        %1639 = vmatpush1.msra.mxu0 0.0
        %1640 = vmatprep.subr.mxu0 0.0
        %1641 = vmatpush1.msra.mxu0 0.0
        %1642 = vmatprep.subr.mxu0 0.0
        %1643 = vmatpush1.msra.mxu0 0.0
        %1644 = vmatprep.subr.mxu0 0.0
        %1645 = vmatpush1.msra.mxu0 0.0
        %1646 = vmatprep.subr.mxu0 0.0
        %1647 = vmatpush1.msra.mxu0 0.0
        %1648 = vmatprep.subr.mxu0 0.0
        %1649 = vmatpush1.msra.mxu0 0.0
        %1650 = vmatprep.subr.mxu0 0.0
        %1651 = vmatpush1.msra.mxu0 0.0
        %1652 = vmatprep.subr.mxu0 0.0
        %1653 = vmatpush1.msra.mxu0 0.0
        %1654 = vmatprep.subr.mxu0 0.0
        %1655 = vmatpush1.msra.mxu0 0.0
        %1656 = vmatprep.subr.mxu0 0.0
        %1657 = vmatpush1.msra.mxu0 0.0
        %1658 = vmatprep.subr.mxu0 0.0
        %1659 = vmatpush1.msra.mxu0 0.0
        %1660 = vmatprep.subr.mxu0 0.0
        %1661 = vmatpush1.msra.mxu0 0.0
        %1662 = vmatprep.subr.mxu0 0.0
        %1663 = vmatpush1.msra.mxu0 0.0
        %1664 = vmatprep.subr.mxu0 0.0
        %1665 = vmatpush1.msra.mxu0 0.0
        %1666 = vmatprep.subr.mxu0 0.0
        %1667 = vmatpush1.msra.mxu0 0.0
        %1668 = vmatprep.subr.mxu0 0.0
        %1669 = vmatpush1.msra.mxu0 0.0
        %1670 = vmatprep.subr.mxu0 0.0
        %1671 = vmatpush1.msra.mxu0 0.0
        %1672 = vmatprep.subr.mxu0 0.0
        %1673 = vmatpush1.msra.mxu0 0.0
        %1674 = vmatprep.subr.mxu0 0.0
        %1675 = vmatpush1.msra.mxu0 0.0
        %1676 = vmatprep.subr.mxu0 0.0
        %1677 = vmatpush1.msra.mxu0 0.0
        %1678 = vmatprep.subr.mxu0 0.0
        %1679 = vmatpush1.msra.mxu0 0.0
        %1680 = vmatprep.subr.mxu0 0.0
        %1681 = vmatpush1.msra.mxu0 0.0
        %1682 = vmatprep.subr.mxu0 0.0
        %1683 = vmatpush1.msra.mxu0 0.0
        %1684 = vmatprep.subr.mxu0 0.0
        %1685 = vmatpush1.msra.mxu0 0.0
        %1686 = vmatprep.mubr.f32.mxu0 0.0
        %1687 = vmatmul.mubr.f32.gmra.mrb[0].mxu0 %v1617
        %v1688 = vpop.f32.mrb[0].mxu0
        %v1689 = vadd.f32 0.0, %v1688
        %v1690 = vpop.f32.mrb[0].mxu0
        %1691 = vmatprep.mubr.f32.mxu0 0.0
        %1692 = vmatmul.mubr.f32.gmra.mrb[0].mxu0 %v1620
        %v1693 = vpop.f32.mrb[0].mxu0
        %v1694 = vadd.f32 0.0, %v1693
        %v1695 = vpop.f32.mrb[0].mxu0
        %1696 = vdwg.mxu0
        %1697 = vrot.lane.b32.xlu0 %v686, 96
        %v1698 = vpop.permute.xlu0 %1697
        %1699 = vrot.lane.b32.xlu0 %v692, 96
        %v1700 = vpop.permute.xlu0 %1699
        %1701 = vrot.lane.b32.xlu0 %v761, 24
        %v1702 = vpop.permute.xlu0 %1701
        %1703 = vrot.lane.b32.xlu0 %v763, 24
        %v1704 = vpop.permute.xlu0 %1703
        %1705 = vrot.lane.b32.xlu0 %v767, 24
        %v1706 = vpop.permute.xlu0 %1705
        %1707 = vrot.lane.b32.xlu0 %v769, 24
        %v1708 = vpop.permute.xlu0 %1707
        %vm1709 = vcmask 195584
        %v1710 = vsel %vm1709, %v1702, %v1704
        %v1711 = vsel %vm1709, %v1706, %v1708
        %v1712 = vsel %vm859, %v1698, 0
        %v1714 = vsel %vm859, %v1700, 0
        %v1716 = vsel %vm859, %v1710, 0
        %v1718 = vsel %vm859, %v1711, 0
        %1720 = vmatprep.subr.mxu0 0.0
        %1721 = vmatpush1.xpose.msra.mxu0 %v1716
        %1722 = vmatprep.subr.mxu0 0.0
        %1723 = vmatpush1.xpose.msra.mxu0 %v1718
        %1724 = vmatprep.subr.mxu0 0.0
        %1725 = vmatpush1.xpose.msra.mxu0 0.0
        %1726 = vmatprep.subr.mxu0 0.0
        %1727 = vmatpush1.xpose.msra.mxu0 0.0
        %1728 = vmatprep.subr.mxu0 0.0
        %1729 = vmatpush1.xpose.msra.mxu0 0.0
        %1730 = vmatprep.subr.mxu0 0.0
        %1731 = vmatpush1.xpose.msra.mxu0 0.0
        %1732 = vmatprep.subr.mxu0 0.0
        %1733 = vmatpush1.xpose.msra.mxu0 0.0
        %1734 = vmatprep.subr.mxu0 0.0
        %1735 = vmatpush1.xpose.msra.mxu0 0.0
        %1736 = vmatprep.subr.mxu0 0.0
        %1737 = vmatpush1.xpose.msra.mxu0 0.0
        %1738 = vmatprep.subr.mxu0 0.0
        %1739 = vmatpush1.xpose.msra.mxu0 0.0
        %1740 = vmatprep.subr.mxu0 0.0
        %1741 = vmatpush1.xpose.msra.mxu0 0.0
        %1742 = vmatprep.subr.mxu0 0.0
        %1743 = vmatpush1.xpose.msra.mxu0 0.0
        %1744 = vmatprep.subr.mxu0 0.0
        %1745 = vmatpush1.xpose.msra.mxu0 0.0
        %1746 = vmatprep.subr.mxu0 0.0
        %1747 = vmatpush1.xpose.msra.mxu0 0.0
        %1748 = vmatprep.subr.mxu0 0.0
        %1749 = vmatpush1.xpose.msra.mxu0 0.0
        %1750 = vmatprep.subr.mxu0 0.0
        %1751 = vmatpush1.xpose.msra.mxu0 0.0
        %1752 = vmatprep.subr.mxu0 0.0
        %1753 = vmatpush1.xpose.msra.mxu0 0.0
        %1754 = vmatprep.subr.mxu0 0.0
        %1755 = vmatpush1.xpose.msra.mxu0 0.0
        %1756 = vmatprep.subr.mxu0 0.0
        %1757 = vmatpush1.xpose.msra.mxu0 0.0
        %1758 = vmatprep.subr.mxu0 0.0
        %1759 = vmatpush1.xpose.msra.mxu0 0.0
        %1760 = vmatprep.subr.mxu0 0.0
        %1761 = vmatpush1.xpose.msra.mxu0 0.0
        %1762 = vmatprep.subr.mxu0 0.0
        %1763 = vmatpush1.xpose.msra.mxu0 0.0
        %1764 = vmatprep.subr.mxu0 0.0
        %1765 = vmatpush1.xpose.msra.mxu0 0.0
        %1766 = vmatprep.subr.mxu0 0.0
        %1767 = vmatpush1.xpose.msra.mxu0 0.0
        %1768 = vmatprep.subr.mxu0 0.0
        %1769 = vmatpush1.xpose.msra.mxu0 0.0
        %1770 = vmatprep.subr.mxu0 0.0
        %1771 = vmatpush1.xpose.msra.mxu0 0.0
        %1772 = vmatprep.subr.mxu0 0.0
        %1773 = vmatpush1.xpose.msra.mxu0 0.0
        %1774 = vmatprep.subr.mxu0 0.0
        %1775 = vmatpush1.xpose.msra.mxu0 0.0
        %1776 = vmatprep.subr.mxu0 0.0
        %1777 = vmatpush1.xpose.msra.mxu0 0.0
        %1778 = vmatprep.subr.mxu0 0.0
        %1779 = vmatpush1.xpose.msra.mxu0 0.0
        %1780 = vmatprep.subr.mxu0 0.0
        %1781 = vmatpush1.xpose.msra.mxu0 0.0
        %1782 = vmatprep.subr.mxu0 0.0
        %1783 = vmatpush1.xpose.msra.mxu0 0.0
        %1784 = vmatprep.mubr.f32.mxu0 0.0
        %1785 = vmatmul.mubr.f32.gmra.mrb[0].mxu0 %v1712
        %v1786 = vpop.f32.mrb[0].mxu0
        %v1787 = vadd.f32 0.0, %v1786
        %v1788 = vpop.f32.mrb[0].mxu0
        %1789 = vmatprep.mubr.f32.mxu0 0.0
        %1790 = vmatmul.mubr.f32.gmra.mrb[0].mxu0 %v1714
        %v1791 = vpop.f32.mrb[0].mxu0
        %v1792 = vadd.f32 0.0, %v1791
        %v1793 = vpop.f32.mrb[0].mxu0
        %1794 = vdwg.mxu0
        %v1795 = vmul.f32 %v1787, 0.15811388
        %v1796 = vmul.f32 %v1792, 0.15811388
        %v1797 = vsel %vm851, %v1795, -inf
        %v1798 = vsel %vm852, %v1796, -inf
        %v1799 = vsel %vm949, %v1797, -inf
        %1800 = vmax.xlane.f32.xlu0 %v1799
        %v1801 = vpop.xlane.xlu0 %1800
        %v1802 = vsel %vm949, %v1798, -inf
        %1803 = vmax.xlane.f32.xlu0 %v1802
        %v1804 = vpop.xlane.xlu0 %1803
        %v1805 = vsub.f32 %v1797, %v1801
        %v1806 = vsub.f32 %v1798, %v1804
        %v1807 = vmul.f32 %v1805, 1.442695
        %v1808 = vpow.pop %v1807
        %v1809 = vmul.f32 %v1806, 1.442695
        %v1810 = vpow.pop %v1809
        %v1811 = vsel %vm949, %v1808, 0.0
        %1812 = vadd.xlane.f32.xlu0 %v1811
        %v1813 = vpop.xlane.xlu0 %1812
        %v1814 = vsel %vm949, %v1810, 0.0
        %1815 = vadd.xlane.f32.xlu0 %v1814
        %v1816 = vpop.xlane.xlu0 %1815
        %v1817 = vrcp.pop %v1813
        %v1818 = vrcp.pop %v1816
        %v1819 = vmul.f32 %v1808, %v1817
        %v1820 = vmul.f32 %v1810, %v1818
        %1821 = vrot.lane.b32.xlu0 %v838, 80
        %v1822 = vpop.permute.xlu0 %1821
        %1823 = vrot.lane.b32.xlu0 %v843, 80
        %v1824 = vpop.permute.xlu0 %1823
        %v1828 = vsel %vm949, %v1819, 0
        %v1831 = vsel %vm949, %v1820, 0
        %1833 = vmatprep.subr.mxu0 0.0
        %1834 = vmatpush1.msra.mxu0 %v1822
        %1835 = vmatprep.subr.mxu0 0.0
        %1836 = vmatpush1.msra.mxu0 %v1824
        %1837 = vmatprep.subr.mxu0 0.0
        %1838 = vmatpush1.msra.mxu0 0.0
        %1839 = vmatprep.subr.mxu0 0.0
        %1840 = vmatpush1.msra.mxu0 0.0
        %1841 = vmatprep.subr.mxu0 0.0
        %1842 = vmatpush1.msra.mxu0 0.0
        %1843 = vmatprep.subr.mxu0 0.0
        %1844 = vmatpush1.msra.mxu0 0.0
        %1845 = vmatprep.subr.mxu0 0.0
        %1846 = vmatpush1.msra.mxu0 0.0
        %1847 = vmatprep.subr.mxu0 0.0
        %1848 = vmatpush1.msra.mxu0 0.0
        %1849 = vmatprep.subr.mxu0 0.0
        %1850 = vmatpush1.msra.mxu0 0.0
        %1851 = vmatprep.subr.mxu0 0.0
        %1852 = vmatpush1.msra.mxu0 0.0
        %1853 = vmatprep.subr.mxu0 0.0
        %1854 = vmatpush1.msra.mxu0 0.0
        %1855 = vmatprep.subr.mxu0 0.0
        %1856 = vmatpush1.msra.mxu0 0.0
        %1857 = vmatprep.subr.mxu0 0.0
        %1858 = vmatpush1.msra.mxu0 0.0
        %1859 = vmatprep.subr.mxu0 0.0
        %1860 = vmatpush1.msra.mxu0 0.0
        %1861 = vmatprep.subr.mxu0 0.0
        %1862 = vmatpush1.msra.mxu0 0.0
        %1863 = vmatprep.subr.mxu0 0.0
        %1864 = vmatpush1.msra.mxu0 0.0
        %1865 = vmatprep.subr.mxu0 0.0
        %1866 = vmatpush1.msra.mxu0 0.0
        %1867 = vmatprep.subr.mxu0 0.0
        %1868 = vmatpush1.msra.mxu0 0.0
        %1869 = vmatprep.subr.mxu0 0.0
        %1870 = vmatpush1.msra.mxu0 0.0
        %1871 = vmatprep.subr.mxu0 0.0
        %1872 = vmatpush1.msra.mxu0 0.0
        %1873 = vmatprep.subr.mxu0 0.0
        %1874 = vmatpush1.msra.mxu0 0.0
        %1875 = vmatprep.subr.mxu0 0.0
        %1876 = vmatpush1.msra.mxu0 0.0
        %1877 = vmatprep.subr.mxu0 0.0
        %1878 = vmatpush1.msra.mxu0 0.0
        %1879 = vmatprep.subr.mxu0 0.0
        %1880 = vmatpush1.msra.mxu0 0.0
        %1881 = vmatprep.subr.mxu0 0.0
        %1882 = vmatpush1.msra.mxu0 0.0
        %1883 = vmatprep.subr.mxu0 0.0
        %1884 = vmatpush1.msra.mxu0 0.0
        %1885 = vmatprep.subr.mxu0 0.0
        %1886 = vmatpush1.msra.mxu0 0.0
        %1887 = vmatprep.subr.mxu0 0.0
        %1888 = vmatpush1.msra.mxu0 0.0
        %1889 = vmatprep.subr.mxu0 0.0
        %1890 = vmatpush1.msra.mxu0 0.0
        %1891 = vmatprep.subr.mxu0 0.0
        %1892 = vmatpush1.msra.mxu0 0.0
        %1893 = vmatprep.subr.mxu0 0.0
        %1894 = vmatpush1.msra.mxu0 0.0
        %1895 = vmatprep.subr.mxu0 0.0
        %1896 = vmatpush1.msra.mxu0 0.0
        %1897 = vmatprep.mubr.f32.mxu0 0.0
        %1898 = vmatmul.mubr.f32.gmra.mrb[0].mxu0 %v1828
        %v1899 = vpop.f32.mrb[0].mxu0
        %v1900 = vadd.f32 0.0, %v1899
        %v1901 = vpop.f32.mrb[0].mxu0
        %1902 = vmatprep.mubr.f32.mxu0 0.0
        %1903 = vmatmul.mubr.f32.gmra.mrb[0].mxu0 %v1831
        %v1904 = vpop.f32.mrb[0].mxu0
        %v1905 = vadd.f32 0.0, %v1904
        %v1906 = vpop.f32.mrb[0].mxu0
        %1907 = vdwg.mxu0
        %1910 = vrot.lane.b32.xlu0 %v1265, 40
        %v1911 = vpop.permute.xlu0 %1910
        %1912 = vrot.lane.b32.xlu0 %v1270, 40
        %v1913 = vpop.permute.xlu0 %1912
        %1918 = vrot.lane.b32.xlu0 %v1478, 80
        %v1919 = vpop.permute.xlu0 %1918
        %1920 = vrot.lane.b32.xlu0 %v1483, 80
        %v1921 = vpop.permute.xlu0 %1920
        %1926 = vrot.lane.b32.xlu0 %v1689, 120
        %v1927 = vpop.permute.xlu0 %1926
        %1928 = vrot.lane.b32.xlu0 %v1694, 120
        %v1929 = vpop.permute.xlu0 %1928
        %1934 = vrot.lane.b32.xlu0 %v1900, 32
        %v1935 = vpop.permute.xlu0 %1934
        %1936 = vrot.lane.b32.xlu0 %v1905, 32
        %v1937 = vpop.permute.xlu0 %1936
        %v1940 = vsel %vm859, %v1053, %v1911
        %v1941 = vsel %vm859, %v1058, %v1913
        %vm1942 = vcmask 654336
        %v1943 = vsel %vm1942, %v1940, %v1919
        %v1944 = vsel %vm1942, %v1941, %v1921
        %vm1945 = vcmask 982016
        %v1946 = vsel %vm1945, %v1943, %v1927
        %v1947 = vsel %vm1945, %v1944, %v1929
        %v1948 = vsel %vm1400, %v1927, %v1935
        %v1949 = vsel %vm1400, %v1929, %v1937
        %v1950 = vld [vmem:[%s4] sm:$0xff]
        %v1951 = vld [vmem:[%s4 + $0x8] sm:$0xff]
        %v1952 = vld [vmem:[%s4 + $0x10] sm:$0xff]
        %v1953 = vld [vmem:[%s4 + $0x18] sm:$0xff]
        %v1954 = vld [vmem:[%s4 + $0x20] sm:$0xff]
        %v1955 = vld [vmem:[%s4 + $0x28] sm:$0xff]
        %v1956 = vld [vmem:[%s4 + $0x30] sm:$0xff]
        %v1957 = vld [vmem:[%s4 + $0x38] sm:$0xff]
        %v1958 = vld [vmem:[%s4 + $0x40] sm:$0xff]
        %v1959 = vld [vmem:[%s4 + $0x48] sm:$0xff]
        %v1960 = vld [vmem:[%s4 + $0x50] sm:$0xff]
        %v1961 = vld [vmem:[%s4 + $0x58] sm:$0xff]
        %v1962 = vld [vmem:[%s4 + $0x60] sm:$0xff]
        %v1963 = vld [vmem:[%s4 + $0x68] sm:$0xff]
        %v1964 = vld [vmem:[%s4 + $0x70] sm:$0xff]
        %v1965 = vld [vmem:[%s4 + $0x78] sm:$0xff]
        %v1966 = vld [vmem:[%s4 + $0x80] sm:$0xff]
        %v1967 = vld [vmem:[%s4 + $0x88] sm:$0xff]
        %v1968 = vld [vmem:[%s4 + $0x90] sm:$0xff]
        %v1969 = vld [vmem:[%s4 + $0x98] sm:$0xff]
        %v1970 = vld [vmem:[%s4 + $0xa0] sm:$0xff]
        %v1971 = vld [vmem:[%s4 + $0xa8] sm:$0xff]
        %v1972 = vld [vmem:[%s4 + $0xb0] sm:$0xff]
        %v1973 = vld [vmem:[%s4 + $0xb8] sm:$0xff]
        %v1974 = vld [vmem:[%s4 + $0xc0] sm:$0xff]
        %v1975 = vld [vmem:[%s4 + $0xc8] sm:$0xff]
        %v1976 = vld [vmem:[%s4 + $0xd0] sm:$0xff]
        %v1977 = vld [vmem:[%s4 + $0xd8] sm:$0xff]
        %v1978 = vld [vmem:[%s4 + $0xe0] sm:$0xff]
        %v1979 = vld [vmem:[%s4 + $0xe8] sm:$0xff]
        %v1980 = vld [vmem:[%s4 + $0xf0] sm:$0xff]
        %v1981 = vld [vmem:[%s4 + $0xf8] sm:$0xff]
        %v1982 = vld [vmem:[%s4 + $0x100] sm:$0xff]
        %v1983 = vld [vmem:[%s4 + $0x108] sm:$0xff]
        %v1984 = vld [vmem:[%s4 + $0x110] sm:$0xff]
        %v1985 = vld [vmem:[%s4 + $0x118] sm:$0xff]
        %v1986 = vld [vmem:[%s4 + $0x120] sm:$0xff]
        %v1987 = vld [vmem:[%s4 + $0x128] sm:$0xff]
        %v1988 = vld [vmem:[%s4 + $0x130] sm:$0xff]
        %v1989 = vld [vmem:[%s4 + $0x138] sm:$0xff]
        %v1990 = vld [vmem:[%s4 + $0x140] sm:$0xff]
        %v1991 = vld [vmem:[%s4 + $0x148] sm:$0xff]
        %v1992 = vld [vmem:[%s4 + $0x150] sm:$0xff]
        %v1993 = vld [vmem:[%s4 + $0x158] sm:$0xff]
        %v1994 = vld [vmem:[%s4 + $0x160] sm:$0xff]
        %v1995 = vld [vmem:[%s4 + $0x168] sm:$0xff]
        %v1996 = vld [vmem:[%s4 + $0x170] sm:$0xff]
        %v1997 = vld [vmem:[%s4 + $0x178] sm:$0xff]
        %v1998 = vld [vmem:[%s4 + $0x180] sm:$0xff]
        %v1999 = vld [vmem:[%s4 + $0x188] sm:$0xff]
        %v2000 = vld [vmem:[%s5] sm:$0x3]
        %v2002 = vlaneseq
        %v2003 = vshrl.u32 %v2002, 7
        %v2004 = vsub.s32 0, %v2003
        %v2005 = vrot.slane %v2000, %v2004
        %v2006 = vlaneseq
        %v2007 = vshrl.u32 %v2006, 7
        %v2008 = vsub.s32 1, %v2007
        %v2009 = vrot.slane %v2000, %v2008
        %v2013 = vsel %vm418, %v1948, 0
        %v2016 = vsel %vm418, %v1949, 0
        %2018 = vmatprep.subr.mxu0 %v1951
        %2019 = vmatpush1.msra.mxu0 %v1950
        %2020 = vmatprep.subr.mxu0 %v1953
        %2021 = vmatpush1.msra.mxu0 %v1952
        %2022 = vmatprep.subr.mxu0 %v1955
        %2023 = vmatpush1.msra.mxu0 %v1954
        %2024 = vmatprep.subr.mxu0 %v1957
        %2025 = vmatpush1.msra.mxu0 %v1956
        %2026 = vmatprep.subr.mxu0 %v1959
        %2027 = vmatpush1.msra.mxu0 %v1958
        %2028 = vmatprep.subr.mxu0 %v1961
        %2029 = vmatpush1.msra.mxu0 %v1960
        %2030 = vmatprep.subr.mxu0 %v1963
        %2031 = vmatpush1.msra.mxu0 %v1962
        %2032 = vmatprep.subr.mxu0 %v1965
        %2033 = vmatpush1.msra.mxu0 %v1964
        %2034 = vmatprep.subr.mxu0 %v1967
        %2035 = vmatpush1.msra.mxu0 %v1966
        %2036 = vmatprep.subr.mxu0 %v1969
        %2037 = vmatpush1.msra.mxu0 %v1968
        %2038 = vmatprep.subr.mxu0 %v1971
        %2039 = vmatpush1.msra.mxu0 %v1970
        %2040 = vmatprep.subr.mxu0 %v1973
        %2041 = vmatpush1.msra.mxu0 %v1972
        %2042 = vmatprep.subr.mxu0 %v1975
        %2043 = vmatpush1.msra.mxu0 %v1974
        %2044 = vmatprep.subr.mxu0 %v1977
        %2045 = vmatpush1.msra.mxu0 %v1976
        %2046 = vmatprep.subr.mxu0 %v1979
        %2047 = vmatpush1.msra.mxu0 %v1978
        %2048 = vmatprep.subr.mxu0 %v1981
        %2049 = vmatpush1.msra.mxu0 %v1980
        %2050 = vmatprep.subr.mxu0 %v1983
        %2051 = vmatpush1.msra.mxu0 %v1982
        %2052 = vmatprep.subr.mxu0 %v1985
        %2053 = vmatpush1.msra.mxu0 %v1984
        %2054 = vmatprep.subr.mxu0 %v1987
        %2055 = vmatpush1.msra.mxu0 %v1986
        %2056 = vmatprep.subr.mxu0 %v1989
        %2057 = vmatpush1.msra.mxu0 %v1988
        %2058 = vmatprep.subr.mxu0 %v1991
        %2059 = vmatpush1.msra.mxu0 %v1990
        %2060 = vmatprep.subr.mxu0 %v1993
        %2061 = vmatpush1.msra.mxu0 %v1992
        %2062 = vmatprep.subr.mxu0 %v1995
        %2063 = vmatpush1.msra.mxu0 %v1994
        %2064 = vmatprep.subr.mxu0 %v1997
        %2065 = vmatpush1.msra.mxu0 %v1996
        %2066 = vmatprep.subr.mxu0 %v1999
        %2067 = vmatpush1.msra.mxu0 %v1998
        %2068 = vmatprep.subr.mxu0 0.0
        %2069 = vmatpush1.msra.mxu0 0.0
        %2070 = vmatprep.subr.mxu0 0.0
        %2071 = vmatpush1.msra.mxu0 0.0
        %2072 = vmatprep.subr.mxu0 0.0
        %2073 = vmatpush1.msra.mxu0 0.0
        %2074 = vmatprep.subr.mxu0 0.0
        %2075 = vmatpush1.msra.mxu0 0.0
        %2076 = vmatprep.subr.mxu0 0.0
        %2077 = vmatpush1.msra.mxu0 0.0
        %2078 = vmatprep.subr.mxu0 0.0
        %2079 = vmatpush1.msra.mxu0 0.0
        %2080 = vmatprep.subr.mxu0 0.0
        %2081 = vmatpush1.msra.mxu0 0.0
        %2082 = vmatprep.mubr.f32.mxu0 %v2013
        %2083 = vmatmul.mubr.f32.gmra.mrb[0].mxu0 %v1946
        %v2084 = vpop.f32.mrb[0].mxu0
        %v2085 = vadd.f32 %v2005, %v2084
        %v2086 = vpop.f32.mrb[0].mxu0
        %v2087 = vadd.f32 %v2009, %v2086
        %2088 = vmatprep.mubr.f32.mxu0 %v2016
        %2089 = vmatmul.mubr.f32.gmra.mrb[0].mxu0 %v1947
        %v2090 = vpop.f32.mrb[0].mxu0
        %v2091 = vadd.f32 %v2005, %v2090
        %v2092 = vpop.f32.mrb[0].mxu0
        %v2093 = vadd.f32 %v2009, %v2092
        %2094 = vdwg.mxu0
        %v2095 = vadd.f32 %v412, %v2085
        %v2096 = vadd.f32 %v413, %v2087
        %v2097 = vadd.f32 %v414, %v2091
        %v2098 = vadd.f32 %v415, %v2093
        %v2099 = vld [vmem:[%s6] sm:$0x3]
        %v2100 = vld [vmem:[%s7] sm:$0x3]
        %v2101 = vsel %vm418, %v2096, 0.0
        %v2102 = vadd.f32 %v2095, %v2101
        %2103 = vadd.xlane.f32.xlu0 %v2102
        %v2104 = vpop.xlane.xlu0 %2103
        %v2105 = vsel %vm418, %v2098, 0.0
        %v2106 = vadd.f32 %v2097, %v2105
        %2107 = vadd.xlane.f32.xlu0 %v2106
        %v2108 = vpop.xlane.xlu0 %2107
        %v2109 = vmul.f32 %v2104, %v427
        %v2110 = vmul.f32 %v2108, %v427
        %v2111 = vsub.f32 %v2095, %v2109
        %v2112 = vsub.f32 %v2096, %v2109
        %v2113 = vsub.f32 %v2097, %v2110
        %v2114 = vsub.f32 %v2098, %v2110
        %v2115 = vmul.f32 %v2111, %v2111
        %v2116 = vmul.f32 %v2112, %v2112
        %v2117 = vmul.f32 %v2113, %v2113
        %v2118 = vmul.f32 %v2114, %v2114
        %v2119 = vsel %vm418, %v2116, 0.0
        %v2120 = vadd.f32 %v2115, %v2119
        %2121 = vadd.xlane.f32.xlu0 %v2120
        %v2122 = vpop.xlane.xlu0 %2121
        %v2123 = vsel %vm418, %v2118, 0.0
        %v2124 = vadd.f32 %v2117, %v2123
        %2125 = vadd.xlane.f32.xlu0 %v2124
        %v2126 = vpop.xlane.xlu0 %2125
        %v2127 = vmul.f32 %v2122, %v427
        %v2128 = vmul.f32 %v2126, %v427
        %v2129 = vadd.f32 %v2127, 1e-05
        %v2130 = vadd.f32 %v2128, 1e-05
        %v2131 = vrsqrt.pop %v2129
        %v2132 = vrsqrt.pop %v2130
        %v2133 = vmul.f32 %v2111, %v2131
        %v2134 = vmul.f32 %v2112, %v2131
        %v2135 = vmul.f32 %v2113, %v2132
        %v2136 = vmul.f32 %v2114, %v2132
        %v2138 = vlaneseq
        %v2139 = vshrl.u32 %v2138, 7
        %v2140 = vsub.s32 0, %v2139
        %v2141 = vrot.slane %v2099, %v2140
        %v2142 = vlaneseq
        %v2143 = vshrl.u32 %v2142, 7
        %v2144 = vsub.s32 1, %v2143
        %v2145 = vrot.slane %v2099, %v2144
        %v2148 = vmul.f32 %v2133, %v2141
        %v2149 = vmul.f32 %v2134, %v2145
        %v2150 = vmul.f32 %v2135, %v2141
        %v2151 = vmul.f32 %v2136, %v2145
        %v2153 = vlaneseq
        %v2154 = vshrl.u32 %v2153, 7
        %v2155 = vsub.s32 0, %v2154
        %v2156 = vrot.slane %v2100, %v2155
        %v2157 = vlaneseq
        %v2158 = vshrl.u32 %v2157, 7
        %v2159 = vsub.s32 1, %v2158
        %v2160 = vrot.slane %v2100, %v2159
        %v2163 = vadd.f32 %v2148, %v2156
        %v2164 = vadd.f32 %v2149, %v2160
        %v2165 = vadd.f32 %v2150, %v2156
        %v2166 = vadd.f32 %v2151, %v2160
        %v2167 = vld [vmem:[%s8] sm:$0xff]
        %v2168 = vld [vmem:[%s8 + $0x8] sm:$0xff]
        %v2169 = vld [vmem:[%s8 + $0x10] sm:$0xff]
        %v2170 = vld [vmem:[%s8 + $0x18] sm:$0xff]
        %v2171 = vld [vmem:[%s8 + $0x20] sm:$0xff]
        %v2172 = vld [vmem:[%s8 + $0x28] sm:$0xff]
        %v2173 = vld [vmem:[%s8 + $0x30] sm:$0xff]
        %v2174 = vld [vmem:[%s8 + $0x38] sm:$0xff]
        %v2175 = vld [vmem:[%s8 + $0x40] sm:$0xff]
        %v2176 = vld [vmem:[%s8 + $0x48] sm:$0xff]
        %v2177 = vld [vmem:[%s8 + $0x50] sm:$0xff]
        %v2178 = vld [vmem:[%s8 + $0x58] sm:$0xff]
        %v2179 = vld [vmem:[%s8 + $0x60] sm:$0xff]
        %v2180 = vld [vmem:[%s8 + $0x68] sm:$0xff]
        %v2181 = vld [vmem:[%s8 + $0x70] sm:$0xff]
        %v2182 = vld [vmem:[%s8 + $0x78] sm:$0xff]
        %v2183 = vld [vmem:[%s8 + $0x80] sm:$0xff]
        %v2184 = vld [vmem:[%s8 + $0x88] sm:$0xff]
        %v2185 = vld [vmem:[%s8 + $0x90] sm:$0xff]
        %v2186 = vld [vmem:[%s8 + $0x98] sm:$0xff]
        %v2187 = vld [vmem:[%s8 + $0xa0] sm:$0xff]
        %v2188 = vld [vmem:[%s8 + $0xa8] sm:$0xff]
        %v2189 = vld [vmem:[%s8 + $0xb0] sm:$0xff]
        %v2190 = vld [vmem:[%s8 + $0xb8] sm:$0xff]
        %v2191 = vld [vmem:[%s8 + $0xc0] sm:$0xff]
        %v2192 = vld [vmem:[%s8 + $0xc8] sm:$0xff]
        %v2193 = vld [vmem:[%s8 + $0xd0] sm:$0xff]
        %v2194 = vld [vmem:[%s8 + $0xd8] sm:$0xff]
        %v2195 = vld [vmem:[%s8 + $0xe0] sm:$0xff]
        %v2196 = vld [vmem:[%s8 + $0xe8] sm:$0xff]
        %v2197 = vld [vmem:[%s8 + $0xf0] sm:$0xff]
        %v2198 = vld [vmem:[%s8 + $0xf8] sm:$0xff]
        %v2199 = vld [vmem:[%s8 + $0x100] sm:$0xff]
        %v2200 = vld [vmem:[%s8 + $0x108] sm:$0xff]
        %v2201 = vld [vmem:[%s8 + $0x110] sm:$0xff]
        %v2202 = vld [vmem:[%s8 + $0x118] sm:$0xff]
        %v2203 = vld [vmem:[%s8 + $0x120] sm:$0xff]
        %v2204 = vld [vmem:[%s8 + $0x128] sm:$0xff]
        %v2205 = vld [vmem:[%s8 + $0x130] sm:$0xff]
        %v2206 = vld [vmem:[%s8 + $0x138] sm:$0xff]
        %v2207 = vld [vmem:[%s8 + $0x140] sm:$0xff]
        %v2208 = vld [vmem:[%s8 + $0x148] sm:$0xff]
        %v2209 = vld [vmem:[%s8 + $0x150] sm:$0xff]
        %v2210 = vld [vmem:[%s8 + $0x158] sm:$0xff]
        %v2211 = vld [vmem:[%s8 + $0x160] sm:$0xff]
        %v2212 = vld [vmem:[%s8 + $0x168] sm:$0xff]
        %v2213 = vld [vmem:[%s8 + $0x170] sm:$0xff]
        %v2214 = vld [vmem:[%s8 + $0x178] sm:$0xff]
        %v2215 = vld [vmem:[%s8 + $0x180] sm:$0xff]
        %v2216 = vld [vmem:[%s8 + $0x188] sm:$0xff]
        %v2217 = vld [vmem:[%s8 + $0x190] sm:$0xff]
        %v2218 = vld [vmem:[%s8 + $0x198] sm:$0xff]
        %v2219 = vld [vmem:[%s8 + $0x1a0] sm:$0xff]
        %v2220 = vld [vmem:[%s8 + $0x1a8] sm:$0xff]
        %v2221 = vld [vmem:[%s8 + $0x1b0] sm:$0xff]
        %v2222 = vld [vmem:[%s8 + $0x1b8] sm:$0xff]
        %v2223 = vld [vmem:[%s8 + $0x1c0] sm:$0xff]
        %v2224 = vld [vmem:[%s8 + $0x1c8] sm:$0xff]
        %v2225 = vld [vmem:[%s8 + $0x1d0] sm:$0xff]
        %v2226 = vld [vmem:[%s8 + $0x1d8] sm:$0xff]
        %v2227 = vld [vmem:[%s8 + $0x1e0] sm:$0xff]
        %v2228 = vld [vmem:[%s8 + $0x1e8] sm:$0xff]
        %v2229 = vld [vmem:[%s8 + $0x1f0] sm:$0xff]
        %v2230 = vld [vmem:[%s8 + $0x1f8] sm:$0xff]
        %v2231 = vld [vmem:[%s8 + $0x200] sm:$0xff]
        %v2232 = vld [vmem:[%s8 + $0x208] sm:$0xff]
        %v2233 = vld [vmem:[%s8 + $0x210] sm:$0xff]
        %v2234 = vld [vmem:[%s8 + $0x218] sm:$0xff]
        %v2235 = vld [vmem:[%s8 + $0x220] sm:$0xff]
        %v2236 = vld [vmem:[%s8 + $0x228] sm:$0xff]
        %v2237 = vld [vmem:[%s8 + $0x230] sm:$0xff]
        %v2238 = vld [vmem:[%s8 + $0x238] sm:$0xff]
        %v2239 = vld [vmem:[%s8 + $0x240] sm:$0xff]
        %v2240 = vld [vmem:[%s8 + $0x248] sm:$0xff]
        %v2241 = vld [vmem:[%s8 + $0x250] sm:$0xff]
        %v2242 = vld [vmem:[%s8 + $0x258] sm:$0xff]
        %v2243 = vld [vmem:[%s8 + $0x260] sm:$0xff]
        %v2244 = vld [vmem:[%s8 + $0x268] sm:$0xff]
        %v2245 = vld [vmem:[%s8 + $0x270] sm:$0xff]
        %v2246 = vld [vmem:[%s8 + $0x278] sm:$0xff]
        %v2247 = vld [vmem:[%s8 + $0x280] sm:$0xff]
        %v2248 = vld [vmem:[%s8 + $0x288] sm:$0xff]
        %v2249 = vld [vmem:[%s8 + $0x290] sm:$0xff]
        %v2250 = vld [vmem:[%s8 + $0x298] sm:$0xff]
        %v2251 = vld [vmem:[%s8 + $0x2a0] sm:$0xff]
        %v2252 = vld [vmem:[%s8 + $0x2a8] sm:$0xff]
        %v2253 = vld [vmem:[%s8 + $0x2b0] sm:$0xff]
        %v2254 = vld [vmem:[%s8 + $0x2b8] sm:$0xff]
        %v2255 = vld [vmem:[%s8 + $0x2c0] sm:$0xff]
        %v2256 = vld [vmem:[%s8 + $0x2c8] sm:$0xff]
        %v2257 = vld [vmem:[%s8 + $0x2d0] sm:$0xff]
        %v2258 = vld [vmem:[%s8 + $0x2d8] sm:$0xff]
        %v2259 = vld [vmem:[%s8 + $0x2e0] sm:$0xff]
        %v2260 = vld [vmem:[%s8 + $0x2e8] sm:$0xff]
        %v2261 = vld [vmem:[%s8 + $0x2f0] sm:$0xff]
        %v2262 = vld [vmem:[%s8 + $0x2f8] sm:$0xff]
        %v2263 = vld [vmem:[%s8 + $0x300] sm:$0xff]
        %v2264 = vld [vmem:[%s8 + $0x308] sm:$0xff]
        %v2265 = vld [vmem:[%s8 + $0x310] sm:$0xff]
        %v2266 = vld [vmem:[%s8 + $0x318] sm:$0xff]
        %v2267 = vld [vmem:[%s8 + $0x320] sm:$0xff]
        %v2268 = vld [vmem:[%s8 + $0x328] sm:$0xff]
        %v2269 = vld [vmem:[%s8 + $0x330] sm:$0xff]
        %v2270 = vld [vmem:[%s8 + $0x338] sm:$0xff]
        %v2271 = vld [vmem:[%s8 + $0x340] sm:$0xff]
        %v2272 = vld [vmem:[%s8 + $0x348] sm:$0xff]
        %v2273 = vld [vmem:[%s8 + $0x350] sm:$0xff]
        %v2274 = vld [vmem:[%s8 + $0x358] sm:$0xff]
        %v2275 = vld [vmem:[%s8 + $0x360] sm:$0xff]
        %v2276 = vld [vmem:[%s8 + $0x368] sm:$0xff]
        %v2277 = vld [vmem:[%s8 + $0x370] sm:$0xff]
        %v2278 = vld [vmem:[%s8 + $0x378] sm:$0xff]
        %v2279 = vld [vmem:[%s8 + $0x380] sm:$0xff]
        %v2280 = vld [vmem:[%s8 + $0x388] sm:$0xff]
        %v2281 = vld [vmem:[%s8 + $0x390] sm:$0xff]
        %v2282 = vld [vmem:[%s8 + $0x398] sm:$0xff]
        %v2283 = vld [vmem:[%s8 + $0x3a0] sm:$0xff]
        %v2284 = vld [vmem:[%s8 + $0x3a8] sm:$0xff]
        %v2285 = vld [vmem:[%s8 + $0x3b0] sm:$0xff]
        %v2286 = vld [vmem:[%s8 + $0x3b8] sm:$0xff]
        %v2287 = vld [vmem:[%s8 + $0x3c0] sm:$0xff]
        %v2288 = vld [vmem:[%s8 + $0x3c8] sm:$0xff]
        %v2289 = vld [vmem:[%s8 + $0x3d0] sm:$0xff]
        %v2290 = vld [vmem:[%s8 + $0x3d8] sm:$0xff]
        %v2291 = vld [vmem:[%s8 + $0x3e0] sm:$0xff]
        %v2292 = vld [vmem:[%s8 + $0x3e8] sm:$0xff]
        %v2293 = vld [vmem:[%s8 + $0x3f0] sm:$0xff]
        %v2294 = vld [vmem:[%s8 + $0x3f8] sm:$0xff]
        %v2295 = vld [vmem:[%s8 + $0x400] sm:$0xff]
        %v2296 = vld [vmem:[%s8 + $0x408] sm:$0xff]
        %v2297 = vld [vmem:[%s8 + $0x410] sm:$0xff]
        %v2298 = vld [vmem:[%s8 + $0x418] sm:$0xff]
        %v2299 = vld [vmem:[%s8 + $0x420] sm:$0xff]
        %v2300 = vld [vmem:[%s8 + $0x428] sm:$0xff]
        %v2301 = vld [vmem:[%s8 + $0x430] sm:$0xff]
        %v2302 = vld [vmem:[%s8 + $0x438] sm:$0xff]
        %v2303 = vld [vmem:[%s8 + $0x440] sm:$0xff]
        %v2304 = vld [vmem:[%s8 + $0x448] sm:$0xff]
        %v2305 = vld [vmem:[%s8 + $0x450] sm:$0xff]
        %v2306 = vld [vmem:[%s8 + $0x458] sm:$0xff]
        %v2307 = vld [vmem:[%s8 + $0x460] sm:$0xff]
        %v2308 = vld [vmem:[%s8 + $0x468] sm:$0xff]
        %v2309 = vld [vmem:[%s8 + $0x470] sm:$0xff]
        %v2310 = vld [vmem:[%s8 + $0x478] sm:$0xff]
        %v2311 = vld [vmem:[%s8 + $0x480] sm:$0xff]
        %v2312 = vld [vmem:[%s8 + $0x488] sm:$0xff]
        %v2313 = vld [vmem:[%s8 + $0x490] sm:$0xff]
        %v2314 = vld [vmem:[%s8 + $0x498] sm:$0xff]
        %v2315 = vld [vmem:[%s8 + $0x4a0] sm:$0xff]
        %v2316 = vld [vmem:[%s8 + $0x4a8] sm:$0xff]
        %v2317 = vld [vmem:[%s8 + $0x4b0] sm:$0xff]
        %v2318 = vld [vmem:[%s8 + $0x4b8] sm:$0xff]
        %v2319 = vld [vmem:[%s8 + $0x4c0] sm:$0xff]
        %v2320 = vld [vmem:[%s8 + $0x4c8] sm:$0xff]
        %v2321 = vld [vmem:[%s8 + $0x4d0] sm:$0xff]
        %v2322 = vld [vmem:[%s8 + $0x4d8] sm:$0xff]
        %v2323 = vld [vmem:[%s8 + $0x4e0] sm:$0xff]
        %v2324 = vld [vmem:[%s8 + $0x4e8] sm:$0xff]
        %v2325 = vld [vmem:[%s8 + $0x4f0] sm:$0xff]
        %v2326 = vld [vmem:[%s8 + $0x4f8] sm:$0xff]
        %v2327 = vld [vmem:[%s8 + $0x500] sm:$0xff]
        %v2328 = vld [vmem:[%s8 + $0x508] sm:$0xff]
        %v2329 = vld [vmem:[%s8 + $0x510] sm:$0xff]
        %v2330 = vld [vmem:[%s8 + $0x518] sm:$0xff]
        %v2331 = vld [vmem:[%s8 + $0x520] sm:$0xff]
        %v2332 = vld [vmem:[%s8 + $0x528] sm:$0xff]
        %v2333 = vld [vmem:[%s8 + $0x530] sm:$0xff]
        %v2334 = vld [vmem:[%s8 + $0x538] sm:$0xff]
        %v2335 = vld [vmem:[%s8 + $0x540] sm:$0xff]
        %v2336 = vld [vmem:[%s8 + $0x548] sm:$0xff]
        %v2337 = vld [vmem:[%s8 + $0x550] sm:$0xff]
        %v2338 = vld [vmem:[%s8 + $0x558] sm:$0xff]
        %v2339 = vld [vmem:[%s8 + $0x560] sm:$0xff]
        %v2340 = vld [vmem:[%s8 + $0x568] sm:$0xff]
        %v2341 = vld [vmem:[%s8 + $0x570] sm:$0xff]
        %v2342 = vld [vmem:[%s9] sm:$0x7f]
        %v2344 = vlaneseq
        %v2345 = vshrl.u32 %v2344, 7
        %v2346 = vsub.s32 0, %v2345
        %v2347 = vrot.slane %v2342, %v2346
        %v2348 = vlaneseq
        %v2349 = vshrl.u32 %v2348, 7
        %v2350 = vsub.s32 1, %v2349
        %v2351 = vrot.slane %v2342, %v2350
        %v2352 = vlaneseq
        %v2353 = vshrl.u32 %v2352, 7
        %v2354 = vsub.s32 2, %v2353
        %v2355 = vrot.slane %v2342, %v2354
        %v2356 = vlaneseq
        %v2357 = vshrl.u32 %v2356, 7
        %v2358 = vsub.s32 3, %v2357
        %v2359 = vrot.slane %v2342, %v2358
        %v2360 = vlaneseq
        %v2361 = vshrl.u32 %v2360, 7
        %v2362 = vsub.s32 4, %v2361
        %v2363 = vrot.slane %v2342, %v2362
        %v2364 = vlaneseq
        %v2365 = vshrl.u32 %v2364, 7
        %v2366 = vsub.s32 5, %v2365
        %v2367 = vrot.slane %v2342, %v2366
        %v2368 = vlaneseq
        %v2369 = vshrl.u32 %v2368, 7
        %v2370 = vsub.s32 6, %v2369
        %v2371 = vrot.slane %v2342, %v2370
        %v2380 = vsel %vm418, %v2164, 0
        %v2383 = vsel %vm418, %v2166, 0
        %2385 = vmatprep.subr.mxu0 %v2168
        %2386 = vmatpush1.msra.mxu0 %v2167
        %2387 = vmatprep.subr.mxu0 %v2175
        %2388 = vmatpush1.msra.mxu0 %v2174
        %2389 = vmatprep.subr.mxu0 %v2182
        %2390 = vmatpush1.msra.mxu0 %v2181
        %2391 = vmatprep.subr.mxu0 %v2189
        %2392 = vmatpush1.msra.mxu0 %v2188
        %2393 = vmatprep.subr.mxu0 %v2196
        %2394 = vmatpush1.msra.mxu0 %v2195
        %2395 = vmatprep.subr.mxu0 %v2203
        %2396 = vmatpush1.msra.mxu0 %v2202
        %2397 = vmatprep.subr.mxu0 %v2210
        %2398 = vmatpush1.msra.mxu0 %v2209
        %2399 = vmatprep.subr.mxu0 %v2217
        %2400 = vmatpush1.msra.mxu0 %v2216
        %2401 = vmatprep.subr.mxu0 %v2224
        %2402 = vmatpush1.msra.mxu0 %v2223
        %2403 = vmatprep.subr.mxu0 %v2231
        %2404 = vmatpush1.msra.mxu0 %v2230
        %2405 = vmatprep.subr.mxu0 %v2238
        %2406 = vmatpush1.msra.mxu0 %v2237
        %2407 = vmatprep.subr.mxu0 %v2245
        %2408 = vmatpush1.msra.mxu0 %v2244
        %2409 = vmatprep.subr.mxu0 %v2252
        %2410 = vmatpush1.msra.mxu0 %v2251
        %2411 = vmatprep.subr.mxu0 %v2259
        %2412 = vmatpush1.msra.mxu0 %v2258
        %2413 = vmatprep.subr.mxu0 %v2266
        %2414 = vmatpush1.msra.mxu0 %v2265
        %2415 = vmatprep.subr.mxu0 %v2273
        %2416 = vmatpush1.msra.mxu0 %v2272
        %2417 = vmatprep.subr.mxu0 %v2280
        %2418 = vmatpush1.msra.mxu0 %v2279
        %2419 = vmatprep.subr.mxu0 %v2287
        %2420 = vmatpush1.msra.mxu0 %v2286
        %2421 = vmatprep.subr.mxu0 %v2294
        %2422 = vmatpush1.msra.mxu0 %v2293
        %2423 = vmatprep.subr.mxu0 %v2301
        %2424 = vmatpush1.msra.mxu0 %v2300
        %2425 = vmatprep.subr.mxu0 %v2308
        %2426 = vmatpush1.msra.mxu0 %v2307
        %2427 = vmatprep.subr.mxu0 %v2315
        %2428 = vmatpush1.msra.mxu0 %v2314
        %2429 = vmatprep.subr.mxu0 %v2322
        %2430 = vmatpush1.msra.mxu0 %v2321
        %2431 = vmatprep.subr.mxu0 %v2329
        %2432 = vmatpush1.msra.mxu0 %v2328
        %2433 = vmatprep.subr.mxu0 %v2336
        %2434 = vmatpush1.msra.mxu0 %v2335
        %2435 = vmatprep.subr.mxu0 0.0
        %2436 = vmatpush1.msra.mxu0 0.0
        %2437 = vmatprep.subr.mxu0 0.0
        %2438 = vmatpush1.msra.mxu0 0.0
        %2439 = vmatprep.subr.mxu0 0.0
        %2440 = vmatpush1.msra.mxu0 0.0
        %2441 = vmatprep.subr.mxu0 0.0
        %2442 = vmatpush1.msra.mxu0 0.0
        %2443 = vmatprep.subr.mxu0 0.0
        %2444 = vmatpush1.msra.mxu0 0.0
        %2445 = vmatprep.subr.mxu0 0.0
        %2446 = vmatpush1.msra.mxu0 0.0
        %2447 = vmatprep.subr.mxu0 0.0
        %2448 = vmatpush1.msra.mxu0 0.0
        %2449 = vmatprep.mubr.f32.mxu0 %v2380
        %2450 = vmatmul.mubr.f32.gmra.mrb[0].mxu0 %v2163
        %v2451 = vpop.f32.mrb[0].mxu0
        %v2452 = vadd.f32 %v2347, %v2451
        %v2453 = vpop.f32.mrb[0].mxu0
        %v2454 = vadd.f32 %v2351, %v2453
        %2455 = vmatprep.mubr.f32.mxu0 %v2383
        %2456 = vmatmul.mubr.f32.gmra.mrb[0].mxu0 %v2165
        %v2457 = vpop.f32.mrb[0].mxu0
        %v2458 = vadd.f32 %v2347, %v2457
        %v2459 = vpop.f32.mrb[0].mxu0
        %v2460 = vadd.f32 %v2351, %v2459
        %2461 = vdwg.mxu0
        %2462 = vmatprep.subr.mxu0 %v2170
        %2463 = vmatpush1.msra.mxu0 %v2169
        %2464 = vmatprep.subr.mxu0 %v2177
        %2465 = vmatpush1.msra.mxu0 %v2176
        %2466 = vmatprep.subr.mxu0 %v2184
        %2467 = vmatpush1.msra.mxu0 %v2183
        %2468 = vmatprep.subr.mxu0 %v2191
        %2469 = vmatpush1.msra.mxu0 %v2190
        %2470 = vmatprep.subr.mxu0 %v2198
        %2471 = vmatpush1.msra.mxu0 %v2197
        %2472 = vmatprep.subr.mxu0 %v2205
        %2473 = vmatpush1.msra.mxu0 %v2204
        %2474 = vmatprep.subr.mxu0 %v2212
        %2475 = vmatpush1.msra.mxu0 %v2211
        %2476 = vmatprep.subr.mxu0 %v2219
        %2477 = vmatpush1.msra.mxu0 %v2218
        %2478 = vmatprep.subr.mxu0 %v2226
        %2479 = vmatpush1.msra.mxu0 %v2225
        %2480 = vmatprep.subr.mxu0 %v2233
        %2481 = vmatpush1.msra.mxu0 %v2232
        %2482 = vmatprep.subr.mxu0 %v2240
        %2483 = vmatpush1.msra.mxu0 %v2239
        %2484 = vmatprep.subr.mxu0 %v2247
        %2485 = vmatpush1.msra.mxu0 %v2246
        %2486 = vmatprep.subr.mxu0 %v2254
        %2487 = vmatpush1.msra.mxu0 %v2253
        %2488 = vmatprep.subr.mxu0 %v2261
        %2489 = vmatpush1.msra.mxu0 %v2260
        %2490 = vmatprep.subr.mxu0 %v2268
        %2491 = vmatpush1.msra.mxu0 %v2267
        %2492 = vmatprep.subr.mxu0 %v2275
        %2493 = vmatpush1.msra.mxu0 %v2274
        %2494 = vmatprep.subr.mxu0 %v2282
        %2495 = vmatpush1.msra.mxu0 %v2281
        %2496 = vmatprep.subr.mxu0 %v2289
        %2497 = vmatpush1.msra.mxu0 %v2288
        %2498 = vmatprep.subr.mxu0 %v2296
        %2499 = vmatpush1.msra.mxu0 %v2295
        %2500 = vmatprep.subr.mxu0 %v2303
        %2501 = vmatpush1.msra.mxu0 %v2302
        %2502 = vmatprep.subr.mxu0 %v2310
        %2503 = vmatpush1.msra.mxu0 %v2309
        %2504 = vmatprep.subr.mxu0 %v2317
        %2505 = vmatpush1.msra.mxu0 %v2316
        %2506 = vmatprep.subr.mxu0 %v2324
        %2507 = vmatpush1.msra.mxu0 %v2323
        %2508 = vmatprep.subr.mxu0 %v2331
        %2509 = vmatpush1.msra.mxu0 %v2330
        %2510 = vmatprep.subr.mxu0 %v2338
        %2511 = vmatpush1.msra.mxu0 %v2337
        %2512 = vmatprep.subr.mxu0 0.0
        %2513 = vmatpush1.msra.mxu0 0.0
        %2514 = vmatprep.subr.mxu0 0.0
        %2515 = vmatpush1.msra.mxu0 0.0
        %2516 = vmatprep.subr.mxu0 0.0
        %2517 = vmatpush1.msra.mxu0 0.0
        %2518 = vmatprep.subr.mxu0 0.0
        %2519 = vmatpush1.msra.mxu0 0.0
        %2520 = vmatprep.subr.mxu0 0.0
        %2521 = vmatpush1.msra.mxu0 0.0
        %2522 = vmatprep.subr.mxu0 0.0
        %2523 = vmatpush1.msra.mxu0 0.0
        %2524 = vmatprep.subr.mxu0 0.0
        %2525 = vmatpush1.msra.mxu0 0.0
        %2526 = vmatprep.mubr.f32.mxu0 %v2380
        %2527 = vmatmul.mubr.f32.gmra.mrb[0].mxu0 %v2163
        %v2528 = vpop.f32.mrb[0].mxu0
        %v2529 = vadd.f32 %v2355, %v2528
        %v2530 = vpop.f32.mrb[0].mxu0
        %v2531 = vadd.f32 %v2359, %v2530
        %2532 = vmatprep.mubr.f32.mxu0 %v2383
        %2533 = vmatmul.mubr.f32.gmra.mrb[0].mxu0 %v2165
        %v2534 = vpop.f32.mrb[0].mxu0
        %v2535 = vadd.f32 %v2355, %v2534
        %v2536 = vpop.f32.mrb[0].mxu0
        %v2537 = vadd.f32 %v2359, %v2536
        %2538 = vdwg.mxu0
        %2539 = vmatprep.subr.mxu0 %v2172
        %2540 = vmatpush1.msra.mxu0 %v2171
        %2541 = vmatprep.subr.mxu0 %v2179
        %2542 = vmatpush1.msra.mxu0 %v2178
        %2543 = vmatprep.subr.mxu0 %v2186
        %2544 = vmatpush1.msra.mxu0 %v2185
        %2545 = vmatprep.subr.mxu0 %v2193
        %2546 = vmatpush1.msra.mxu0 %v2192
        %2547 = vmatprep.subr.mxu0 %v2200
        %2548 = vmatpush1.msra.mxu0 %v2199
        %2549 = vmatprep.subr.mxu0 %v2207
        %2550 = vmatpush1.msra.mxu0 %v2206
        %2551 = vmatprep.subr.mxu0 %v2214
        %2552 = vmatpush1.msra.mxu0 %v2213
        %2553 = vmatprep.subr.mxu0 %v2221
        %2554 = vmatpush1.msra.mxu0 %v2220
        %2555 = vmatprep.subr.mxu0 %v2228
        %2556 = vmatpush1.msra.mxu0 %v2227
        %2557 = vmatprep.subr.mxu0 %v2235
        %2558 = vmatpush1.msra.mxu0 %v2234
        %2559 = vmatprep.subr.mxu0 %v2242
        %2560 = vmatpush1.msra.mxu0 %v2241
        %2561 = vmatprep.subr.mxu0 %v2249
        %2562 = vmatpush1.msra.mxu0 %v2248
        %2563 = vmatprep.subr.mxu0 %v2256
        %2564 = vmatpush1.msra.mxu0 %v2255
        %2565 = vmatprep.subr.mxu0 %v2263
        %2566 = vmatpush1.msra.mxu0 %v2262
        %2567 = vmatprep.subr.mxu0 %v2270
        %2568 = vmatpush1.msra.mxu0 %v2269
        %2569 = vmatprep.subr.mxu0 %v2277
        %2570 = vmatpush1.msra.mxu0 %v2276
        %2571 = vmatprep.subr.mxu0 %v2284
        %2572 = vmatpush1.msra.mxu0 %v2283
        %2573 = vmatprep.subr.mxu0 %v2291
        %2574 = vmatpush1.msra.mxu0 %v2290
        %2575 = vmatprep.subr.mxu0 %v2298
        %2576 = vmatpush1.msra.mxu0 %v2297
        %2577 = vmatprep.subr.mxu0 %v2305
        %2578 = vmatpush1.msra.mxu0 %v2304
        %2579 = vmatprep.subr.mxu0 %v2312
        %2580 = vmatpush1.msra.mxu0 %v2311
        %2581 = vmatprep.subr.mxu0 %v2319
        %2582 = vmatpush1.msra.mxu0 %v2318
        %2583 = vmatprep.subr.mxu0 %v2326
        %2584 = vmatpush1.msra.mxu0 %v2325
        %2585 = vmatprep.subr.mxu0 %v2333
        %2586 = vmatpush1.msra.mxu0 %v2332
        %2587 = vmatprep.subr.mxu0 %v2340
        %2588 = vmatpush1.msra.mxu0 %v2339
        %2589 = vmatprep.subr.mxu0 0.0
        %2590 = vmatpush1.msra.mxu0 0.0
        %2591 = vmatprep.subr.mxu0 0.0
        %2592 = vmatpush1.msra.mxu0 0.0
        %2593 = vmatprep.subr.mxu0 0.0
        %2594 = vmatpush1.msra.mxu0 0.0
        %2595 = vmatprep.subr.mxu0 0.0
        %2596 = vmatpush1.msra.mxu0 0.0
        %2597 = vmatprep.subr.mxu0 0.0
        %2598 = vmatpush1.msra.mxu0 0.0
        %2599 = vmatprep.subr.mxu0 0.0
        %2600 = vmatpush1.msra.mxu0 0.0
        %2601 = vmatprep.subr.mxu0 0.0
        %2602 = vmatpush1.msra.mxu0 0.0
        %2603 = vmatprep.mubr.f32.mxu0 %v2380
        %2604 = vmatmul.mubr.f32.gmra.mrb[0].mxu0 %v2163
        %v2605 = vpop.f32.mrb[0].mxu0
        %v2606 = vadd.f32 %v2363, %v2605
        %v2607 = vpop.f32.mrb[0].mxu0
        %v2608 = vadd.f32 %v2367, %v2607
        %2609 = vmatprep.mubr.f32.mxu0 %v2383
        %2610 = vmatmul.mubr.f32.gmra.mrb[0].mxu0 %v2165
        %v2611 = vpop.f32.mrb[0].mxu0
        %v2612 = vadd.f32 %v2363, %v2611
        %v2613 = vpop.f32.mrb[0].mxu0
        %v2614 = vadd.f32 %v2367, %v2613
        %2615 = vdwg.mxu0
        %2616 = vmatprep.subr.mxu0 0.0
        %2617 = vmatpush1.msra.mxu0 %v2173
        %2618 = vmatprep.subr.mxu0 0.0
        %2619 = vmatpush1.msra.mxu0 %v2180
        %2620 = vmatprep.subr.mxu0 0.0
        %2621 = vmatpush1.msra.mxu0 %v2187
        %2622 = vmatprep.subr.mxu0 0.0
        %2623 = vmatpush1.msra.mxu0 %v2194
        %2624 = vmatprep.subr.mxu0 0.0
        %2625 = vmatpush1.msra.mxu0 %v2201
        %2626 = vmatprep.subr.mxu0 0.0
        %2627 = vmatpush1.msra.mxu0 %v2208
        %2628 = vmatprep.subr.mxu0 0.0
        %2629 = vmatpush1.msra.mxu0 %v2215
        %2630 = vmatprep.subr.mxu0 0.0
        %2631 = vmatpush1.msra.mxu0 %v2222
        %2632 = vmatprep.subr.mxu0 0.0
        %2633 = vmatpush1.msra.mxu0 %v2229
        %2634 = vmatprep.subr.mxu0 0.0
        %2635 = vmatpush1.msra.mxu0 %v2236
        %2636 = vmatprep.subr.mxu0 0.0
        %2637 = vmatpush1.msra.mxu0 %v2243
        %2638 = vmatprep.subr.mxu0 0.0
        %2639 = vmatpush1.msra.mxu0 %v2250
        %2640 = vmatprep.subr.mxu0 0.0
        %2641 = vmatpush1.msra.mxu0 %v2257
        %2642 = vmatprep.subr.mxu0 0.0
        %2643 = vmatpush1.msra.mxu0 %v2264
        %2644 = vmatprep.subr.mxu0 0.0
        %2645 = vmatpush1.msra.mxu0 %v2271
        %2646 = vmatprep.subr.mxu0 0.0
        %2647 = vmatpush1.msra.mxu0 %v2278
        %2648 = vmatprep.subr.mxu0 0.0
        %2649 = vmatpush1.msra.mxu0 %v2285
        %2650 = vmatprep.subr.mxu0 0.0
        %2651 = vmatpush1.msra.mxu0 %v2292
        %2652 = vmatprep.subr.mxu0 0.0
        %2653 = vmatpush1.msra.mxu0 %v2299
        %2654 = vmatprep.subr.mxu0 0.0
        %2655 = vmatpush1.msra.mxu0 %v2306
        %2656 = vmatprep.subr.mxu0 0.0
        %2657 = vmatpush1.msra.mxu0 %v2313
        %2658 = vmatprep.subr.mxu0 0.0
        %2659 = vmatpush1.msra.mxu0 %v2320
        %2660 = vmatprep.subr.mxu0 0.0
        %2661 = vmatpush1.msra.mxu0 %v2327
        %2662 = vmatprep.subr.mxu0 0.0
        %2663 = vmatpush1.msra.mxu0 %v2334
        %2664 = vmatprep.subr.mxu0 0.0
        %2665 = vmatpush1.msra.mxu0 %v2341
        %2666 = vmatprep.subr.mxu0 0.0
        %2667 = vmatpush1.msra.mxu0 0.0
        %2668 = vmatprep.subr.mxu0 0.0
        %2669 = vmatpush1.msra.mxu0 0.0
        %2670 = vmatprep.subr.mxu0 0.0
        %2671 = vmatpush1.msra.mxu0 0.0
        %2672 = vmatprep.subr.mxu0 0.0
        %2673 = vmatpush1.msra.mxu0 0.0
        %2674 = vmatprep.subr.mxu0 0.0
        %2675 = vmatpush1.msra.mxu0 0.0
        %2676 = vmatprep.subr.mxu0 0.0
        %2677 = vmatpush1.msra.mxu0 0.0
        %2678 = vmatprep.subr.mxu0 0.0
        %2679 = vmatpush1.msra.mxu0 0.0
        %2680 = vmatprep.mubr.f32.mxu0 %v2380
        %2681 = vmatmul.mubr.f32.gmra.mrb[0].mxu0 %v2163
        %v2682 = vpop.f32.mrb[0].mxu0
        %v2683 = vadd.f32 %v2371, %v2682
        %v2684 = vpop.f32.mrb[0].mxu0
        %2685 = vmatprep.mubr.f32.mxu0 %v2383
        %2686 = vmatmul.mubr.f32.gmra.mrb[0].mxu0 %v2165
        %v2687 = vpop.f32.mrb[0].mxu0
        %v2688 = vadd.f32 %v2371, %v2687
        %v2689 = vpop.f32.mrb[0].mxu0
        %2690 = vdwg.mxu0
        %v2691 = vmul.f32 %v2452, %v2452
        %v2692 = vmul.f32 %v2454, %v2454
        %v2693 = vmul.f32 %v2529, %v2529
        %v2694 = vmul.f32 %v2531, %v2531
        %v2695 = vmul.f32 %v2606, %v2606
        %v2696 = vmul.f32 %v2608, %v2608
        %v2697 = vmul.f32 %v2683, %v2683
        %v2698 = vmul.f32 %v2458, %v2458
        %v2699 = vmul.f32 %v2460, %v2460
        %v2700 = vmul.f32 %v2535, %v2535
        %v2701 = vmul.f32 %v2537, %v2537
        %v2702 = vmul.f32 %v2612, %v2612
        %v2703 = vmul.f32 %v2614, %v2614
        %v2704 = vmul.f32 %v2688, %v2688
        %v2705 = vmul.f32 %v2452, %v2691
        %v2706 = vmul.f32 %v2454, %v2692
        %v2707 = vmul.f32 %v2529, %v2693
        %v2708 = vmul.f32 %v2531, %v2694
        %v2709 = vmul.f32 %v2606, %v2695
        %v2710 = vmul.f32 %v2608, %v2696
        %v2711 = vmul.f32 %v2683, %v2697
        %v2712 = vmul.f32 %v2458, %v2698
        %v2713 = vmul.f32 %v2460, %v2699
        %v2714 = vmul.f32 %v2535, %v2700
        %v2715 = vmul.f32 %v2537, %v2701
        %v2716 = vmul.f32 %v2612, %v2702
        %v2717 = vmul.f32 %v2614, %v2703
        %v2718 = vmul.f32 %v2688, %v2704
        %v2719 = vmul.f32 %v2705, 0.044715
        %v2720 = vmul.f32 %v2706, 0.044715
        %v2721 = vmul.f32 %v2707, 0.044715
        %v2722 = vmul.f32 %v2708, 0.044715
        %v2723 = vmul.f32 %v2709, 0.044715
        %v2724 = vmul.f32 %v2710, 0.044715
        %v2725 = vmul.f32 %v2711, 0.044715
        %v2726 = vmul.f32 %v2712, 0.044715
        %v2727 = vmul.f32 %v2713, 0.044715
        %v2728 = vmul.f32 %v2714, 0.044715
        %v2729 = vmul.f32 %v2715, 0.044715
        %v2730 = vmul.f32 %v2716, 0.044715
        %v2731 = vmul.f32 %v2717, 0.044715
        %v2732 = vmul.f32 %v2718, 0.044715
        %v2733 = vadd.f32 %v2452, %v2719
        %v2734 = vadd.f32 %v2454, %v2720
        %v2735 = vadd.f32 %v2529, %v2721
        %v2736 = vadd.f32 %v2531, %v2722
        %v2737 = vadd.f32 %v2606, %v2723
        %v2738 = vadd.f32 %v2608, %v2724
        %v2739 = vadd.f32 %v2683, %v2725
        %v2740 = vadd.f32 %v2458, %v2726
        %v2741 = vadd.f32 %v2460, %v2727
        %v2742 = vadd.f32 %v2535, %v2728
        %v2743 = vadd.f32 %v2537, %v2729
        %v2744 = vadd.f32 %v2612, %v2730
        %v2745 = vadd.f32 %v2614, %v2731
        %v2746 = vadd.f32 %v2688, %v2732
        %v2747 = vmul.f32 %v2733, 0.7978846
        %v2748 = vmul.f32 %v2734, 0.7978846
        %v2749 = vmul.f32 %v2735, 0.7978846
        %v2750 = vmul.f32 %v2736, 0.7978846
        %v2751 = vmul.f32 %v2737, 0.7978846
        %v2752 = vmul.f32 %v2738, 0.7978846
        %v2753 = vmul.f32 %v2739, 0.7978846
        %v2754 = vmul.f32 %v2740, 0.7978846
        %v2755 = vmul.f32 %v2741, 0.7978846
        %v2756 = vmul.f32 %v2742, 0.7978846
        %v2757 = vmul.f32 %v2743, 0.7978846
        %v2758 = vmul.f32 %v2744, 0.7978846
        %v2759 = vmul.f32 %v2745, 0.7978846
        %v2760 = vmul.f32 %v2746, 0.7978846
        %v2761 = vtanh.pop %v2747
        %v2762 = vtanh.pop %v2748
        %v2763 = vtanh.pop %v2749
        %v2764 = vtanh.pop %v2750
        %v2765 = vtanh.pop %v2751
        %v2766 = vtanh.pop %v2752
        %v2767 = vtanh.pop %v2753
        %v2768 = vtanh.pop %v2754
        %v2769 = vtanh.pop %v2755
        %v2770 = vtanh.pop %v2756
        %v2771 = vtanh.pop %v2757
        %v2772 = vtanh.pop %v2758
        %v2773 = vtanh.pop %v2759
        %v2774 = vtanh.pop %v2760
        %v2775 = vadd.f32 %v2761, 1.0
        %v2776 = vadd.f32 %v2762, 1.0
        %v2777 = vadd.f32 %v2763, 1.0
        %v2778 = vadd.f32 %v2764, 1.0
        %v2779 = vadd.f32 %v2765, 1.0
        %v2780 = vadd.f32 %v2766, 1.0
        %v2781 = vadd.f32 %v2767, 1.0
        %v2782 = vadd.f32 %v2768, 1.0
        %v2783 = vadd.f32 %v2769, 1.0
        %v2784 = vadd.f32 %v2770, 1.0
        %v2785 = vadd.f32 %v2771, 1.0
        %v2786 = vadd.f32 %v2772, 1.0
        %v2787 = vadd.f32 %v2773, 1.0
        %v2788 = vadd.f32 %v2774, 1.0
        %v2789 = vmul.f32 %v2775, 0.5
        %v2790 = vmul.f32 %v2776, 0.5
        %v2791 = vmul.f32 %v2777, 0.5
        %v2792 = vmul.f32 %v2778, 0.5
        %v2793 = vmul.f32 %v2779, 0.5
        %v2794 = vmul.f32 %v2780, 0.5
        %v2795 = vmul.f32 %v2781, 0.5
        %v2796 = vmul.f32 %v2782, 0.5
        %v2797 = vmul.f32 %v2783, 0.5
        %v2798 = vmul.f32 %v2784, 0.5
        %v2799 = vmul.f32 %v2785, 0.5
        %v2800 = vmul.f32 %v2786, 0.5
        %v2801 = vmul.f32 %v2787, 0.5
        %v2802 = vmul.f32 %v2788, 0.5
        %v2803 = vmul.f32 %v2452, %v2789
        %v2804 = vmul.f32 %v2454, %v2790
        %v2805 = vmul.f32 %v2529, %v2791
        %v2806 = vmul.f32 %v2531, %v2792
        %v2807 = vmul.f32 %v2606, %v2793
        %v2808 = vmul.f32 %v2608, %v2794
        %v2809 = vmul.f32 %v2683, %v2795
        %v2810 = vmul.f32 %v2458, %v2796
        %v2811 = vmul.f32 %v2460, %v2797
        %v2812 = vmul.f32 %v2535, %v2798
        %v2813 = vmul.f32 %v2537, %v2799
        %v2814 = vmul.f32 %v2612, %v2800
        %v2815 = vmul.f32 %v2614, %v2801
        %v2816 = vmul.f32 %v2688, %v2802
        %v2817 = vld [vmem:[%s10] sm:$0xff]
        %v2818 = vld [vmem:[%s10 + $0x8] sm:$0xff]
        %v2819 = vld [vmem:[%s10 + $0x10] sm:$0xff]
        %v2820 = vld [vmem:[%s10 + $0x18] sm:$0xff]
        %v2821 = vld [vmem:[%s10 + $0x20] sm:$0xff]
        %v2822 = vld [vmem:[%s10 + $0x28] sm:$0xff]
        %v2823 = vld [vmem:[%s10 + $0x30] sm:$0xff]
        %v2824 = vld [vmem:[%s10 + $0x38] sm:$0xff]
        %v2825 = vld [vmem:[%s10 + $0x40] sm:$0xff]
        %v2826 = vld [vmem:[%s10 + $0x48] sm:$0xff]
        %v2827 = vld [vmem:[%s10 + $0x50] sm:$0xff]
        %v2828 = vld [vmem:[%s10 + $0x58] sm:$0xff]
        %v2829 = vld [vmem:[%s10 + $0x60] sm:$0xff]
        %v2830 = vld [vmem:[%s10 + $0x68] sm:$0xff]
        %v2831 = vld [vmem:[%s10 + $0x70] sm:$0xff]
        %v2832 = vld [vmem:[%s10 + $0x78] sm:$0xff]
        %v2833 = vld [vmem:[%s10 + $0x80] sm:$0xff]
        %v2834 = vld [vmem:[%s10 + $0x88] sm:$0xff]
        %v2835 = vld [vmem:[%s10 + $0x90] sm:$0xff]
        %v2836 = vld [vmem:[%s10 + $0x98] sm:$0xff]
        %v2837 = vld [vmem:[%s10 + $0xa0] sm:$0xff]
        %v2838 = vld [vmem:[%s10 + $0xa8] sm:$0xff]
        %v2839 = vld [vmem:[%s10 + $0xb0] sm:$0xff]
        %v2840 = vld [vmem:[%s10 + $0xb8] sm:$0xff]
        %v2841 = vld [vmem:[%s10 + $0xc0] sm:$0xff]
        %v2842 = vld [vmem:[%s10 + $0xc8] sm:$0xff]
        %v2843 = vld [vmem:[%s10 + $0xd0] sm:$0xff]
        %v2844 = vld [vmem:[%s10 + $0xd8] sm:$0xff]
        %v2845 = vld [vmem:[%s10 + $0xe0] sm:$0xff]
        %v2846 = vld [vmem:[%s10 + $0xe8] sm:$0xff]
        %v2847 = vld [vmem:[%s10 + $0xf0] sm:$0xff]
        %v2848 = vld [vmem:[%s10 + $0xf8] sm:$0xff]
        %v2849 = vld [vmem:[%s10 + $0x100] sm:$0xff]
        %v2850 = vld [vmem:[%s10 + $0x108] sm:$0xff]
        %v2851 = vld [vmem:[%s10 + $0x110] sm:$0xff]
        %v2852 = vld [vmem:[%s10 + $0x118] sm:$0xff]
        %v2853 = vld [vmem:[%s10 + $0x120] sm:$0xff]
        %v2854 = vld [vmem:[%s10 + $0x128] sm:$0xff]
        %v2855 = vld [vmem:[%s10 + $0x130] sm:$0xff]
        %v2856 = vld [vmem:[%s10 + $0x138] sm:$0xff]
        %v2857 = vld [vmem:[%s10 + $0x140] sm:$0xff]
        %v2858 = vld [vmem:[%s10 + $0x148] sm:$0xff]
        %v2859 = vld [vmem:[%s10 + $0x150] sm:$0xff]
        %v2860 = vld [vmem:[%s10 + $0x158] sm:$0xff]
        %v2861 = vld [vmem:[%s10 + $0x160] sm:$0xff]
        %v2862 = vld [vmem:[%s10 + $0x168] sm:$0xff]
        %v2863 = vld [vmem:[%s10 + $0x170] sm:$0xff]
        %v2864 = vld [vmem:[%s10 + $0x178] sm:$0xff]
        %v2865 = vld [vmem:[%s10 + $0x180] sm:$0xff]
        %v2866 = vld [vmem:[%s10 + $0x188] sm:$0xff]
        %v2867 = vld [vmem:[%s10 + $0x190] sm:$0xff]
        %v2868 = vld [vmem:[%s10 + $0x198] sm:$0xff]
        %v2869 = vld [vmem:[%s10 + $0x1a0] sm:$0xff]
        %v2870 = vld [vmem:[%s10 + $0x1a8] sm:$0xff]
        %v2871 = vld [vmem:[%s10 + $0x1b0] sm:$0xff]
        %v2872 = vld [vmem:[%s10 + $0x1b8] sm:$0xff]
        %v2873 = vld [vmem:[%s10 + $0x1c0] sm:$0xff]
        %v2874 = vld [vmem:[%s10 + $0x1c8] sm:$0xff]
        %v2875 = vld [vmem:[%s10 + $0x1d0] sm:$0xff]
        %v2876 = vld [vmem:[%s10 + $0x1d8] sm:$0xff]
        %v2877 = vld [vmem:[%s10 + $0x1e0] sm:$0xff]
        %v2878 = vld [vmem:[%s10 + $0x1e8] sm:$0xff]
        %v2879 = vld [vmem:[%s10 + $0x1f0] sm:$0xff]
        %v2880 = vld [vmem:[%s10 + $0x1f8] sm:$0xff]
        %v2881 = vld [vmem:[%s10 + $0x200] sm:$0xff]
        %v2882 = vld [vmem:[%s10 + $0x208] sm:$0xff]
        %v2883 = vld [vmem:[%s10 + $0x210] sm:$0xff]
        %v2884 = vld [vmem:[%s10 + $0x218] sm:$0xff]
        %v2885 = vld [vmem:[%s10 + $0x220] sm:$0xff]
        %v2886 = vld [vmem:[%s10 + $0x228] sm:$0xff]
        %v2887 = vld [vmem:[%s10 + $0x230] sm:$0xff]
        %v2888 = vld [vmem:[%s10 + $0x238] sm:$0xff]
        %v2889 = vld [vmem:[%s10 + $0x240] sm:$0xff]
        %v2890 = vld [vmem:[%s10 + $0x248] sm:$0xff]
        %v2891 = vld [vmem:[%s10 + $0x250] sm:$0xff]
        %v2892 = vld [vmem:[%s10 + $0x258] sm:$0xff]
        %v2893 = vld [vmem:[%s10 + $0x260] sm:$0xff]
        %v2894 = vld [vmem:[%s10 + $0x268] sm:$0xff]
        %v2895 = vld [vmem:[%s10 + $0x270] sm:$0xff]
        %v2896 = vld [vmem:[%s10 + $0x278] sm:$0xff]
        %v2897 = vld [vmem:[%s10 + $0x280] sm:$0xff]
        %v2898 = vld [vmem:[%s10 + $0x288] sm:$0xff]
        %v2899 = vld [vmem:[%s10 + $0x290] sm:$0xff]
        %v2900 = vld [vmem:[%s10 + $0x298] sm:$0xff]
        %v2901 = vld [vmem:[%s10 + $0x2a0] sm:$0xff]
        %v2902 = vld [vmem:[%s10 + $0x2a8] sm:$0xff]
        %v2903 = vld [vmem:[%s10 + $0x2b0] sm:$0xff]
        %v2904 = vld [vmem:[%s10 + $0x2b8] sm:$0xff]
        %v2905 = vld [vmem:[%s10 + $0x2c0] sm:$0xff]
        %v2906 = vld [vmem:[%s10 + $0x2c8] sm:$0xff]
        %v2907 = vld [vmem:[%s10 + $0x2d0] sm:$0xff]
        %v2908 = vld [vmem:[%s10 + $0x2d8] sm:$0xff]
        %v2909 = vld [vmem:[%s10 + $0x2e0] sm:$0xff]
        %v2910 = vld [vmem:[%s10 + $0x2e8] sm:$0xff]
        %v2911 = vld [vmem:[%s10 + $0x2f0] sm:$0xff]
        %v2912 = vld [vmem:[%s10 + $0x2f8] sm:$0xff]
        %v2913 = vld [vmem:[%s10 + $0x300] sm:$0xff]
        %v2914 = vld [vmem:[%s10 + $0x308] sm:$0xff]
        %v2915 = vld [vmem:[%s10 + $0x310] sm:$0xff]
        %v2916 = vld [vmem:[%s10 + $0x318] sm:$0xff]
        %v2917 = vld [vmem:[%s10 + $0x320] sm:$0xff]
        %v2918 = vld [vmem:[%s10 + $0x328] sm:$0xff]
        %v2919 = vld [vmem:[%s10 + $0x330] sm:$0xff]
        %v2920 = vld [vmem:[%s10 + $0x338] sm:$0xff]
        %v2921 = vld [vmem:[%s10 + $0x340] sm:$0xff]
        %v2922 = vld [vmem:[%s10 + $0x348] sm:$0xff]
        %v2923 = vld [vmem:[%s10 + $0x350] sm:$0xff]
        %v2924 = vld [vmem:[%s10 + $0x358] sm:$0xff]
        %v2925 = vld [vmem:[%s10 + $0x360] sm:$0xff]
        %v2926 = vld [vmem:[%s10 + $0x368] sm:$0xff]
        %v2927 = vld [vmem:[%s10 + $0x370] sm:$0xff]
        %v2928 = vld [vmem:[%s10 + $0x378] sm:$0xff]
        %v2929 = vld [vmem:[%s10 + $0x380] sm:$0xff]
        %v2930 = vld [vmem:[%s10 + $0x388] sm:$0xff]
        %v2931 = vld [vmem:[%s10 + $0x390] sm:$0xff]
        %v2932 = vld [vmem:[%s10 + $0x398] sm:$0xff]
        %v2933 = vld [vmem:[%s10 + $0x3a0] sm:$0xff]
        %v2934 = vld [vmem:[%s10 + $0x3a8] sm:$0xff]
        %v2935 = vld [vmem:[%s10 + $0x3b0] sm:$0xff]
        %v2936 = vld [vmem:[%s10 + $0x3b8] sm:$0xff]
        %v2937 = vld [vmem:[%s10 + $0x3c0] sm:$0xff]
        %v2938 = vld [vmem:[%s10 + $0x3c8] sm:$0xff]
        %v2939 = vld [vmem:[%s10 + $0x3d0] sm:$0xff]
        %v2940 = vld [vmem:[%s10 + $0x3d8] sm:$0xff]
        %v2941 = vld [vmem:[%s10 + $0x3e0] sm:$0xff]
        %v2942 = vld [vmem:[%s10 + $0x3e8] sm:$0xff]
        %v2943 = vld [vmem:[%s10 + $0x3f0] sm:$0xff]
        %v2944 = vld [vmem:[%s10 + $0x3f8] sm:$0xff]
        %v2945 = vld [vmem:[%s10 + $0x400] sm:$0xff]
        %v2946 = vld [vmem:[%s10 + $0x408] sm:$0xff]
        %v2947 = vld [vmem:[%s10 + $0x410] sm:$0xff]
        %v2948 = vld [vmem:[%s10 + $0x418] sm:$0xff]
        %v2949 = vld [vmem:[%s10 + $0x420] sm:$0xff]
        %v2950 = vld [vmem:[%s10 + $0x428] sm:$0xff]
        %v2951 = vld [vmem:[%s10 + $0x430] sm:$0xff]
        %v2952 = vld [vmem:[%s10 + $0x438] sm:$0xff]
        %v2953 = vld [vmem:[%s10 + $0x440] sm:$0xff]
        %v2954 = vld [vmem:[%s10 + $0x448] sm:$0xff]
        %v2955 = vld [vmem:[%s10 + $0x450] sm:$0xff]
        %v2956 = vld [vmem:[%s10 + $0x458] sm:$0xff]
        %v2957 = vld [vmem:[%s10 + $0x460] sm:$0xff]
        %v2958 = vld [vmem:[%s10 + $0x468] sm:$0xff]
        %v2959 = vld [vmem:[%s10 + $0x470] sm:$0xff]
        %v2960 = vld [vmem:[%s10 + $0x478] sm:$0xff]
        %v2961 = vld [vmem:[%s10 + $0x480] sm:$0xff]
        %v2962 = vld [vmem:[%s10 + $0x488] sm:$0xff]
        %v2963 = vld [vmem:[%s10 + $0x490] sm:$0xff]
        %v2964 = vld [vmem:[%s10 + $0x498] sm:$0xff]
        %v2965 = vld [vmem:[%s10 + $0x4a0] sm:$0xff]
        %v2966 = vld [vmem:[%s10 + $0x4a8] sm:$0xff]
        %v2967 = vld [vmem:[%s10 + $0x4b0] sm:$0xff]
        %v2968 = vld [vmem:[%s10 + $0x4b8] sm:$0xff]
        %v2969 = vld [vmem:[%s10 + $0x4c0] sm:$0xff]
        %v2970 = vld [vmem:[%s10 + $0x4c8] sm:$0xff]
        %v2971 = vld [vmem:[%s10 + $0x4d0] sm:$0xff]
        %v2972 = vld [vmem:[%s10 + $0x4d8] sm:$0xff]
        %v2973 = vld [vmem:[%s10 + $0x4e0] sm:$0xff]
        %v2974 = vld [vmem:[%s10 + $0x4e8] sm:$0xff]
        %v2975 = vld [vmem:[%s10 + $0x4f0] sm:$0xff]
        %v2976 = vld [vmem:[%s10 + $0x4f8] sm:$0xff]
        %v2977 = vld [vmem:[%s10 + $0x500] sm:$0xff]
        %v2978 = vld [vmem:[%s10 + $0x508] sm:$0xff]
        %v2979 = vld [vmem:[%s10 + $0x510] sm:$0xff]
        %v2980 = vld [vmem:[%s10 + $0x518] sm:$0xff]
        %v2981 = vld [vmem:[%s10 + $0x520] sm:$0xff]
        %v2982 = vld [vmem:[%s10 + $0x528] sm:$0xff]
        %v2983 = vld [vmem:[%s10 + $0x530] sm:$0xff]
        %v2984 = vld [vmem:[%s10 + $0x538] sm:$0xff]
        %v2985 = vld [vmem:[%s10 + $0x540] sm:$0xff]
        %v2986 = vld [vmem:[%s10 + $0x548] sm:$0xff]
        %v2987 = vld [vmem:[%s10 + $0x550] sm:$0xff]
        %v2988 = vld [vmem:[%s10 + $0x558] sm:$0xff]
        %v2989 = vld [vmem:[%s10 + $0x560] sm:$0xff]
        %v2990 = vld [vmem:[%s10 + $0x568] sm:$0xff]
        %v2991 = vld [vmem:[%s10 + $0x570] sm:$0xff]
        %v2992 = vld [vmem:[%s10 + $0x578] sm:$0xff]
        %v2993 = vld [vmem:[%s10 + $0x580] sm:$0xff]
        %v2994 = vld [vmem:[%s10 + $0x588] sm:$0xff]
        %v2995 = vld [vmem:[%s10 + $0x590] sm:$0xff]
        %v2996 = vld [vmem:[%s10 + $0x598] sm:$0xff]
        %v2997 = vld [vmem:[%s10 + $0x5a0] sm:$0xff]
        %v2998 = vld [vmem:[%s10 + $0x5a8] sm:$0xff]
        %v2999 = vld [vmem:[%s10 + $0x5b0] sm:$0xff]
        %v3000 = vld [vmem:[%s10 + $0x5b8] sm:$0xff]
        %v3001 = vld [vmem:[%s10 + $0x5c0] sm:$0xff]
        %v3002 = vld [vmem:[%s10 + $0x5c8] sm:$0xff]
        %v3003 = vld [vmem:[%s10 + $0x5d0] sm:$0xff]
        %v3004 = vld [vmem:[%s10 + $0x5d8] sm:$0xff]
        %v3005 = vld [vmem:[%s10 + $0x5e0] sm:$0xff]
        %v3006 = vld [vmem:[%s10 + $0x5e8] sm:$0xff]
        %v3007 = vld [vmem:[%s10 + $0x5f0] sm:$0xff]
        %v3008 = vld [vmem:[%s10 + $0x5f8] sm:$0xff]
        %v3009 = vld [vmem:[%s10 + $0x600] sm:$0xff]
        %v3010 = vld [vmem:[%s10 + $0x608] sm:$0xff]
        %v3011 = vld [vmem:[%s10 + $0x610] sm:$0xff]
        %v3012 = vld [vmem:[%s10 + $0x618] sm:$0xff]
        %v3013 = vld [vmem:[%s10 + $0x620] sm:$0xff]
        %v3014 = vld [vmem:[%s10 + $0x628] sm:$0xff]
        %v3015 = vld [vmem:[%s10 + $0x630] sm:$0xff]
        %v3016 = vld [vmem:[%s10 + $0x638] sm:$0xff]
        %v3017 = vld [vmem:[%s11] sm:$0x3]
        %v3019 = vlaneseq
        %v3020 = vshrl.u32 %v3019, 7
        %v3021 = vsub.s32 0, %v3020
        %v3022 = vrot.slane %v3017, %v3021
        %v3023 = vlaneseq
        %v3024 = vshrl.u32 %v3023, 7
        %v3025 = vsub.s32 1, %v3024
        %v3026 = vrot.slane %v3017, %v3025
        %v3030 = vsel %vm1400, %v2809, 0
        %v3033 = vsel %vm1400, %v2816, 0
        %3035 = vmatprep.subr.mxu0 %v2818
        %3036 = vmatpush1.msra.mxu0 %v2817
        %3037 = vmatprep.subr.mxu0 %v2820
        %3038 = vmatpush1.msra.mxu0 %v2819
        %3039 = vmatprep.subr.mxu0 %v2822
        %3040 = vmatpush1.msra.mxu0 %v2821
        %3041 = vmatprep.subr.mxu0 %v2824
        %3042 = vmatpush1.msra.mxu0 %v2823
        %3043 = vmatprep.subr.mxu0 %v2826
        %3044 = vmatpush1.msra.mxu0 %v2825
        %3045 = vmatprep.subr.mxu0 %v2828
        %3046 = vmatpush1.msra.mxu0 %v2827
        %3047 = vmatprep.subr.mxu0 %v2830
        %3048 = vmatpush1.msra.mxu0 %v2829
        %3049 = vmatprep.subr.mxu0 %v2832
        %3050 = vmatpush1.msra.mxu0 %v2831
        %3051 = vmatprep.subr.mxu0 %v2834
        %3052 = vmatpush1.msra.mxu0 %v2833
        %3053 = vmatprep.subr.mxu0 %v2836
        %3054 = vmatpush1.msra.mxu0 %v2835
        %3055 = vmatprep.subr.mxu0 %v2838
        %3056 = vmatpush1.msra.mxu0 %v2837
        %3057 = vmatprep.subr.mxu0 %v2840
        %3058 = vmatpush1.msra.mxu0 %v2839
        %3059 = vmatprep.subr.mxu0 %v2842
        %3060 = vmatpush1.msra.mxu0 %v2841
        %3061 = vmatprep.subr.mxu0 %v2844
        %3062 = vmatpush1.msra.mxu0 %v2843
        %3063 = vmatprep.subr.mxu0 %v2846
        %3064 = vmatpush1.msra.mxu0 %v2845
        %3065 = vmatprep.subr.mxu0 %v2848
        %3066 = vmatpush1.msra.mxu0 %v2847
        %3067 = vmatprep.subr.mxu0 %v2850
        %3068 = vmatpush1.msra.mxu0 %v2849
        %3069 = vmatprep.subr.mxu0 %v2852
        %3070 = vmatpush1.msra.mxu0 %v2851
        %3071 = vmatprep.subr.mxu0 %v2854
        %3072 = vmatpush1.msra.mxu0 %v2853
        %3073 = vmatprep.subr.mxu0 %v2856
        %3074 = vmatpush1.msra.mxu0 %v2855
        %3075 = vmatprep.subr.mxu0 %v2858
        %3076 = vmatpush1.msra.mxu0 %v2857
        %3077 = vmatprep.subr.mxu0 %v2860
        %3078 = vmatpush1.msra.mxu0 %v2859
        %3079 = vmatprep.subr.mxu0 %v2862
        %3080 = vmatpush1.msra.mxu0 %v2861
        %3081 = vmatprep.subr.mxu0 %v2864
        %3082 = vmatpush1.msra.mxu0 %v2863
        %3083 = vmatprep.subr.mxu0 %v2866
        %3084 = vmatpush1.msra.mxu0 %v2865
        %3085 = vmatprep.subr.mxu0 %v2868
        %3086 = vmatpush1.msra.mxu0 %v2867
        %3087 = vmatprep.subr.mxu0 %v2870
        %3088 = vmatpush1.msra.mxu0 %v2869
        %3089 = vmatprep.subr.mxu0 %v2872
        %3090 = vmatpush1.msra.mxu0 %v2871
        %3091 = vmatprep.subr.mxu0 %v2874
        %3092 = vmatpush1.msra.mxu0 %v2873
        %3093 = vmatprep.subr.mxu0 %v2876
        %3094 = vmatpush1.msra.mxu0 %v2875
        %3095 = vmatprep.subr.mxu0 %v2878
        %3096 = vmatpush1.msra.mxu0 %v2877
        %3097 = vmatprep.subr.mxu0 %v2880
        %3098 = vmatpush1.msra.mxu0 %v2879
        %3099 = vmatprep.mubr.f32.mxu0 %v2804
        %3100 = vmatmul.mubr.f32.gmra.mrb[0].mxu0 %v2803
        %v3101 = vpop.f32.mrb[0].mxu0
        %v3102 = vadd.f32 %v3022, %v3101
        %v3103 = vpop.f32.mrb[0].mxu0
        %v3104 = vadd.f32 %v3026, %v3103
        %3105 = vmatprep.mubr.f32.mxu0 %v2811
        %3106 = vmatmul.mubr.f32.gmra.mrb[0].mxu0 %v2810
        %v3107 = vpop.f32.mrb[0].mxu0
        %v3108 = vadd.f32 %v3022, %v3107
        %v3109 = vpop.f32.mrb[0].mxu0
        %v3110 = vadd.f32 %v3026, %v3109
        %3111 = vdwg.mxu0
        %3112 = vmatprep.subr.mxu0 %v2882
        %3113 = vmatpush1.msra.mxu0 %v2881
        %3114 = vmatprep.subr.mxu0 %v2884
        %3115 = vmatpush1.msra.mxu0 %v2883
        %3116 = vmatprep.subr.mxu0 %v2886
        %3117 = vmatpush1.msra.mxu0 %v2885
        %3118 = vmatprep.subr.mxu0 %v2888
        %3119 = vmatpush1.msra.mxu0 %v2887
        %3120 = vmatprep.subr.mxu0 %v2890
        %3121 = vmatpush1.msra.mxu0 %v2889
        %3122 = vmatprep.subr.mxu0 %v2892
        %3123 = vmatpush1.msra.mxu0 %v2891
        %3124 = vmatprep.subr.mxu0 %v2894
        %3125 = vmatpush1.msra.mxu0 %v2893
        %3126 = vmatprep.subr.mxu0 %v2896
        %3127 = vmatpush1.msra.mxu0 %v2895
        %3128 = vmatprep.subr.mxu0 %v2898
        %3129 = vmatpush1.msra.mxu0 %v2897
        %3130 = vmatprep.subr.mxu0 %v2900
        %3131 = vmatpush1.msra.mxu0 %v2899
        %3132 = vmatprep.subr.mxu0 %v2902
        %3133 = vmatpush1.msra.mxu0 %v2901
        %3134 = vmatprep.subr.mxu0 %v2904
        %3135 = vmatpush1.msra.mxu0 %v2903
        %3136 = vmatprep.subr.mxu0 %v2906
        %3137 = vmatpush1.msra.mxu0 %v2905
        %3138 = vmatprep.subr.mxu0 %v2908
        %3139 = vmatpush1.msra.mxu0 %v2907
        %3140 = vmatprep.subr.mxu0 %v2910
        %3141 = vmatpush1.msra.mxu0 %v2909
        %3142 = vmatprep.subr.mxu0 %v2912
        %3143 = vmatpush1.msra.mxu0 %v2911
        %3144 = vmatprep.subr.mxu0 %v2914
        %3145 = vmatpush1.msra.mxu0 %v2913
        %3146 = vmatprep.subr.mxu0 %v2916
        %3147 = vmatpush1.msra.mxu0 %v2915
        %3148 = vmatprep.subr.mxu0 %v2918
        %3149 = vmatpush1.msra.mxu0 %v2917
        %3150 = vmatprep.subr.mxu0 %v2920
        %3151 = vmatpush1.msra.mxu0 %v2919
        %3152 = vmatprep.subr.mxu0 %v2922
        %3153 = vmatpush1.msra.mxu0 %v2921
        %3154 = vmatprep.subr.mxu0 %v2924
        %3155 = vmatpush1.msra.mxu0 %v2923
        %3156 = vmatprep.subr.mxu0 %v2926
        %3157 = vmatpush1.msra.mxu0 %v2925
        %3158 = vmatprep.subr.mxu0 %v2928
        %3159 = vmatpush1.msra.mxu0 %v2927
        %3160 = vmatprep.subr.mxu0 %v2930
        %3161 = vmatpush1.msra.mxu0 %v2929
        %3162 = vmatprep.subr.mxu0 %v2932
        %3163 = vmatpush1.msra.mxu0 %v2931
        %3164 = vmatprep.subr.mxu0 %v2934
        %3165 = vmatpush1.msra.mxu0 %v2933
        %3166 = vmatprep.subr.mxu0 %v2936
        %3167 = vmatpush1.msra.mxu0 %v2935
        %3168 = vmatprep.subr.mxu0 %v2938
        %3169 = vmatpush1.msra.mxu0 %v2937
        %3170 = vmatprep.subr.mxu0 %v2940
        %3171 = vmatpush1.msra.mxu0 %v2939
        %3172 = vmatprep.subr.mxu0 %v2942
        %3173 = vmatpush1.msra.mxu0 %v2941
        %3174 = vmatprep.subr.mxu0 %v2944
        %3175 = vmatpush1.msra.mxu0 %v2943
        %3176 = vmatprep.mubr.f32.mxu0 %v2806
        %3177 = vmatmul.mubr.f32.gmra.mrb[0].mxu0 %v2805
        %v3178 = vpop.f32.mrb[0].mxu0
        %v3179 = vadd.f32 %v3102, %v3178
        %v3180 = vpop.f32.mrb[0].mxu0
        %v3181 = vadd.f32 %v3104, %v3180
        %3182 = vmatprep.mubr.f32.mxu0 %v2813
        %3183 = vmatmul.mubr.f32.gmra.mrb[0].mxu0 %v2812
        %v3184 = vpop.f32.mrb[0].mxu0
        %v3185 = vadd.f32 %v3108, %v3184
        %v3186 = vpop.f32.mrb[0].mxu0
        %v3187 = vadd.f32 %v3110, %v3186
        %3188 = vdwg.mxu0
        %3189 = vmatprep.subr.mxu0 %v2946
        %3190 = vmatpush1.msra.mxu0 %v2945
        %3191 = vmatprep.subr.mxu0 %v2948
        %3192 = vmatpush1.msra.mxu0 %v2947
        %3193 = vmatprep.subr.mxu0 %v2950
        %3194 = vmatpush1.msra.mxu0 %v2949
        %3195 = vmatprep.subr.mxu0 %v2952
        %3196 = vmatpush1.msra.mxu0 %v2951
        %3197 = vmatprep.subr.mxu0 %v2954
        %3198 = vmatpush1.msra.mxu0 %v2953
        %3199 = vmatprep.subr.mxu0 %v2956
        %3200 = vmatpush1.msra.mxu0 %v2955
        %3201 = vmatprep.subr.mxu0 %v2958
        %3202 = vmatpush1.msra.mxu0 %v2957
        %3203 = vmatprep.subr.mxu0 %v2960
        %3204 = vmatpush1.msra.mxu0 %v2959
        %3205 = vmatprep.subr.mxu0 %v2962
        %3206 = vmatpush1.msra.mxu0 %v2961
        %3207 = vmatprep.subr.mxu0 %v2964
        %3208 = vmatpush1.msra.mxu0 %v2963
        %3209 = vmatprep.subr.mxu0 %v2966
        %3210 = vmatpush1.msra.mxu0 %v2965
        %3211 = vmatprep.subr.mxu0 %v2968
        %3212 = vmatpush1.msra.mxu0 %v2967
        %3213 = vmatprep.subr.mxu0 %v2970
        %3214 = vmatpush1.msra.mxu0 %v2969
        %3215 = vmatprep.subr.mxu0 %v2972
        %3216 = vmatpush1.msra.mxu0 %v2971
        %3217 = vmatprep.subr.mxu0 %v2974
        %3218 = vmatpush1.msra.mxu0 %v2973
        %3219 = vmatprep.subr.mxu0 %v2976
        %3220 = vmatpush1.msra.mxu0 %v2975
        %3221 = vmatprep.subr.mxu0 %v2978
        %3222 = vmatpush1.msra.mxu0 %v2977
        %3223 = vmatprep.subr.mxu0 %v2980
        %3224 = vmatpush1.msra.mxu0 %v2979
        %3225 = vmatprep.subr.mxu0 %v2982
        %3226 = vmatpush1.msra.mxu0 %v2981
        %3227 = vmatprep.subr.mxu0 %v2984
        %3228 = vmatpush1.msra.mxu0 %v2983
        %3229 = vmatprep.subr.mxu0 %v2986
        %3230 = vmatpush1.msra.mxu0 %v2985
        %3231 = vmatprep.subr.mxu0 %v2988
        %3232 = vmatpush1.msra.mxu0 %v2987
        %3233 = vmatprep.subr.mxu0 %v2990
        %3234 = vmatpush1.msra.mxu0 %v2989
        %3235 = vmatprep.subr.mxu0 %v2992
        %3236 = vmatpush1.msra.mxu0 %v2991
        %3237 = vmatprep.subr.mxu0 %v2994
        %3238 = vmatpush1.msra.mxu0 %v2993
        %3239 = vmatprep.subr.mxu0 %v2996
        %3240 = vmatpush1.msra.mxu0 %v2995
        %3241 = vmatprep.subr.mxu0 %v2998
        %3242 = vmatpush1.msra.mxu0 %v2997
        %3243 = vmatprep.subr.mxu0 %v3000
        %3244 = vmatpush1.msra.mxu0 %v2999
        %3245 = vmatprep.subr.mxu0 %v3002
        %3246 = vmatpush1.msra.mxu0 %v3001
        %3247 = vmatprep.subr.mxu0 %v3004
        %3248 = vmatpush1.msra.mxu0 %v3003
        %3249 = vmatprep.subr.mxu0 %v3006
        %3250 = vmatpush1.msra.mxu0 %v3005
        %3251 = vmatprep.subr.mxu0 %v3008
        %3252 = vmatpush1.msra.mxu0 %v3007
        %3253 = vmatprep.mubr.f32.mxu0 %v2808
        %3254 = vmatmul.mubr.f32.gmra.mrb[0].mxu0 %v2807
        %v3255 = vpop.f32.mrb[0].mxu0
        %v3256 = vadd.f32 %v3179, %v3255
        %v3257 = vpop.f32.mrb[0].mxu0
        %v3258 = vadd.f32 %v3181, %v3257
        %3259 = vmatprep.mubr.f32.mxu0 %v2815
        %3260 = vmatmul.mubr.f32.gmra.mrb[0].mxu0 %v2814
        %v3261 = vpop.f32.mrb[0].mxu0
        %v3262 = vadd.f32 %v3185, %v3261
        %v3263 = vpop.f32.mrb[0].mxu0
        %v3264 = vadd.f32 %v3187, %v3263
        %3265 = vdwg.mxu0
        %3266 = vmatprep.subr.mxu0 %v3010
        %3267 = vmatpush1.msra.mxu0 %v3009
        %3268 = vmatprep.subr.mxu0 %v3012
        %3269 = vmatpush1.msra.mxu0 %v3011
        %3270 = vmatprep.subr.mxu0 %v3014
        %3271 = vmatpush1.msra.mxu0 %v3013
        %3272 = vmatprep.subr.mxu0 %v3016
        %3273 = vmatpush1.msra.mxu0 %v3015
        %3274 = vmatprep.subr.mxu0 0.0
        %3275 = vmatpush1.msra.mxu0 0.0
        %3276 = vmatprep.subr.mxu0 0.0
        %3277 = vmatpush1.msra.mxu0 0.0
        %3278 = vmatprep.subr.mxu0 0.0
        %3279 = vmatpush1.msra.mxu0 0.0
        %3280 = vmatprep.subr.mxu0 0.0
        %3281 = vmatpush1.msra.mxu0 0.0
        %3282 = vmatprep.subr.mxu0 0.0
        %3283 = vmatpush1.msra.mxu0 0.0
        %3284 = vmatprep.subr.mxu0 0.0
        %3285 = vmatpush1.msra.mxu0 0.0
        %3286 = vmatprep.subr.mxu0 0.0
        %3287 = vmatpush1.msra.mxu0 0.0
        %3288 = vmatprep.subr.mxu0 0.0
        %3289 = vmatpush1.msra.mxu0 0.0
        %3290 = vmatprep.subr.mxu0 0.0
        %3291 = vmatpush1.msra.mxu0 0.0
        %3292 = vmatprep.subr.mxu0 0.0
        %3293 = vmatpush1.msra.mxu0 0.0
        %3294 = vmatprep.subr.mxu0 0.0
        %3295 = vmatpush1.msra.mxu0 0.0
        %3296 = vmatprep.subr.mxu0 0.0
        %3297 = vmatpush1.msra.mxu0 0.0
        %3298 = vmatprep.subr.mxu0 0.0
        %3299 = vmatpush1.msra.mxu0 0.0
        %3300 = vmatprep.subr.mxu0 0.0
        %3301 = vmatpush1.msra.mxu0 0.0
        %3302 = vmatprep.subr.mxu0 0.0
        %3303 = vmatpush1.msra.mxu0 0.0
        %3304 = vmatprep.subr.mxu0 0.0
        %3305 = vmatpush1.msra.mxu0 0.0
        %3306 = vmatprep.subr.mxu0 0.0
        %3307 = vmatpush1.msra.mxu0 0.0
        %3308 = vmatprep.subr.mxu0 0.0
        %3309 = vmatpush1.msra.mxu0 0.0
        %3310 = vmatprep.subr.mxu0 0.0
        %3311 = vmatpush1.msra.mxu0 0.0
        %3312 = vmatprep.subr.mxu0 0.0
        %3313 = vmatpush1.msra.mxu0 0.0
        %3314 = vmatprep.subr.mxu0 0.0
        %3315 = vmatpush1.msra.mxu0 0.0
        %3316 = vmatprep.subr.mxu0 0.0
        %3317 = vmatpush1.msra.mxu0 0.0
        %3318 = vmatprep.subr.mxu0 0.0
        %3319 = vmatpush1.msra.mxu0 0.0
        %3320 = vmatprep.subr.mxu0 0.0
        %3321 = vmatpush1.msra.mxu0 0.0
        %3322 = vmatprep.subr.mxu0 0.0
        %3323 = vmatpush1.msra.mxu0 0.0
        %3324 = vmatprep.subr.mxu0 0.0
        %3325 = vmatpush1.msra.mxu0 0.0
        %3326 = vmatprep.subr.mxu0 0.0
        %3327 = vmatpush1.msra.mxu0 0.0
        %3328 = vmatprep.subr.mxu0 0.0
        %3329 = vmatpush1.msra.mxu0 0.0
        %3330 = vmatprep.mubr.f32.mxu0 0.0
        %3331 = vmatmul.mubr.f32.gmra.mrb[0].mxu0 %v3030
        %v3332 = vpop.f32.mrb[0].mxu0
        %v3333 = vadd.f32 %v3256, %v3332
        %v3334 = vpop.f32.mrb[0].mxu0
        %v3335 = vadd.f32 %v3258, %v3334
        %3336 = vmatprep.mubr.f32.mxu0 0.0
        %3337 = vmatmul.mubr.f32.gmra.mrb[0].mxu0 %v3033
        %v3338 = vpop.f32.mrb[0].mxu0
        %v3339 = vadd.f32 %v3262, %v3338
        %v3340 = vpop.f32.mrb[0].mxu0
        %v3341 = vadd.f32 %v3264, %v3340
        %3342 = vdwg.mxu0
        %v3343 = vadd.f32 %v2095, %v3333
        %v3344 = vadd.f32 %v2096, %v3335
        %v3345 = vadd.f32 %v2097, %v3339
        %v3346 = vadd.f32 %v2098, %v3341
        %3347 = vst [vmem:[%s406] sm:$0xff] %v3343
        %3348 = vst.msk [vmem:[%s406 + $0x8] sm:$0xff] %vm418, %v3344
        %3349 = vst [vmem:[%s406 + $0x10] sm:$0xff] %v3345
        %3350 = vst.msk [vmem:[%s406 + $0x18] sm:$0xff] %vm418, %v3346
        %s3351 = sand.u32 %s291, 1
        %s3352 = scalar_lea.sflag [#allocation3], %s3351
        %s3353 = sand.u32 %s291, 1
        %s3354 = smul.addr %s3353, 32
        %s3355 = scalar_lea.vmem [#allocation2], %s3354
        // Predicated region
        $region69: #{block_forward.1} parent=67 // pred_check
          %p3356 = pneg %p301
        $region70: #{block_forward.1} parent=67 // pred_check_branch
          %3358 = sbr.rel (%p3356) target = $region72
        $region71: #{block_forward.1} parent=67 // pred_region
          %s3360 = ssub.s32 512, 512
          %3361 = vsyncadd %s3352, %s3360
          %s3362 = smul.addr %s26, 4
          %s3363 = smul.addr %s3362, 128
          %s3364 = scalar_lea.hbm %s12, %s3363
          %s3365 = sshll.u32 %s3355, 4
          %s3366 = int_to_ptr.vmem [resolvable:$true] %s3365
          %3371 = dma.vmem_to_hbm [thread:$0]  %s3366, 512, %s3364, %s3352, 256, 256, 16
        $region72: #{block_forward.1} parent=67 // pred_fallthru
          _
      $region68: #{block_forward.1} parent=5 // pred_fallthru
        _
      %p3372 = scmp.le.s32.totalorder 2, %s21
      // Predicated region
      $region73: #{block_forward.1} parent=5 // pred_check
        %p3373 = pneg %p3372
      $region74: #{block_forward.1} parent=5 // pred_check_branch
        %3375 = sbr.rel (%p3373) target = $region76
      $region75: #{block_forward.1} parent=5 // pred_region
        %s3376 = ssub.s32 %s21, 2
        // Predicated region
        $region77: #{block_forward.1} parent=75 // pred_check
          %p3377 = pneg %p307
        $region78: #{block_forward.1} parent=75 // pred_check_branch
          %3379 = sbr.rel (%p3377) target = $region80
        $region79: #{block_forward.1} parent=75 // pred_region
          %s3380 = sand.u32 %s292, 1
          %s3381 = scalar_lea.sflag [#allocation3], %s3380
          %s3382 = sand.u32 %s292, 1
          %s3383 = smul.addr %s3382, 32
          %s3384 = scalar_lea.vmem [#allocation2], %s3383
          %3385 = dma.done %s3381, 512
        $region80: #{block_forward.1} parent=75 // pred_fallthru
          _
      $region76: #{block_forward.1} parent=5 // pred_fallthru
        _
    $region6: #{block_forward.1} parent=1 // loop_footer
      %s25 = sadd.s32 1, %s21
    $region7: #{block_forward.1} parent=1 // loop_footer_branch
      %20 = sbr.rel target = $region3
    $region8: #{block_forward.1} parent=1 // loop_exit
      _
    %3386 = vsyncpa [#allocation3], 1
    %s3387 = scalar_lea.sflag [#allocation3], 1
    %3388 = vsyncpa %s3387, 1

</llo_original>
